<compile_context>
chip_gen: v5e
topology: v5e:2x2
jax: 0.10.0
libtpu: 0.0.40
codegen_flags: <defaults>
</compile_context>

<pallas_src>
import jax
import jax.numpy as jnp
from jax import lax
from jax.experimental import pallas as pl
from jax.experimental.pallas import tpu as pltpu


def _gru_fc_kernel(x_ref, wih0_ref, wih_ref, whh_ref, gbias_ref, bhn_ref,
                   fcw_ref, fcb_ref, out_ref, gi_ref, seqbuf_ref):
    """One batch tile: full L-layer GRU + final Linear.

    x_ref     : (seq, Bt, D)           time-major input tile
    wih0_ref  : (D, 3H)                layer-0 gate-fused W_ih^T  [r|z|n]
    wih_ref   : (max(L-1,1), H, 3H)    layers>=1 gate-fused W_ih^T
    whh_ref   : (L, H, 3H)             gate-fused W_hh^T
    gbias_ref : (L, 1, 3H)             fused bias [b_ir+b_hr | b_iz+b_hz | b_in]
    bhn_ref   : (L, 1, H)              b_hn (must stay inside the r*(.) term)
    fcw_ref   : (H, O)   fcb_ref: (1, O)   final Linear
    out_ref   : (Bt, O)
    gi_ref    : (seq, Bt, 3H) f32 scratch -- precomputed input-side gates
    seqbuf_ref: (seq, Bt, H)  f32 scratch -- previous layer's output sequence
    """
    seq, Bt, D = x_ref.shape
    L = whh_ref.shape[0]
    H = whh_ref.shape[1]
    H2, H3 = 2 * H, 3 * H
    mm_dtype = whh_ref.dtype          # f32 (exact) or bf16 (fast MXU path)

    # Vreg-pressure guard: fully unroll the time loop only while the fused
    # hidden-weight tile comfortably fits in the 64-vreg file.
    w_bytes = H * H3 * (2 if mm_dtype == jnp.bfloat16 else 4)
    unroll_amt = True if w_bytes <= 64 * 1024 else 4

    def precompute_gi(rows, wih_l, gbias_l):
        # One gate-fused MXU matmul over all seq*Bt rows; biases folded in here
        # (outside the recurrence).
        gi = jnp.dot(rows.astype(mm_dtype), wih_l,
                     preferred_element_type=jnp.float32)
        gi_ref[...] = (gi + gbias_l).reshape(seq, Bt, H3)

    def run_layer(whh_l, bhn_l, write_seq):
        # Hoist the b_hn broadcast above the (unrolled) loop -- JAX does not
        # CSE broadcast_in_dim per unrolled iteration.
        bhn_b = jnp.broadcast_to(bhn_l, (Bt, H))

        def step(t, h):
            gh = jnp.dot(h.astype(mm_dtype), whh_l,
                         preferred_element_type=jnp.float32)     # (Bt, 3H)
            gt = gi_ref[t]                                       # (Bt, 3H)
            rz = jax.nn.sigmoid(gt[:, :H2] + gh[:, :H2])
            r = rz[:, :H]
            z = rz[:, H:]
            n = jnp.tanh(gt[:, H2:] + r * (gh[:, H2:] + bhn_b))
            h_new = n + z * (h - n)              # == (1-z)*n + z*h
            if write_seq:                        # skip the store for the last layer
                seqbuf_ref[t] = h_new
            return h_new

        h0 = jnp.zeros((Bt, H), jnp.float32)
        return lax.fori_loop(0, seq, step, h0, unroll=unroll_amt)

    # ---- layer 0: gi from the raw input sequence ----------------------------
    precompute_gi(x_ref[...].reshape(seq * Bt, D), wih0_ref[...], gbias_ref[0])
    h_last = run_layer(whh_ref[0], bhn_ref[0], write_seq=(L > 1))

    # ---- layers 1..L-1: gi from the previous layer's output sequence --------
    # (seqbuf is fully consumed by precompute_gi before the loop re-writes it,
    #  so a single ping buffer is hazard-free.)
    for l in range(1, L):
        precompute_gi(seqbuf_ref[...].reshape(seq * Bt, H),
                      wih_ref[l - 1], gbias_ref[l])
        h_last = run_layer(whh_ref[l], bhn_ref[l], write_seq=(l < L - 1))

    # ---- final Linear on the last layer's last hidden state -----------------
    out = jnp.dot(h_last.astype(fcw_ref.dtype), fcw_ref[...],
                  preferred_element_type=jnp.float32)
    out_ref[...] = (out + fcb_ref[...]).astype(out_ref.dtype)


def rnn_forward(x, params, *, batch_tile=None, matmul_dtype=jnp.float32):
    """x: (batch, seq, input_dim) f32 -> (batch, output_dim) f32."""
    wih0, wih_rest, whh, bih, bhh, fcw, fcb = params
    B, seq, D = x.shape
    L = whh.shape[0]
    H = whh.shape[1]
    O = fcw.shape[1]
    H2 = 2 * H

    # Fold b_hh[r] / b_hh[z] into the precomputed input-side gate bias; only
    # b_hn must remain inside the r * (.) term of the recurrence.
    gate_bias = jnp.concatenate(
        [bih[:, :, :H2] + bhh[:, :, :H2], bih[:, :, H2:]], axis=-1)  # (L,1,3H)
    bhn = bhh[:, :, H2:]                                             # (L,1,H)

    if matmul_dtype != jnp.float32:
        # bf16 matmul operands (the MXU is bf16-native on v5e/v6e/v7x);
        # biases and all gate math stay f32.
        wih0 = wih0.astype(matmul_dtype)
        wih_rest = wih_rest.astype(matmul_dtype)
        whh = whh.astype(matmul_dtype)
        fcw = fcw.astype(matmul_dtype)

    # Batch tiling: the grid is a *serial* loop, and every extra tile re-runs
    # the entire L*seq serial recurrence.  Default = one fat tile covering the
    # whole padded batch.  On v7x pass batch_tile=ceil(B/2) (then
    # dimension_semantics=("parallel",) splits the two tiles across the TCs).
    sub = 16 if matmul_dtype == jnp.bfloat16 else 8   # bf16 packs 16 sublanes
    if batch_tile is None:
        bt = max(sub, -(-B // sub) * sub)
    else:
        bt = max(sub, -(-batch_tile // sub) * sub)
    B_pad = -(-B // bt) * bt

    x_tm = jnp.transpose(x, (1, 0, 2))                # (seq, B, D) time-major
    if B_pad != B:
        x_tm = jnp.pad(x_tm, ((0, 0), (0, B_pad - B), (0, 0)))
    # TODO(synk): for large B*seq*D, keep x batch-major and fold the time-major
    # reorder into the gi write (saves this wrapper transpose's HBM round trip);
    # for very long sequences, stream gi/seqbuf in seq chunks instead of keeping
    # (seq, Bt, 3H) resident -- matters first on v7x (64 MiB physical VMEM).

    out = pl.pallas_call(
        _gru_fc_kernel,
        out_shape=jax.ShapeDtypeStruct((B_pad, O), jnp.float32),
        grid=(B_pad // bt,),
        in_specs=[
            pl.BlockSpec((seq, bt, D), lambda i: (0, i, 0)),     # batch-tiled x
            pl.BlockSpec(wih0.shape, lambda i: (0, 0)),
            pl.BlockSpec(wih_rest.shape, lambda i: (0, 0, 0)),
            pl.BlockSpec(whh.shape, lambda i: (0, 0, 0)),
            pl.BlockSpec(gate_bias.shape, lambda i: (0, 0, 0)),
            pl.BlockSpec(bhn.shape, lambda i: (0, 0, 0)),
            pl.BlockSpec(fcw.shape, lambda i: (0, 0)),
            pl.BlockSpec(fcb.shape, lambda i: (0, 0)),
        ],
        out_specs=pl.BlockSpec((bt, O), lambda i: (i, 0)),
        scratch_shapes=[pltpu.VMEM((seq, bt, 3 * H), jnp.float32),   # gi
                        pltpu.VMEM((seq, bt, H), jnp.float32)],      # seqbuf
        compiler_params=pltpu.CompilerParams(
            dimension_semantics=("parallel",),      # v7x: batch tiles across TCs
            vmem_limit_bytes=32 * 1024 * 1024),
    )(x_tm, wih0, wih_rest, whh, gate_bias, bhn, fcw, fcb)
    return out[:B]


def init_params(key, input_dim, hidden_dim, output_dim, num_layers):
    """PyTorch-style uniform(-1/sqrt(H), 1/sqrt(H)) init, stored gate-fused
    ([r|z|n] along the last axis) and pre-transposed for `x @ W` matmuls."""
    H, L = hidden_dim, num_layers
    k = 1.0 / jnp.sqrt(jnp.float32(H))
    keys = jax.random.split(key, 7)
    u = lambda kk, shape: jax.random.uniform(kk, shape, jnp.float32, -k, k)
    wih0 = u(keys[0], (input_dim, 3 * H))               # W_ih_l0^T, gate-fused
    wih_rest = u(keys[1], (max(L - 1, 1), H, 3 * H))    # W_ih_l{>=1}^T
    whh = u(keys[2], (L, H, 3 * H))                     # W_hh^T
    bih = u(keys[3], (L, 1, 3 * H))
    bhh = u(keys[4], (L, 1, 3 * H))
    fcw = u(keys[5], (H, output_dim))                   # fc.weight^T
    fcb = u(keys[6], (1, output_dim))
    return (wih0, wih_rest, whh, bih, bhh, fcw, fcb)


def rnn_forward_ref(x, params):
    """Pure-JAX f32 reference of the same forward pass (for verification)."""
    wih0, wih_rest, whh, bih, bhh, fcw, fcb = params
    x_tm = jnp.transpose(x, (1, 0, 2))
    seq, B, _ = x_tm.shape
    L, H = whh.shape[0], whh.shape[1]

    def layer(inp_seq, wih_l, whh_l, bih_l, bhh_l):
        def step(h, xt):
            gi = xt @ wih_l + bih_l            # (B, 3H), gates [r|z|n]
            gh = h @ whh_l + bhh_l             # (B, 3H)
            r = jax.nn.sigmoid(gi[:, :H] + gh[:, :H])
            z = jax.nn.sigmoid(gi[:, H:2 * H] + gh[:, H:2 * H])
            n = jnp.tanh(gi[:, 2 * H:] + r * gh[:, 2 * H:])
            h_new = (1.0 - z) * n + z * h
            return h_new, h_new
        _, outs = lax.scan(step, jnp.zeros((B, H), jnp.float32), inp_seq)
        return outs

    seq_out = layer(x_tm, wih0, whh[0], bih[0], bhh[0])
    for l in range(1, L):
        seq_out = layer(seq_out, wih_rest[l - 1], whh[l], bih[l], bhh[l])
    return seq_out[-1] @ fcw + fcb


if __name__ == "__main__":
    batch, seq = 2, 8
    input_dim, hidden_dim, output_dim, num_layers = 16, 32, 8, 3

    key = jax.random.PRNGKey(0)
    kx, kp = jax.random.split(key)
    x = jax.random.normal(kx, (batch, seq, input_dim), jnp.float32)
    params = init_params(kp, input_dim, hidden_dim, output_dim, num_layers)

    ref = jax.block_until_ready(rnn_forward_ref(x, params))

    # f32 MXU path: exact semantics of the PyTorch module (modulo reassociation).
    out_f32 = jax.block_until_ready(rnn_forward(x, params))
    assert out_f32.shape == (batch, output_dim), out_f32.shape
    assert jnp.allclose(out_f32, ref, atol=1e-5, rtol=1e-5), (out_f32, ref)

    # bf16-operand MXU path (all chips; f32 accumulation, f32 gate math).
    out_bf16 = jax.block_until_ready(
        rnn_forward(x, params, matmul_dtype=jnp.bfloat16))
    assert jnp.allclose(out_bf16, ref, atol=6e-2, rtol=6e-2), (out_bf16, ref)

    print("KERNEL_OK")
</pallas_src>

<mosaic_0001>
module attributes {stable_mosaic.version = 11 : i64} {
  func.func @_gru_fc_kernel(%arg0: i32, %arg1: memref<8x8x16xf32, #tpu.memory_space<vmem>>, %arg2: memref<16x96xf32, #tpu.memory_space<vmem>>, %arg3: memref<2x32x96xf32, #tpu.memory_space<vmem>>, %arg4: memref<3x32x96xf32, #tpu.memory_space<vmem>>, %arg5: memref<3x1x96xf32, #tpu.memory_space<vmem>>, %arg6: memref<3x1x32xf32, #tpu.memory_space<vmem>>, %arg7: memref<32x8xf32, #tpu.memory_space<vmem>>, %arg8: memref<1x8xf32, #tpu.memory_space<vmem>>, %arg9: memref<8x8xf32, #tpu.memory_space<vmem>>, %arg10: memref<8x8x96xf32, #tpu.memory_space<vmem>>, %arg11: memref<8x8x32xf32, #tpu.memory_space<vmem>>) attributes {dimension_semantics = [#tpu.dimension_semantics<parallel>], iteration_bounds = array<i64: 1>, scalar_prefetch = 0 : i64, scratch_operands = 2 : i64, tpu.core_type = #tpu.core_type<tc>, window_params = [{transform_indices = @transform_0, window_bounds = array<i64: 8, 8, 16>}, {pipeline_mode = #tpu.pipeline_mode<synchronous>, transform_indices = @transform_1, window_bounds = array<i64: 16, 96>}, {pipeline_mode = #tpu.pipeline_mode<synchronous>, transform_indices = @transform_2, window_bounds = array<i64: 2, 32, 96>}, {pipeline_mode = #tpu.pipeline_mode<synchronous>, transform_indices = @transform_3, window_bounds = array<i64: 3, 32, 96>}, {pipeline_mode = #tpu.pipeline_mode<synchronous>, transform_indices = @transform_4, window_bounds = array<i64: 3, 1, 96>}, {pipeline_mode = #tpu.pipeline_mode<synchronous>, transform_indices = @transform_5, window_bounds = array<i64: 3, 1, 32>}, {pipeline_mode = #tpu.pipeline_mode<synchronous>, transform_indices = @transform_6, window_bounds = array<i64: 32, 8>}, {pipeline_mode = #tpu.pipeline_mode<synchronous>, transform_indices = @transform_7, window_bounds = array<i64: 1, 8>}, {transform_indices = @transform_8, window_bounds = array<i64: 8, 8>}]} {
    %c0 = arith.constant 0 : index
    %c0_0 = arith.constant 0 : index
    %c0_1 = arith.constant 0 : index
    %0 = vector.load %arg1[%c0, %c0_0, %c0_1] : memref<8x8x16xf32, #tpu.memory_space<vmem>>, vector<8x8x16xf32>
    %1 = vector.shape_cast %0 : vector<8x8x16xf32> to vector<64x16xf32>
    %c0_2 = arith.constant 0 : index
    %c0_3 = arith.constant 0 : index
    %2 = vector.load %arg2[%c0_2, %c0_3] : memref<16x96xf32, #tpu.memory_space<vmem>>, vector<16x96xf32>
    %c0_4 = arith.constant 0 : index
    %c0_5 = arith.constant 0 : index
    %c0_6 = arith.constant 0 : index
    %3 = vector.load %arg5[%c0_4, %c0_5, %c0_6] : memref<3x1x96xf32, #tpu.memory_space<vmem>>, vector<1x1x96xf32>
    %4 = vector.shape_cast %3 : vector<1x1x96xf32> to vector<1x96xf32>
    %cst = arith.constant dense<0.000000e+00> : vector<64x96xf32>
    %5 = tpu.matmul %1, %2, %cst {dimension_numbers = #tpu.dot_dimension_numbers<[1], [0], [0], [1], [0, 0, 1, 1], [], []>} : vector<64x16xf32>, vector<16x96xf32>, vector<64x96xf32> -> vector<64x96xf32>
    %6 = vector.broadcast %4 : vector<1x96xf32> to vector<64x96xf32>
    %7 = arith.addf %5, %6 : vector<64x96xf32>
    %8 = vector.shape_cast %7 : vector<64x96xf32> to vector<8x8x96xf32>
    %c0_7 = arith.constant 0 : index
    %c0_8 = arith.constant 0 : index
    %c0_9 = arith.constant 0 : index
    %9 = vector.load %arg10[%c0_7, %c0_8, %c0_9] : memref<8x8x96xf32, #tpu.memory_space<vmem>>, vector<8x8x96xf32>
    tpu.vector_store %arg10[%c0_7, %c0_8, %c0_9], %8 {strides = array<i32>} : memref<8x8x96xf32, #tpu.memory_space<vmem>>, vector<8x8x96xf32>,
    %c0_10 = arith.constant 0 : index
    %c0_11 = arith.constant 0 : index
    %c0_12 = arith.constant 0 : index
    %10 = vector.load %arg4[%c0_10, %c0_11, %c0_12] : memref<3x32x96xf32, #tpu.memory_space<vmem>>, vector<1x32x96xf32>
    %11 = vector.shape_cast %10 : vector<1x32x96xf32> to vector<32x96xf32>
    %c0_13 = arith.constant 0 : index
    %c0_14 = arith.constant 0 : index
    %c0_15 = arith.constant 0 : index
    %12 = vector.load %arg6[%c0_13, %c0_14, %c0_15] : memref<3x1x32xf32, #tpu.memory_space<vmem>>, vector<1x1x32xf32>
    %13 = vector.shape_cast %12 : vector<1x1x32xf32> to vector<1x32xf32>
    %14 = vector.shape_cast %13 : vector<1x32xf32> to vector<1x32xf32>
    %15 = vector.broadcast %14 : vector<1x32xf32> to vector<8x32xf32>
    %cst_16 = arith.constant 0.000000e+00 : f32
    %16 = vector.broadcast %cst_16 : f32 to vector<8x32xf32>
    %c0_i32 = arith.constant 0 : i32
    %cst_17 = arith.constant dense<0.000000e+00> : vector<8x96xf32>
    %17 = tpu.matmul %16, %11, %cst_17 {dimension_numbers = #tpu.dot_dimension_numbers<[1], [0], [0], [1], [0, 0, 1, 1], [], []>} : vector<8x32xf32>, vector<32x96xf32>, vector<8x96xf32> -> vector<8x96xf32>
    %18 = arith.index_cast %c0_i32 : i32 to index
    %c0_18 = arith.constant 0 : index
    %c0_19 = arith.constant 0 : index
    %19 = vector.load %arg10[%18, %c0_18, %c0_19] : memref<8x8x96xf32, #tpu.memory_space<vmem>>, vector<1x8x96xf32>
    %20 = vector.shape_cast %19 : vector<1x8x96xf32> to vector<8x96xf32>
    %21 = vector.extract_strided_slice %20 {offsets = [0, 0], sizes = [8, 64], strides = [1, 1]} : vector<8x96xf32> to vector<8x64xf32>
    %22 = vector.extract_strided_slice %17 {offsets = [0, 0], sizes = [8, 64], strides = [1, 1]} : vector<8x96xf32> to vector<8x64xf32>
    %23 = arith.addf %21, %22 : vector<8x64xf32>
    %24 = arith.negf %23 : vector<8x64xf32>
    %25 = math.exp %24 : vector<8x64xf32>
    %cst_20 = arith.constant 1.000000e+00 : f32
    %26 = vector.broadcast %cst_20 : f32 to vector<8x64xf32>
    %27 = arith.addf %26, %25 : vector<8x64xf32>
    %28 = arith.divf %26, %27 : vector<8x64xf32>
    %29 = vector.extract_strided_slice %28 {offsets = [0, 0], sizes = [8, 32], strides = [1, 1]} : vector<8x64xf32> to vector<8x32xf32>
    %30 = vector.extract_strided_slice %28 {offsets = [0, 32], sizes = [8, 32], strides = [1, 1]} : vector<8x64xf32> to vector<8x32xf32>
    %31 = vector.extract_strided_slice %20 {offsets = [0, 64], sizes = [8, 32], strides = [1, 1]} : vector<8x96xf32> to vector<8x32xf32>
    %32 = vector.extract_strided_slice %17 {offsets = [0, 64], sizes = [8, 32], strides = [1, 1]} : vector<8x96xf32> to vector<8x32xf32>
    %33 = arith.addf %32, %15 : vector<8x32xf32>
    %34 = arith.mulf %29, %33 : vector<8x32xf32>
    %35 = arith.addf %31, %34 : vector<8x32xf32>
    %36 = math.tanh %35 : vector<8x32xf32>
    %37 = arith.subf %16, %36 : vector<8x32xf32>
    %38 = arith.mulf %30, %37 : vector<8x32xf32>
    %39 = arith.addf %36, %38 : vector<8x32xf32>
    %40 = arith.index_cast %c0_i32 : i32 to index
    %c0_21 = arith.constant 0 : index
    %c0_22 = arith.constant 0 : index
    %41 = vector.load %arg11[%40, %c0_21, %c0_22] : memref<8x8x32xf32, #tpu.memory_space<vmem>>, vector<1x8x32xf32>
    %42 = vector.shape_cast %41 : vector<1x8x32xf32> to vector<8x32xf32>
    %43 = vector.shape_cast %39 : vector<8x32xf32> to vector<1x8x32xf32>
    tpu.vector_store %arg11[%40, %c0_21, %c0_22], %43 {strides = array<i32>} : memref<8x8x32xf32, #tpu.memory_space<vmem>>, vector<1x8x32xf32>,
    %c1_i32 = arith.constant 1 : i32
    %cst_23 = arith.constant dense<0.000000e+00> : vector<8x96xf32>
    %44 = tpu.matmul %39, %11, %cst_23 {dimension_numbers = #tpu.dot_dimension_numbers<[1], [0], [0], [1], [0, 0, 1, 1], [], []>} : vector<8x32xf32>, vector<32x96xf32>, vector<8x96xf32> -> vector<8x96xf32>
    %45 = arith.index_cast %c1_i32 : i32 to index
    %c0_24 = arith.constant 0 : index
    %c0_25 = arith.constant 0 : index
    %46 = vector.load %arg10[%45, %c0_24, %c0_25] : memref<8x8x96xf32, #tpu.memory_space<vmem>>, vector<1x8x96xf32>
    %47 = vector.shape_cast %46 : vector<1x8x96xf32> to vector<8x96xf32>
    %48 = vector.extract_strided_slice %47 {offsets = [0, 0], sizes = [8, 64], strides = [1, 1]} : vector<8x96xf32> to vector<8x64xf32>
    %49 = vector.extract_strided_slice %44 {offsets = [0, 0], sizes = [8, 64], strides = [1, 1]} : vector<8x96xf32> to vector<8x64xf32>
    %50 = arith.addf %48, %49 : vector<8x64xf32>
    %51 = arith.negf %50 : vector<8x64xf32>
    %52 = math.exp %51 : vector<8x64xf32>
    %cst_26 = arith.constant 1.000000e+00 : f32
    %53 = vector.broadcast %cst_26 : f32 to vector<8x64xf32>
    %54 = arith.addf %53, %52 : vector<8x64xf32>
    %55 = arith.divf %53, %54 : vector<8x64xf32>
    %56 = vector.extract_strided_slice %55 {offsets = [0, 0], sizes = [8, 32], strides = [1, 1]} : vector<8x64xf32> to vector<8x32xf32>
    %57 = vector.extract_strided_slice %55 {offsets = [0, 32], sizes = [8, 32], strides = [1, 1]} : vector<8x64xf32> to vector<8x32xf32>
    %58 = vector.extract_strided_slice %47 {offsets = [0, 64], sizes = [8, 32], strides = [1, 1]} : vector<8x96xf32> to vector<8x32xf32>
    %59 = vector.extract_strided_slice %44 {offsets = [0, 64], sizes = [8, 32], strides = [1, 1]} : vector<8x96xf32> to vector<8x32xf32>
    %60 = arith.addf %59, %15 : vector<8x32xf32>
    %61 = arith.mulf %56, %60 : vector<8x32xf32>
    %62 = arith.addf %58, %61 : vector<8x32xf32>
    %63 = math.tanh %62 : vector<8x32xf32>
    %64 = arith.subf %39, %63 : vector<8x32xf32>
    %65 = arith.mulf %57, %64 : vector<8x32xf32>
    %66 = arith.addf %63, %65 : vector<8x32xf32>
    %67 = arith.index_cast %c1_i32 : i32 to index
    %c0_27 = arith.constant 0 : index
    %c0_28 = arith.constant 0 : index
    %68 = vector.load %arg11[%67, %c0_27, %c0_28] : memref<8x8x32xf32, #tpu.memory_space<vmem>>, vector<1x8x32xf32>
    %69 = vector.shape_cast %68 : vector<1x8x32xf32> to vector<8x32xf32>
    %70 = vector.shape_cast %66 : vector<8x32xf32> to vector<1x8x32xf32>
    tpu.vector_store %arg11[%67, %c0_27, %c0_28], %70 {strides = array<i32>} : memref<8x8x32xf32, #tpu.memory_space<vmem>>, vector<1x8x32xf32>,
    %c2_i32 = arith.constant 2 : i32
    %cst_29 = arith.constant dense<0.000000e+00> : vector<8x96xf32>
    %71 = tpu.matmul %66, %11, %cst_29 {dimension_numbers = #tpu.dot_dimension_numbers<[1], [0], [0], [1], [0, 0, 1, 1], [], []>} : vector<8x32xf32>, vector<32x96xf32>, vector<8x96xf32> -> vector<8x96xf32>
    %72 = arith.index_cast %c2_i32 : i32 to index
    %c0_30 = arith.constant 0 : index
    %c0_31 = arith.constant 0 : index
    %73 = vector.load %arg10[%72, %c0_30, %c0_31] : memref<8x8x96xf32, #tpu.memory_space<vmem>>, vector<1x8x96xf32>
    %74 = vector.shape_cast %73 : vector<1x8x96xf32> to vector<8x96xf32>
    %75 = vector.extract_strided_slice %74 {offsets = [0, 0], sizes = [8, 64], strides = [1, 1]} : vector<8x96xf32> to vector<8x64xf32>
    %76 = vector.extract_strided_slice %71 {offsets = [0, 0], sizes = [8, 64], strides = [1, 1]} : vector<8x96xf32> to vector<8x64xf32>
    %77 = arith.addf %75, %76 : vector<8x64xf32>
    %78 = arith.negf %77 : vector<8x64xf32>
    %79 = math.exp %78 : vector<8x64xf32>
    %cst_32 = arith.constant 1.000000e+00 : f32
    %80 = vector.broadcast %cst_32 : f32 to vector<8x64xf32>
    %81 = arith.addf %80, %79 : vector<8x64xf32>
    %82 = arith.divf %80, %81 : vector<8x64xf32>
    %83 = vector.extract_strided_slice %82 {offsets = [0, 0], sizes = [8, 32], strides = [1, 1]} : vector<8x64xf32> to vector<8x32xf32>
    %84 = vector.extract_strided_slice %82 {offsets = [0, 32], sizes = [8, 32], strides = [1, 1]} : vector<8x64xf32> to vector<8x32xf32>
    %85 = vector.extract_strided_slice %74 {offsets = [0, 64], sizes = [8, 32], strides = [1, 1]} : vector<8x96xf32> to vector<8x32xf32>
    %86 = vector.extract_strided_slice %71 {offsets = [0, 64], sizes = [8, 32], strides = [1, 1]} : vector<8x96xf32> to vector<8x32xf32>
    %87 = arith.addf %86, %15 : vector<8x32xf32>
    %88 = arith.mulf %83, %87 : vector<8x32xf32>
    %89 = arith.addf %85, %88 : vector<8x32xf32>
    %90 = math.tanh %89 : vector<8x32xf32>
    %91 = arith.subf %66, %90 : vector<8x32xf32>
    %92 = arith.mulf %84, %91 : vector<8x32xf32>
    %93 = arith.addf %90, %92 : vector<8x32xf32>
    %94 = arith.index_cast %c2_i32 : i32 to index
    %c0_33 = arith.constant 0 : index
    %c0_34 = arith.constant 0 : index
    %95 = vector.load %arg11[%94, %c0_33, %c0_34] : memref<8x8x32xf32, #tpu.memory_space<vmem>>, vector<1x8x32xf32>
    %96 = vector.shape_cast %95 : vector<1x8x32xf32> to vector<8x32xf32>
    %97 = vector.shape_cast %93 : vector<8x32xf32> to vector<1x8x32xf32>
    tpu.vector_store %arg11[%94, %c0_33, %c0_34], %97 {strides = array<i32>} : memref<8x8x32xf32, #tpu.memory_space<vmem>>, vector<1x8x32xf32>,
    %c3_i32 = arith.constant 3 : i32
    %cst_35 = arith.constant dense<0.000000e+00> : vector<8x96xf32>
    %98 = tpu.matmul %93, %11, %cst_35 {dimension_numbers = #tpu.dot_dimension_numbers<[1], [0], [0], [1], [0, 0, 1, 1], [], []>} : vector<8x32xf32>, vector<32x96xf32>, vector<8x96xf32> -> vector<8x96xf32>
    %99 = arith.index_cast %c3_i32 : i32 to index
    %c0_36 = arith.constant 0 : index
    %c0_37 = arith.constant 0 : index
    %100 = vector.load %arg10[%99, %c0_36, %c0_37] : memref<8x8x96xf32, #tpu.memory_space<vmem>>, vector<1x8x96xf32>
    %101 = vector.shape_cast %100 : vector<1x8x96xf32> to vector<8x96xf32>
    %102 = vector.extract_strided_slice %101 {offsets = [0, 0], sizes = [8, 64], strides = [1, 1]} : vector<8x96xf32> to vector<8x64xf32>
    %103 = vector.extract_strided_slice %98 {offsets = [0, 0], sizes = [8, 64], strides = [1, 1]} : vector<8x96xf32> to vector<8x64xf32>
    %104 = arith.addf %102, %103 : vector<8x64xf32>
    %105 = arith.negf %104 : vector<8x64xf32>
    %106 = math.exp %105 : vector<8x64xf32>
    %cst_38 = arith.constant 1.000000e+00 : f32
    %107 = vector.broadcast %cst_38 : f32 to vector<8x64xf32>
    %108 = arith.addf %107, %106 : vector<8x64xf32>
    %109 = arith.divf %107, %108 : vector<8x64xf32>
    %110 = vector.extract_strided_slice %109 {offsets = [0, 0], sizes = [8, 32], strides = [1, 1]} : vector<8x64xf32> to vector<8x32xf32>
    %111 = vector.extract_strided_slice %109 {offsets = [0, 32], sizes = [8, 32], strides = [1, 1]} : vector<8x64xf32> to vector<8x32xf32>
    %112 = vector.extract_strided_slice %101 {offsets = [0, 64], sizes = [8, 32], strides = [1, 1]} : vector<8x96xf32> to vector<8x32xf32>
    %113 = vector.extract_strided_slice %98 {offsets = [0, 64], sizes = [8, 32], strides = [1, 1]} : vector<8x96xf32> to vector<8x32xf32>
    %114 = arith.addf %113, %15 : vector<8x32xf32>
    %115 = arith.mulf %110, %114 : vector<8x32xf32>
    %116 = arith.addf %112, %115 : vector<8x32xf32>
    %117 = math.tanh %116 : vector<8x32xf32>
    %118 = arith.subf %93, %117 : vector<8x32xf32>
    %119 = arith.mulf %111, %118 : vector<8x32xf32>
    %120 = arith.addf %117, %119 : vector<8x32xf32>
    %121 = arith.index_cast %c3_i32 : i32 to index
    %c0_39 = arith.constant 0 : index
    %c0_40 = arith.constant 0 : index
    %122 = vector.load %arg11[%121, %c0_39, %c0_40] : memref<8x8x32xf32, #tpu.memory_space<vmem>>, vector<1x8x32xf32>
    %123 = vector.shape_cast %122 : vector<1x8x32xf32> to vector<8x32xf32>
    %124 = vector.shape_cast %120 : vector<8x32xf32> to vector<1x8x32xf32>
    tpu.vector_store %arg11[%121, %c0_39, %c0_40], %124 {strides = array<i32>} : memref<8x8x32xf32, #tpu.memory_space<vmem>>, vector<1x8x32xf32>,
    %c4_i32 = arith.constant 4 : i32
    %cst_41 = arith.constant dense<0.000000e+00> : vector<8x96xf32>
    %125 = tpu.matmul %120, %11, %cst_41 {dimension_numbers = #tpu.dot_dimension_numbers<[1], [0], [0], [1], [0, 0, 1, 1], [], []>} : vector<8x32xf32>, vector<32x96xf32>, vector<8x96xf32> -> vector<8x96xf32>
    %126 = arith.index_cast %c4_i32 : i32 to index
    %c0_42 = arith.constant 0 : index
    %c0_43 = arith.constant 0 : index
    %127 = vector.load %arg10[%126, %c0_42, %c0_43] : memref<8x8x96xf32, #tpu.memory_space<vmem>>, vector<1x8x96xf32>
    %128 = vector.shape_cast %127 : vector<1x8x96xf32> to vector<8x96xf32>
    %129 = vector.extract_strided_slice %128 {offsets = [0, 0], sizes = [8, 64], strides = [1, 1]} : vector<8x96xf32> to vector<8x64xf32>
    %130 = vector.extract_strided_slice %125 {offsets = [0, 0], sizes = [8, 64], strides = [1, 1]} : vector<8x96xf32> to vector<8x64xf32>
    %131 = arith.addf %129, %130 : vector<8x64xf32>
    %132 = arith.negf %131 : vector<8x64xf32>
    %133 = math.exp %132 : vector<8x64xf32>
    %cst_44 = arith.constant 1.000000e+00 : f32
    %134 = vector.broadcast %cst_44 : f32 to vector<8x64xf32>
    %135 = arith.addf %134, %133 : vector<8x64xf32>
    %136 = arith.divf %134, %135 : vector<8x64xf32>
    %137 = vector.extract_strided_slice %136 {offsets = [0, 0], sizes = [8, 32], strides = [1, 1]} : vector<8x64xf32> to vector<8x32xf32>
    %138 = vector.extract_strided_slice %136 {offsets = [0, 32], sizes = [8, 32], strides = [1, 1]} : vector<8x64xf32> to vector<8x32xf32>
    %139 = vector.extract_strided_slice %128 {offsets = [0, 64], sizes = [8, 32], strides = [1, 1]} : vector<8x96xf32> to vector<8x32xf32>
    %140 = vector.extract_strided_slice %125 {offsets = [0, 64], sizes = [8, 32], strides = [1, 1]} : vector<8x96xf32> to vector<8x32xf32>
    %141 = arith.addf %140, %15 : vector<8x32xf32>
    %142 = arith.mulf %137, %141 : vector<8x32xf32>
    %143 = arith.addf %139, %142 : vector<8x32xf32>
    %144 = math.tanh %143 : vector<8x32xf32>
    %145 = arith.subf %120, %144 : vector<8x32xf32>
    %146 = arith.mulf %138, %145 : vector<8x32xf32>
    %147 = arith.addf %144, %146 : vector<8x32xf32>
    %148 = arith.index_cast %c4_i32 : i32 to index
    %c0_45 = arith.constant 0 : index
    %c0_46 = arith.constant 0 : index
    %149 = vector.load %arg11[%148, %c0_45, %c0_46] : memref<8x8x32xf32, #tpu.memory_space<vmem>>, vector<1x8x32xf32>
    %150 = vector.shape_cast %149 : vector<1x8x32xf32> to vector<8x32xf32>
    %151 = vector.shape_cast %147 : vector<8x32xf32> to vector<1x8x32xf32>
    tpu.vector_store %arg11[%148, %c0_45, %c0_46], %151 {strides = array<i32>} : memref<8x8x32xf32, #tpu.memory_space<vmem>>, vector<1x8x32xf32>,
    %c5_i32 = arith.constant 5 : i32
    %cst_47 = arith.constant dense<0.000000e+00> : vector<8x96xf32>
    %152 = tpu.matmul %147, %11, %cst_47 {dimension_numbers = #tpu.dot_dimension_numbers<[1], [0], [0], [1], [0, 0, 1, 1], [], []>} : vector<8x32xf32>, vector<32x96xf32>, vector<8x96xf32> -> vector<8x96xf32>
    %153 = arith.index_cast %c5_i32 : i32 to index
    %c0_48 = arith.constant 0 : index
    %c0_49 = arith.constant 0 : index
    %154 = vector.load %arg10[%153, %c0_48, %c0_49] : memref<8x8x96xf32, #tpu.memory_space<vmem>>, vector<1x8x96xf32>
    %155 = vector.shape_cast %154 : vector<1x8x96xf32> to vector<8x96xf32>
    %156 = vector.extract_strided_slice %155 {offsets = [0, 0], sizes = [8, 64], strides = [1, 1]} : vector<8x96xf32> to vector<8x64xf32>
    %157 = vector.extract_strided_slice %152 {offsets = [0, 0], sizes = [8, 64], strides = [1, 1]} : vector<8x96xf32> to vector<8x64xf32>
    %158 = arith.addf %156, %157 : vector<8x64xf32>
    %159 = arith.negf %158 : vector<8x64xf32>
    %160 = math.exp %159 : vector<8x64xf32>
    %cst_50 = arith.constant 1.000000e+00 : f32
    %161 = vector.broadcast %cst_50 : f32 to vector<8x64xf32>
    %162 = arith.addf %161, %160 : vector<8x64xf32>
    %163 = arith.divf %161, %162 : vector<8x64xf32>
    %164 = vector.extract_strided_slice %163 {offsets = [0, 0], sizes = [8, 32], strides = [1, 1]} : vector<8x64xf32> to vector<8x32xf32>
    %165 = vector.extract_strided_slice %163 {offsets = [0, 32], sizes = [8, 32], strides = [1, 1]} : vector<8x64xf32> to vector<8x32xf32>
    %166 = vector.extract_strided_slice %155 {offsets = [0, 64], sizes = [8, 32], strides = [1, 1]} : vector<8x96xf32> to vector<8x32xf32>
    %167 = vector.extract_strided_slice %152 {offsets = [0, 64], sizes = [8, 32], strides = [1, 1]} : vector<8x96xf32> to vector<8x32xf32>
    %168 = arith.addf %167, %15 : vector<8x32xf32>
    %169 = arith.mulf %164, %168 : vector<8x32xf32>
    %170 = arith.addf %166, %169 : vector<8x32xf32>
    %171 = math.tanh %170 : vector<8x32xf32>
    %172 = arith.subf %147, %171 : vector<8x32xf32>
    %173 = arith.mulf %165, %172 : vector<8x32xf32>
    %174 = arith.addf %171, %173 : vector<8x32xf32>
    %175 = arith.index_cast %c5_i32 : i32 to index
    %c0_51 = arith.constant 0 : index
    %c0_52 = arith.constant 0 : index
    %176 = vector.load %arg11[%175, %c0_51, %c0_52] : memref<8x8x32xf32, #tpu.memory_space<vmem>>, vector<1x8x32xf32>
    %177 = vector.shape_cast %176 : vector<1x8x32xf32> to vector<8x32xf32>
    %178 = vector.shape_cast %174 : vector<8x32xf32> to vector<1x8x32xf32>
    tpu.vector_store %arg11[%175, %c0_51, %c0_52], %178 {strides = array<i32>} : memref<8x8x32xf32, #tpu.memory_space<vmem>>, vector<1x8x32xf32>,
    %c6_i32 = arith.constant 6 : i32
    %cst_53 = arith.constant dense<0.000000e+00> : vector<8x96xf32>
    %179 = tpu.matmul %174, %11, %cst_53 {dimension_numbers = #tpu.dot_dimension_numbers<[1], [0], [0], [1], [0, 0, 1, 1], [], []>} : vector<8x32xf32>, vector<32x96xf32>, vector<8x96xf32> -> vector<8x96xf32>
    %180 = arith.index_cast %c6_i32 : i32 to index
    %c0_54 = arith.constant 0 : index
    %c0_55 = arith.constant 0 : index
    %181 = vector.load %arg10[%180, %c0_54, %c0_55] : memref<8x8x96xf32, #tpu.memory_space<vmem>>, vector<1x8x96xf32>
    %182 = vector.shape_cast %181 : vector<1x8x96xf32> to vector<8x96xf32>
    %183 = vector.extract_strided_slice %182 {offsets = [0, 0], sizes = [8, 64], strides = [1, 1]} : vector<8x96xf32> to vector<8x64xf32>
    %184 = vector.extract_strided_slice %179 {offsets = [0, 0], sizes = [8, 64], strides = [1, 1]} : vector<8x96xf32> to vector<8x64xf32>
    %185 = arith.addf %183, %184 : vector<8x64xf32>
    %186 = arith.negf %185 : vector<8x64xf32>
    %187 = math.exp %186 : vector<8x64xf32>
    %cst_56 = arith.constant 1.000000e+00 : f32
    %188 = vector.broadcast %cst_56 : f32 to vector<8x64xf32>
    %189 = arith.addf %188, %187 : vector<8x64xf32>
    %190 = arith.divf %188, %189 : vector<8x64xf32>
    %191 = vector.extract_strided_slice %190 {offsets = [0, 0], sizes = [8, 32], strides = [1, 1]} : vector<8x64xf32> to vector<8x32xf32>
    %192 = vector.extract_strided_slice %190 {offsets = [0, 32], sizes = [8, 32], strides = [1, 1]} : vector<8x64xf32> to vector<8x32xf32>
    %193 = vector.extract_strided_slice %182 {offsets = [0, 64], sizes = [8, 32], strides = [1, 1]} : vector<8x96xf32> to vector<8x32xf32>
    %194 = vector.extract_strided_slice %179 {offsets = [0, 64], sizes = [8, 32], strides = [1, 1]} : vector<8x96xf32> to vector<8x32xf32>
    %195 = arith.addf %194, %15 : vector<8x32xf32>
    %196 = arith.mulf %191, %195 : vector<8x32xf32>
    %197 = arith.addf %193, %196 : vector<8x32xf32>
    %198 = math.tanh %197 : vector<8x32xf32>
    %199 = arith.subf %174, %198 : vector<8x32xf32>
    %200 = arith.mulf %192, %199 : vector<8x32xf32>
    %201 = arith.addf %198, %200 : vector<8x32xf32>
    %202 = arith.index_cast %c6_i32 : i32 to index
    %c0_57 = arith.constant 0 : index
    %c0_58 = arith.constant 0 : index
    %203 = vector.load %arg11[%202, %c0_57, %c0_58] : memref<8x8x32xf32, #tpu.memory_space<vmem>>, vector<1x8x32xf32>
    %204 = vector.shape_cast %203 : vector<1x8x32xf32> to vector<8x32xf32>
    %205 = vector.shape_cast %201 : vector<8x32xf32> to vector<1x8x32xf32>
    tpu.vector_store %arg11[%202, %c0_57, %c0_58], %205 {strides = array<i32>} : memref<8x8x32xf32, #tpu.memory_space<vmem>>, vector<1x8x32xf32>,
    %c7_i32 = arith.constant 7 : i32
    %cst_59 = arith.constant dense<0.000000e+00> : vector<8x96xf32>
    %206 = tpu.matmul %201, %11, %cst_59 {dimension_numbers = #tpu.dot_dimension_numbers<[1], [0], [0], [1], [0, 0, 1, 1], [], []>} : vector<8x32xf32>, vector<32x96xf32>, vector<8x96xf32> -> vector<8x96xf32>
    %207 = arith.index_cast %c7_i32 : i32 to index
    %c0_60 = arith.constant 0 : index
    %c0_61 = arith.constant 0 : index
    %208 = vector.load %arg10[%207, %c0_60, %c0_61] : memref<8x8x96xf32, #tpu.memory_space<vmem>>, vector<1x8x96xf32>
    %209 = vector.shape_cast %208 : vector<1x8x96xf32> to vector<8x96xf32>
    %210 = vector.extract_strided_slice %209 {offsets = [0, 0], sizes = [8, 64], strides = [1, 1]} : vector<8x96xf32> to vector<8x64xf32>
    %211 = vector.extract_strided_slice %206 {offsets = [0, 0], sizes = [8, 64], strides = [1, 1]} : vector<8x96xf32> to vector<8x64xf32>
    %212 = arith.addf %210, %211 : vector<8x64xf32>
    %213 = arith.negf %212 : vector<8x64xf32>
    %214 = math.exp %213 : vector<8x64xf32>
    %cst_62 = arith.constant 1.000000e+00 : f32
    %215 = vector.broadcast %cst_62 : f32 to vector<8x64xf32>
    %216 = arith.addf %215, %214 : vector<8x64xf32>
    %217 = arith.divf %215, %216 : vector<8x64xf32>
    %218 = vector.extract_strided_slice %217 {offsets = [0, 0], sizes = [8, 32], strides = [1, 1]} : vector<8x64xf32> to vector<8x32xf32>
    %219 = vector.extract_strided_slice %217 {offsets = [0, 32], sizes = [8, 32], strides = [1, 1]} : vector<8x64xf32> to vector<8x32xf32>
    %220 = vector.extract_strided_slice %209 {offsets = [0, 64], sizes = [8, 32], strides = [1, 1]} : vector<8x96xf32> to vector<8x32xf32>
    %221 = vector.extract_strided_slice %206 {offsets = [0, 64], sizes = [8, 32], strides = [1, 1]} : vector<8x96xf32> to vector<8x32xf32>
    %222 = arith.addf %221, %15 : vector<8x32xf32>
    %223 = arith.mulf %218, %222 : vector<8x32xf32>
    %224 = arith.addf %220, %223 : vector<8x32xf32>
    %225 = math.tanh %224 : vector<8x32xf32>
    %226 = arith.subf %201, %225 : vector<8x32xf32>
    %227 = arith.mulf %219, %226 : vector<8x32xf32>
    %228 = arith.addf %225, %227 : vector<8x32xf32>
    %229 = arith.index_cast %c7_i32 : i32 to index
    %c0_63 = arith.constant 0 : index
    %c0_64 = arith.constant 0 : index
    %230 = vector.load %arg11[%229, %c0_63, %c0_64] : memref<8x8x32xf32, #tpu.memory_space<vmem>>, vector<1x8x32xf32>
    %231 = vector.shape_cast %230 : vector<1x8x32xf32> to vector<8x32xf32>
    %232 = vector.shape_cast %228 : vector<8x32xf32> to vector<1x8x32xf32>
    tpu.vector_store %arg11[%229, %c0_63, %c0_64], %232 {strides = array<i32>} : memref<8x8x32xf32, #tpu.memory_space<vmem>>, vector<1x8x32xf32>,
    %c8_i32 = arith.constant 8 : i32
    %c0_65 = arith.constant 0 : index
    %c0_66 = arith.constant 0 : index
    %c0_67 = arith.constant 0 : index
    %233 = vector.load %arg11[%c0_65, %c0_66, %c0_67] : memref<8x8x32xf32, #tpu.memory_space<vmem>>, vector<8x8x32xf32>
    %234 = vector.shape_cast %233 : vector<8x8x32xf32> to vector<64x32xf32>
    %c0_68 = arith.constant 0 : index
    %c0_69 = arith.constant 0 : index
    %c0_70 = arith.constant 0 : index
    %235 = vector.load %arg3[%c0_68, %c0_69, %c0_70] : memref<2x32x96xf32, #tpu.memory_space<vmem>>, vector<1x32x96xf32>
    %236 = vector.shape_cast %235 : vector<1x32x96xf32> to vector<32x96xf32>
    %c1 = arith.constant 1 : index
    %c0_71 = arith.constant 0 : index
    %c0_72 = arith.constant 0 : index
    %237 = vector.load %arg5[%c1, %c0_71, %c0_72] : memref<3x1x96xf32, #tpu.memory_space<vmem>>, vector<1x1x96xf32>
    %238 = vector.shape_cast %237 : vector<1x1x96xf32> to vector<1x96xf32>
    %cst_73 = arith.constant dense<0.000000e+00> : vector<64x96xf32>
    %239 = tpu.matmul %234, %236, %cst_73 {dimension_numbers = #tpu.dot_dimension_numbers<[1], [0], [0], [1], [0, 0, 1, 1], [], []>} : vector<64x32xf32>, vector<32x96xf32>, vector<64x96xf32> -> vector<64x96xf32>
    %240 = vector.broadcast %238 : vector<1x96xf32> to vector<64x96xf32>
    %241 = arith.addf %239, %240 : vector<64x96xf32>
    %242 = vector.shape_cast %241 : vector<64x96xf32> to vector<8x8x96xf32>
    %c0_74 = arith.constant 0 : index
    %c0_75 = arith.constant 0 : index
    %c0_76 = arith.constant 0 : index
    %243 = vector.load %arg10[%c0_74, %c0_75, %c0_76] : memref<8x8x96xf32, #tpu.memory_space<vmem>>, vector<8x8x96xf32>
    tpu.vector_store %arg10[%c0_74, %c0_75, %c0_76], %242 {strides = array<i32>} : memref<8x8x96xf32, #tpu.memory_space<vmem>>, vector<8x8x96xf32>,
    %c1_77 = arith.constant 1 : index
    %c0_78 = arith.constant 0 : index
    %c0_79 = arith.constant 0 : index
    %244 = vector.load %arg4[%c1_77, %c0_78, %c0_79] : memref<3x32x96xf32, #tpu.memory_space<vmem>>, vector<1x32x96xf32>
    %245 = vector.shape_cast %244 : vector<1x32x96xf32> to vector<32x96xf32>
    %c1_80 = arith.constant 1 : index
    %c0_81 = arith.constant 0 : index
    %c0_82 = arith.constant 0 : index
    %246 = vector.load %arg6[%c1_80, %c0_81, %c0_82] : memref<3x1x32xf32, #tpu.memory_space<vmem>>, vector<1x1x32xf32>
    %247 = vector.shape_cast %246 : vector<1x1x32xf32> to vector<1x32xf32>
    %248 = vector.shape_cast %247 : vector<1x32xf32> to vector<1x32xf32>
    %249 = vector.broadcast %248 : vector<1x32xf32> to vector<8x32xf32>
    %cst_83 = arith.constant 0.000000e+00 : f32
    %250 = vector.broadcast %cst_83 : f32 to vector<8x32xf32>
    %c0_i32_84 = arith.constant 0 : i32
    %cst_85 = arith.constant dense<0.000000e+00> : vector<8x96xf32>
    %251 = tpu.matmul %250, %245, %cst_85 {dimension_numbers = #tpu.dot_dimension_numbers<[1], [0], [0], [1], [0, 0, 1, 1], [], []>} : vector<8x32xf32>, vector<32x96xf32>, vector<8x96xf32> -> vector<8x96xf32>
    %252 = arith.index_cast %c0_i32_84 : i32 to index
    %c0_86 = arith.constant 0 : index
    %c0_87 = arith.constant 0 : index
    %253 = vector.load %arg10[%252, %c0_86, %c0_87] : memref<8x8x96xf32, #tpu.memory_space<vmem>>, vector<1x8x96xf32>
    %254 = vector.shape_cast %253 : vector<1x8x96xf32> to vector<8x96xf32>
    %255 = vector.extract_strided_slice %254 {offsets = [0, 0], sizes = [8, 64], strides = [1, 1]} : vector<8x96xf32> to vector<8x64xf32>
    %256 = vector.extract_strided_slice %251 {offsets = [0, 0], sizes = [8, 64], strides = [1, 1]} : vector<8x96xf32> to vector<8x64xf32>
    %257 = arith.addf %255, %256 : vector<8x64xf32>
    %258 = arith.negf %257 : vector<8x64xf32>
    %259 = math.exp %258 : vector<8x64xf32>
    %cst_88 = arith.constant 1.000000e+00 : f32
    %260 = vector.broadcast %cst_88 : f32 to vector<8x64xf32>
    %261 = arith.addf %260, %259 : vector<8x64xf32>
    %262 = arith.divf %260, %261 : vector<8x64xf32>
    %263 = vector.extract_strided_slice %262 {offsets = [0, 0], sizes = [8, 32], strides = [1, 1]} : vector<8x64xf32> to vector<8x32xf32>
    %264 = vector.extract_strided_slice %262 {offsets = [0, 32], sizes = [8, 32], strides = [1, 1]} : vector<8x64xf32> to vector<8x32xf32>
    %265 = vector.extract_strided_slice %254 {offsets = [0, 64], sizes = [8, 32], strides = [1, 1]} : vector<8x96xf32> to vector<8x32xf32>
    %266 = vector.extract_strided_slice %251 {offsets = [0, 64], sizes = [8, 32], strides = [1, 1]} : vector<8x96xf32> to vector<8x32xf32>
    %267 = arith.addf %266, %249 : vector<8x32xf32>
    %268 = arith.mulf %263, %267 : vector<8x32xf32>
    %269 = arith.addf %265, %268 : vector<8x32xf32>
    %270 = math.tanh %269 : vector<8x32xf32>
    %271 = arith.subf %250, %270 : vector<8x32xf32>
    %272 = arith.mulf %264, %271 : vector<8x32xf32>
    %273 = arith.addf %270, %272 : vector<8x32xf32>
    %274 = arith.index_cast %c0_i32_84 : i32 to index
    %c0_89 = arith.constant 0 : index
    %c0_90 = arith.constant 0 : index
    %275 = vector.load %arg11[%274, %c0_89, %c0_90] : memref<8x8x32xf32, #tpu.memory_space<vmem>>, vector<1x8x32xf32>
    %276 = vector.shape_cast %275 : vector<1x8x32xf32> to vector<8x32xf32>
    %277 = vector.shape_cast %273 : vector<8x32xf32> to vector<1x8x32xf32>
    tpu.vector_store %arg11[%274, %c0_89, %c0_90], %277 {strides = array<i32>} : memref<8x8x32xf32, #tpu.memory_space<vmem>>, vector<1x8x32xf32>,
    %c1_i32_91 = arith.constant 1 : i32
    %cst_92 = arith.constant dense<0.000000e+00> : vector<8x96xf32>
    %278 = tpu.matmul %273, %245, %cst_92 {dimension_numbers = #tpu.dot_dimension_numbers<[1], [0], [0], [1], [0, 0, 1, 1], [], []>} : vector<8x32xf32>, vector<32x96xf32>, vector<8x96xf32> -> vector<8x96xf32>
    %279 = arith.index_cast %c1_i32_91 : i32 to index
    %c0_93 = arith.constant 0 : index
    %c0_94 = arith.constant 0 : index
    %280 = vector.load %arg10[%279, %c0_93, %c0_94] : memref<8x8x96xf32, #tpu.memory_space<vmem>>, vector<1x8x96xf32>
    %281 = vector.shape_cast %280 : vector<1x8x96xf32> to vector<8x96xf32>
    %282 = vector.extract_strided_slice %281 {offsets = [0, 0], sizes = [8, 64], strides = [1, 1]} : vector<8x96xf32> to vector<8x64xf32>
    %283 = vector.extract_strided_slice %278 {offsets = [0, 0], sizes = [8, 64], strides = [1, 1]} : vector<8x96xf32> to vector<8x64xf32>
    %284 = arith.addf %282, %283 : vector<8x64xf32>
    %285 = arith.negf %284 : vector<8x64xf32>
    %286 = math.exp %285 : vector<8x64xf32>
    %cst_95 = arith.constant 1.000000e+00 : f32
    %287 = vector.broadcast %cst_95 : f32 to vector<8x64xf32>
    %288 = arith.addf %287, %286 : vector<8x64xf32>
    %289 = arith.divf %287, %288 : vector<8x64xf32>
    %290 = vector.extract_strided_slice %289 {offsets = [0, 0], sizes = [8, 32], strides = [1, 1]} : vector<8x64xf32> to vector<8x32xf32>
    %291 = vector.extract_strided_slice %289 {offsets = [0, 32], sizes = [8, 32], strides = [1, 1]} : vector<8x64xf32> to vector<8x32xf32>
    %292 = vector.extract_strided_slice %281 {offsets = [0, 64], sizes = [8, 32], strides = [1, 1]} : vector<8x96xf32> to vector<8x32xf32>
    %293 = vector.extract_strided_slice %278 {offsets = [0, 64], sizes = [8, 32], strides = [1, 1]} : vector<8x96xf32> to vector<8x32xf32>
    %294 = arith.addf %293, %249 : vector<8x32xf32>
    %295 = arith.mulf %290, %294 : vector<8x32xf32>
    %296 = arith.addf %292, %295 : vector<8x32xf32>
    %297 = math.tanh %296 : vector<8x32xf32>
    %298 = arith.subf %273, %297 : vector<8x32xf32>
    %299 = arith.mulf %291, %298 : vector<8x32xf32>
    %300 = arith.addf %297, %299 : vector<8x32xf32>
    %301 = arith.index_cast %c1_i32_91 : i32 to index
    %c0_96 = arith.constant 0 : index
    %c0_97 = arith.constant 0 : index
    %302 = vector.load %arg11[%301, %c0_96, %c0_97] : memref<8x8x32xf32, #tpu.memory_space<vmem>>, vector<1x8x32xf32>
    %303 = vector.shape_cast %302 : vector<1x8x32xf32> to vector<8x32xf32>
    %304 = vector.shape_cast %300 : vector<8x32xf32> to vector<1x8x32xf32>
    tpu.vector_store %arg11[%301, %c0_96, %c0_97], %304 {strides = array<i32>} : memref<8x8x32xf32, #tpu.memory_space<vmem>>, vector<1x8x32xf32>,
    %c2_i32_98 = arith.constant 2 : i32
    %cst_99 = arith.constant dense<0.000000e+00> : vector<8x96xf32>
    %305 = tpu.matmul %300, %245, %cst_99 {dimension_numbers = #tpu.dot_dimension_numbers<[1], [0], [0], [1], [0, 0, 1, 1], [], []>} : vector<8x32xf32>, vector<32x96xf32>, vector<8x96xf32> -> vector<8x96xf32>
    %306 = arith.index_cast %c2_i32_98 : i32 to index
    %c0_100 = arith.constant 0 : index
    %c0_101 = arith.constant 0 : index
    %307 = vector.load %arg10[%306, %c0_100, %c0_101] : memref<8x8x96xf32, #tpu.memory_space<vmem>>, vector<1x8x96xf32>
    %308 = vector.shape_cast %307 : vector<1x8x96xf32> to vector<8x96xf32>
    %309 = vector.extract_strided_slice %308 {offsets = [0, 0], sizes = [8, 64], strides = [1, 1]} : vector<8x96xf32> to vector<8x64xf32>
    %310 = vector.extract_strided_slice %305 {offsets = [0, 0], sizes = [8, 64], strides = [1, 1]} : vector<8x96xf32> to vector<8x64xf32>
    %311 = arith.addf %309, %310 : vector<8x64xf32>
    %312 = arith.negf %311 : vector<8x64xf32>
    %313 = math.exp %312 : vector<8x64xf32>
    %cst_102 = arith.constant 1.000000e+00 : f32
    %314 = vector.broadcast %cst_102 : f32 to vector<8x64xf32>
    %315 = arith.addf %314, %313 : vector<8x64xf32>
    %316 = arith.divf %314, %315 : vector<8x64xf32>
    %317 = vector.extract_strided_slice %316 {offsets = [0, 0], sizes = [8, 32], strides = [1, 1]} : vector<8x64xf32> to vector<8x32xf32>
    %318 = vector.extract_strided_slice %316 {offsets = [0, 32], sizes = [8, 32], strides = [1, 1]} : vector<8x64xf32> to vector<8x32xf32>
    %319 = vector.extract_strided_slice %308 {offsets = [0, 64], sizes = [8, 32], strides = [1, 1]} : vector<8x96xf32> to vector<8x32xf32>
    %320 = vector.extract_strided_slice %305 {offsets = [0, 64], sizes = [8, 32], strides = [1, 1]} : vector<8x96xf32> to vector<8x32xf32>
    %321 = arith.addf %320, %249 : vector<8x32xf32>
    %322 = arith.mulf %317, %321 : vector<8x32xf32>
    %323 = arith.addf %319, %322 : vector<8x32xf32>
    %324 = math.tanh %323 : vector<8x32xf32>
    %325 = arith.subf %300, %324 : vector<8x32xf32>
    %326 = arith.mulf %318, %325 : vector<8x32xf32>
    %327 = arith.addf %324, %326 : vector<8x32xf32>
    %328 = arith.index_cast %c2_i32_98 : i32 to index
    %c0_103 = arith.constant 0 : index
    %c0_104 = arith.constant 0 : index
    %329 = vector.load %arg11[%328, %c0_103, %c0_104] : memref<8x8x32xf32, #tpu.memory_space<vmem>>, vector<1x8x32xf32>
    %330 = vector.shape_cast %329 : vector<1x8x32xf32> to vector<8x32xf32>
    %331 = vector.shape_cast %327 : vector<8x32xf32> to vector<1x8x32xf32>
    tpu.vector_store %arg11[%328, %c0_103, %c0_104], %331 {strides = array<i32>} : memref<8x8x32xf32, #tpu.memory_space<vmem>>, vector<1x8x32xf32>,
    %c3_i32_105 = arith.constant 3 : i32
    %cst_106 = arith.constant dense<0.000000e+00> : vector<8x96xf32>
    %332 = tpu.matmul %327, %245, %cst_106 {dimension_numbers = #tpu.dot_dimension_numbers<[1], [0], [0], [1], [0, 0, 1, 1], [], []>} : vector<8x32xf32>, vector<32x96xf32>, vector<8x96xf32> -> vector<8x96xf32>
    %333 = arith.index_cast %c3_i32_105 : i32 to index
    %c0_107 = arith.constant 0 : index
    %c0_108 = arith.constant 0 : index
    %334 = vector.load %arg10[%333, %c0_107, %c0_108] : memref<8x8x96xf32, #tpu.memory_space<vmem>>, vector<1x8x96xf32>
    %335 = vector.shape_cast %334 : vector<1x8x96xf32> to vector<8x96xf32>
    %336 = vector.extract_strided_slice %335 {offsets = [0, 0], sizes = [8, 64], strides = [1, 1]} : vector<8x96xf32> to vector<8x64xf32>
    %337 = vector.extract_strided_slice %332 {offsets = [0, 0], sizes = [8, 64], strides = [1, 1]} : vector<8x96xf32> to vector<8x64xf32>
    %338 = arith.addf %336, %337 : vector<8x64xf32>
    %339 = arith.negf %338 : vector<8x64xf32>
    %340 = math.exp %339 : vector<8x64xf32>
    %cst_109 = arith.constant 1.000000e+00 : f32
    %341 = vector.broadcast %cst_109 : f32 to vector<8x64xf32>
    %342 = arith.addf %341, %340 : vector<8x64xf32>
    %343 = arith.divf %341, %342 : vector<8x64xf32>
    %344 = vector.extract_strided_slice %343 {offsets = [0, 0], sizes = [8, 32], strides = [1, 1]} : vector<8x64xf32> to vector<8x32xf32>
    %345 = vector.extract_strided_slice %343 {offsets = [0, 32], sizes = [8, 32], strides = [1, 1]} : vector<8x64xf32> to vector<8x32xf32>
    %346 = vector.extract_strided_slice %335 {offsets = [0, 64], sizes = [8, 32], strides = [1, 1]} : vector<8x96xf32> to vector<8x32xf32>
    %347 = vector.extract_strided_slice %332 {offsets = [0, 64], sizes = [8, 32], strides = [1, 1]} : vector<8x96xf32> to vector<8x32xf32>
    %348 = arith.addf %347, %249 : vector<8x32xf32>
    %349 = arith.mulf %344, %348 : vector<8x32xf32>
    %350 = arith.addf %346, %349 : vector<8x32xf32>
    %351 = math.tanh %350 : vector<8x32xf32>
    %352 = arith.subf %327, %351 : vector<8x32xf32>
    %353 = arith.mulf %345, %352 : vector<8x32xf32>
    %354 = arith.addf %351, %353 : vector<8x32xf32>
    %355 = arith.index_cast %c3_i32_105 : i32 to index
    %c0_110 = arith.constant 0 : index
    %c0_111 = arith.constant 0 : index
    %356 = vector.load %arg11[%355, %c0_110, %c0_111] : memref<8x8x32xf32, #tpu.memory_space<vmem>>, vector<1x8x32xf32>
    %357 = vector.shape_cast %356 : vector<1x8x32xf32> to vector<8x32xf32>
    %358 = vector.shape_cast %354 : vector<8x32xf32> to vector<1x8x32xf32>
    tpu.vector_store %arg11[%355, %c0_110, %c0_111], %358 {strides = array<i32>} : memref<8x8x32xf32, #tpu.memory_space<vmem>>, vector<1x8x32xf32>,
    %c4_i32_112 = arith.constant 4 : i32
    %cst_113 = arith.constant dense<0.000000e+00> : vector<8x96xf32>
    %359 = tpu.matmul %354, %245, %cst_113 {dimension_numbers = #tpu.dot_dimension_numbers<[1], [0], [0], [1], [0, 0, 1, 1], [], []>} : vector<8x32xf32>, vector<32x96xf32>, vector<8x96xf32> -> vector<8x96xf32>
    %360 = arith.index_cast %c4_i32_112 : i32 to index
    %c0_114 = arith.constant 0 : index
    %c0_115 = arith.constant 0 : index
    %361 = vector.load %arg10[%360, %c0_114, %c0_115] : memref<8x8x96xf32, #tpu.memory_space<vmem>>, vector<1x8x96xf32>
    %362 = vector.shape_cast %361 : vector<1x8x96xf32> to vector<8x96xf32>
    %363 = vector.extract_strided_slice %362 {offsets = [0, 0], sizes = [8, 64], strides = [1, 1]} : vector<8x96xf32> to vector<8x64xf32>
    %364 = vector.extract_strided_slice %359 {offsets = [0, 0], sizes = [8, 64], strides = [1, 1]} : vector<8x96xf32> to vector<8x64xf32>
    %365 = arith.addf %363, %364 : vector<8x64xf32>
    %366 = arith.negf %365 : vector<8x64xf32>
    %367 = math.exp %366 : vector<8x64xf32>
    %cst_116 = arith.constant 1.000000e+00 : f32
    %368 = vector.broadcast %cst_116 : f32 to vector<8x64xf32>
    %369 = arith.addf %368, %367 : vector<8x64xf32>
    %370 = arith.divf %368, %369 : vector<8x64xf32>
    %371 = vector.extract_strided_slice %370 {offsets = [0, 0], sizes = [8, 32], strides = [1, 1]} : vector<8x64xf32> to vector<8x32xf32>
    %372 = vector.extract_strided_slice %370 {offsets = [0, 32], sizes = [8, 32], strides = [1, 1]} : vector<8x64xf32> to vector<8x32xf32>
    %373 = vector.extract_strided_slice %362 {offsets = [0, 64], sizes = [8, 32], strides = [1, 1]} : vector<8x96xf32> to vector<8x32xf32>
    %374 = vector.extract_strided_slice %359 {offsets = [0, 64], sizes = [8, 32], strides = [1, 1]} : vector<8x96xf32> to vector<8x32xf32>
    %375 = arith.addf %374, %249 : vector<8x32xf32>
    %376 = arith.mulf %371, %375 : vector<8x32xf32>
    %377 = arith.addf %373, %376 : vector<8x32xf32>
    %378 = math.tanh %377 : vector<8x32xf32>
    %379 = arith.subf %354, %378 : vector<8x32xf32>
    %380 = arith.mulf %372, %379 : vector<8x32xf32>
    %381 = arith.addf %378, %380 : vector<8x32xf32>
    %382 = arith.index_cast %c4_i32_112 : i32 to index
    %c0_117 = arith.constant 0 : index
    %c0_118 = arith.constant 0 : index
    %383 = vector.load %arg11[%382, %c0_117, %c0_118] : memref<8x8x32xf32, #tpu.memory_space<vmem>>, vector<1x8x32xf32>
    %384 = vector.shape_cast %383 : vector<1x8x32xf32> to vector<8x32xf32>
    %385 = vector.shape_cast %381 : vector<8x32xf32> to vector<1x8x32xf32>
    tpu.vector_store %arg11[%382, %c0_117, %c0_118], %385 {strides = array<i32>} : memref<8x8x32xf32, #tpu.memory_space<vmem>>, vector<1x8x32xf32>,
    %c5_i32_119 = arith.constant 5 : i32
    %cst_120 = arith.constant dense<0.000000e+00> : vector<8x96xf32>
    %386 = tpu.matmul %381, %245, %cst_120 {dimension_numbers = #tpu.dot_dimension_numbers<[1], [0], [0], [1], [0, 0, 1, 1], [], []>} : vector<8x32xf32>, vector<32x96xf32>, vector<8x96xf32> -> vector<8x96xf32>
    %387 = arith.index_cast %c5_i32_119 : i32 to index
    %c0_121 = arith.constant 0 : index
    %c0_122 = arith.constant 0 : index
    %388 = vector.load %arg10[%387, %c0_121, %c0_122] : memref<8x8x96xf32, #tpu.memory_space<vmem>>, vector<1x8x96xf32>
    %389 = vector.shape_cast %388 : vector<1x8x96xf32> to vector<8x96xf32>
    %390 = vector.extract_strided_slice %389 {offsets = [0, 0], sizes = [8, 64], strides = [1, 1]} : vector<8x96xf32> to vector<8x64xf32>
    %391 = vector.extract_strided_slice %386 {offsets = [0, 0], sizes = [8, 64], strides = [1, 1]} : vector<8x96xf32> to vector<8x64xf32>
    %392 = arith.addf %390, %391 : vector<8x64xf32>
    %393 = arith.negf %392 : vector<8x64xf32>
    %394 = math.exp %393 : vector<8x64xf32>
    %cst_123 = arith.constant 1.000000e+00 : f32
    %395 = vector.broadcast %cst_123 : f32 to vector<8x64xf32>
    %396 = arith.addf %395, %394 : vector<8x64xf32>
    %397 = arith.divf %395, %396 : vector<8x64xf32>
    %398 = vector.extract_strided_slice %397 {offsets = [0, 0], sizes = [8, 32], strides = [1, 1]} : vector<8x64xf32> to vector<8x32xf32>
    %399 = vector.extract_strided_slice %397 {offsets = [0, 32], sizes = [8, 32], strides = [1, 1]} : vector<8x64xf32> to vector<8x32xf32>
    %400 = vector.extract_strided_slice %389 {offsets = [0, 64], sizes = [8, 32], strides = [1, 1]} : vector<8x96xf32> to vector<8x32xf32>
    %401 = vector.extract_strided_slice %386 {offsets = [0, 64], sizes = [8, 32], strides = [1, 1]} : vector<8x96xf32> to vector<8x32xf32>
    %402 = arith.addf %401, %249 : vector<8x32xf32>
    %403 = arith.mulf %398, %402 : vector<8x32xf32>
    %404 = arith.addf %400, %403 : vector<8x32xf32>
    %405 = math.tanh %404 : vector<8x32xf32>
    %406 = arith.subf %381, %405 : vector<8x32xf32>
    %407 = arith.mulf %399, %406 : vector<8x32xf32>
    %408 = arith.addf %405, %407 : vector<8x32xf32>
    %409 = arith.index_cast %c5_i32_119 : i32 to index
    %c0_124 = arith.constant 0 : index
    %c0_125 = arith.constant 0 : index
    %410 = vector.load %arg11[%409, %c0_124, %c0_125] : memref<8x8x32xf32, #tpu.memory_space<vmem>>, vector<1x8x32xf32>
    %411 = vector.shape_cast %410 : vector<1x8x32xf32> to vector<8x32xf32>
    %412 = vector.shape_cast %408 : vector<8x32xf32> to vector<1x8x32xf32>
    tpu.vector_store %arg11[%409, %c0_124, %c0_125], %412 {strides = array<i32>} : memref<8x8x32xf32, #tpu.memory_space<vmem>>, vector<1x8x32xf32>,
    %c6_i32_126 = arith.constant 6 : i32
    %cst_127 = arith.constant dense<0.000000e+00> : vector<8x96xf32>
    %413 = tpu.matmul %408, %245, %cst_127 {dimension_numbers = #tpu.dot_dimension_numbers<[1], [0], [0], [1], [0, 0, 1, 1], [], []>} : vector<8x32xf32>, vector<32x96xf32>, vector<8x96xf32> -> vector<8x96xf32>
    %414 = arith.index_cast %c6_i32_126 : i32 to index
    %c0_128 = arith.constant 0 : index
    %c0_129 = arith.constant 0 : index
    %415 = vector.load %arg10[%414, %c0_128, %c0_129] : memref<8x8x96xf32, #tpu.memory_space<vmem>>, vector<1x8x96xf32>
    %416 = vector.shape_cast %415 : vector<1x8x96xf32> to vector<8x96xf32>
    %417 = vector.extract_strided_slice %416 {offsets = [0, 0], sizes = [8, 64], strides = [1, 1]} : vector<8x96xf32> to vector<8x64xf32>
    %418 = vector.extract_strided_slice %413 {offsets = [0, 0], sizes = [8, 64], strides = [1, 1]} : vector<8x96xf32> to vector<8x64xf32>
    %419 = arith.addf %417, %418 : vector<8x64xf32>
    %420 = arith.negf %419 : vector<8x64xf32>
    %421 = math.exp %420 : vector<8x64xf32>
    %cst_130 = arith.constant 1.000000e+00 : f32
    %422 = vector.broadcast %cst_130 : f32 to vector<8x64xf32>
    %423 = arith.addf %422, %421 : vector<8x64xf32>
    %424 = arith.divf %422, %423 : vector<8x64xf32>
    %425 = vector.extract_strided_slice %424 {offsets = [0, 0], sizes = [8, 32], strides = [1, 1]} : vector<8x64xf32> to vector<8x32xf32>
    %426 = vector.extract_strided_slice %424 {offsets = [0, 32], sizes = [8, 32], strides = [1, 1]} : vector<8x64xf32> to vector<8x32xf32>
    %427 = vector.extract_strided_slice %416 {offsets = [0, 64], sizes = [8, 32], strides = [1, 1]} : vector<8x96xf32> to vector<8x32xf32>
    %428 = vector.extract_strided_slice %413 {offsets = [0, 64], sizes = [8, 32], strides = [1, 1]} : vector<8x96xf32> to vector<8x32xf32>
    %429 = arith.addf %428, %249 : vector<8x32xf32>
    %430 = arith.mulf %425, %429 : vector<8x32xf32>
    %431 = arith.addf %427, %430 : vector<8x32xf32>
    %432 = math.tanh %431 : vector<8x32xf32>
    %433 = arith.subf %408, %432 : vector<8x32xf32>
    %434 = arith.mulf %426, %433 : vector<8x32xf32>
    %435 = arith.addf %432, %434 : vector<8x32xf32>
    %436 = arith.index_cast %c6_i32_126 : i32 to index
    %c0_131 = arith.constant 0 : index
    %c0_132 = arith.constant 0 : index
    %437 = vector.load %arg11[%436, %c0_131, %c0_132] : memref<8x8x32xf32, #tpu.memory_space<vmem>>, vector<1x8x32xf32>
    %438 = vector.shape_cast %437 : vector<1x8x32xf32> to vector<8x32xf32>
    %439 = vector.shape_cast %435 : vector<8x32xf32> to vector<1x8x32xf32>
    tpu.vector_store %arg11[%436, %c0_131, %c0_132], %439 {strides = array<i32>} : memref<8x8x32xf32, #tpu.memory_space<vmem>>, vector<1x8x32xf32>,
    %c7_i32_133 = arith.constant 7 : i32
    %cst_134 = arith.constant dense<0.000000e+00> : vector<8x96xf32>
    %440 = tpu.matmul %435, %245, %cst_134 {dimension_numbers = #tpu.dot_dimension_numbers<[1], [0], [0], [1], [0, 0, 1, 1], [], []>} : vector<8x32xf32>, vector<32x96xf32>, vector<8x96xf32> -> vector<8x96xf32>
    %441 = arith.index_cast %c7_i32_133 : i32 to index
    %c0_135 = arith.constant 0 : index
    %c0_136 = arith.constant 0 : index
    %442 = vector.load %arg10[%441, %c0_135, %c0_136] : memref<8x8x96xf32, #tpu.memory_space<vmem>>, vector<1x8x96xf32>
    %443 = vector.shape_cast %442 : vector<1x8x96xf32> to vector<8x96xf32>
    %444 = vector.extract_strided_slice %443 {offsets = [0, 0], sizes = [8, 64], strides = [1, 1]} : vector<8x96xf32> to vector<8x64xf32>
    %445 = vector.extract_strided_slice %440 {offsets = [0, 0], sizes = [8, 64], strides = [1, 1]} : vector<8x96xf32> to vector<8x64xf32>
    %446 = arith.addf %444, %445 : vector<8x64xf32>
    %447 = arith.negf %446 : vector<8x64xf32>
    %448 = math.exp %447 : vector<8x64xf32>
    %cst_137 = arith.constant 1.000000e+00 : f32
    %449 = vector.broadcast %cst_137 : f32 to vector<8x64xf32>
    %450 = arith.addf %449, %448 : vector<8x64xf32>
    %451 = arith.divf %449, %450 : vector<8x64xf32>
    %452 = vector.extract_strided_slice %451 {offsets = [0, 0], sizes = [8, 32], strides = [1, 1]} : vector<8x64xf32> to vector<8x32xf32>
    %453 = vector.extract_strided_slice %451 {offsets = [0, 32], sizes = [8, 32], strides = [1, 1]} : vector<8x64xf32> to vector<8x32xf32>
    %454 = vector.extract_strided_slice %443 {offsets = [0, 64], sizes = [8, 32], strides = [1, 1]} : vector<8x96xf32> to vector<8x32xf32>
    %455 = vector.extract_strided_slice %440 {offsets = [0, 64], sizes = [8, 32], strides = [1, 1]} : vector<8x96xf32> to vector<8x32xf32>
    %456 = arith.addf %455, %249 : vector<8x32xf32>
    %457 = arith.mulf %452, %456 : vector<8x32xf32>
    %458 = arith.addf %454, %457 : vector<8x32xf32>
    %459 = math.tanh %458 : vector<8x32xf32>
    %460 = arith.subf %435, %459 : vector<8x32xf32>
    %461 = arith.mulf %453, %460 : vector<8x32xf32>
    %462 = arith.addf %459, %461 : vector<8x32xf32>
    %463 = arith.index_cast %c7_i32_133 : i32 to index
    %c0_138 = arith.constant 0 : index
    %c0_139 = arith.constant 0 : index
    %464 = vector.load %arg11[%463, %c0_138, %c0_139] : memref<8x8x32xf32, #tpu.memory_space<vmem>>, vector<1x8x32xf32>
    %465 = vector.shape_cast %464 : vector<1x8x32xf32> to vector<8x32xf32>
    %466 = vector.shape_cast %462 : vector<8x32xf32> to vector<1x8x32xf32>
    tpu.vector_store %arg11[%463, %c0_138, %c0_139], %466 {strides = array<i32>} : memref<8x8x32xf32, #tpu.memory_space<vmem>>, vector<1x8x32xf32>,
    %c8_i32_140 = arith.constant 8 : i32
    %c0_141 = arith.constant 0 : index
    %c0_142 = arith.constant 0 : index
    %c0_143 = arith.constant 0 : index
    %467 = vector.load %arg11[%c0_141, %c0_142, %c0_143] : memref<8x8x32xf32, #tpu.memory_space<vmem>>, vector<8x8x32xf32>
    %468 = vector.shape_cast %467 : vector<8x8x32xf32> to vector<64x32xf32>
    %c1_144 = arith.constant 1 : index
    %c0_145 = arith.constant 0 : index
    %c0_146 = arith.constant 0 : index
    %469 = vector.load %arg3[%c1_144, %c0_145, %c0_146] : memref<2x32x96xf32, #tpu.memory_space<vmem>>, vector<1x32x96xf32>
    %470 = vector.shape_cast %469 : vector<1x32x96xf32> to vector<32x96xf32>
    %c2 = arith.constant 2 : index
    %c0_147 = arith.constant 0 : index
    %c0_148 = arith.constant 0 : index
    %471 = vector.load %arg5[%c2, %c0_147, %c0_148] : memref<3x1x96xf32, #tpu.memory_space<vmem>>, vector<1x1x96xf32>
    %472 = vector.shape_cast %471 : vector<1x1x96xf32> to vector<1x96xf32>
    %cst_149 = arith.constant dense<0.000000e+00> : vector<64x96xf32>
    %473 = tpu.matmul %468, %470, %cst_149 {dimension_numbers = #tpu.dot_dimension_numbers<[1], [0], [0], [1], [0, 0, 1, 1], [], []>} : vector<64x32xf32>, vector<32x96xf32>, vector<64x96xf32> -> vector<64x96xf32>
    %474 = vector.broadcast %472 : vector<1x96xf32> to vector<64x96xf32>
    %475 = arith.addf %473, %474 : vector<64x96xf32>
    %476 = vector.shape_cast %475 : vector<64x96xf32> to vector<8x8x96xf32>
    %c0_150 = arith.constant 0 : index
    %c0_151 = arith.constant 0 : index
    %c0_152 = arith.constant 0 : index
    %477 = vector.load %arg10[%c0_150, %c0_151, %c0_152] : memref<8x8x96xf32, #tpu.memory_space<vmem>>, vector<8x8x96xf32>
    tpu.vector_store %arg10[%c0_150, %c0_151, %c0_152], %476 {strides = array<i32>} : memref<8x8x96xf32, #tpu.memory_space<vmem>>, vector<8x8x96xf32>,
    %c2_153 = arith.constant 2 : index
    %c0_154 = arith.constant 0 : index
    %c0_155 = arith.constant 0 : index
    %478 = vector.load %arg4[%c2_153, %c0_154, %c0_155] : memref<3x32x96xf32, #tpu.memory_space<vmem>>, vector<1x32x96xf32>
    %479 = vector.shape_cast %478 : vector<1x32x96xf32> to vector<32x96xf32>
    %c2_156 = arith.constant 2 : index
    %c0_157 = arith.constant 0 : index
    %c0_158 = arith.constant 0 : index
    %480 = vector.load %arg6[%c2_156, %c0_157, %c0_158] : memref<3x1x32xf32, #tpu.memory_space<vmem>>, vector<1x1x32xf32>
    %481 = vector.shape_cast %480 : vector<1x1x32xf32> to vector<1x32xf32>
    %482 = vector.shape_cast %481 : vector<1x32xf32> to vector<1x32xf32>
    %483 = vector.broadcast %482 : vector<1x32xf32> to vector<8x32xf32>
    %cst_159 = arith.constant 0.000000e+00 : f32
    %484 = vector.broadcast %cst_159 : f32 to vector<8x32xf32>
    %c0_i32_160 = arith.constant 0 : i32
    %cst_161 = arith.constant dense<0.000000e+00> : vector<8x96xf32>
    %485 = tpu.matmul %484, %479, %cst_161 {dimension_numbers = #tpu.dot_dimension_numbers<[1], [0], [0], [1], [0, 0, 1, 1], [], []>} : vector<8x32xf32>, vector<32x96xf32>, vector<8x96xf32> -> vector<8x96xf32>
    %486 = arith.index_cast %c0_i32_160 : i32 to index
    %c0_162 = arith.constant 0 : index
    %c0_163 = arith.constant 0 : index
    %487 = vector.load %arg10[%486, %c0_162, %c0_163] : memref<8x8x96xf32, #tpu.memory_space<vmem>>, vector<1x8x96xf32>
    %488 = vector.shape_cast %487 : vector<1x8x96xf32> to vector<8x96xf32>
    %489 = vector.extract_strided_slice %488 {offsets = [0, 0], sizes = [8, 64], strides = [1, 1]} : vector<8x96xf32> to vector<8x64xf32>
    %490 = vector.extract_strided_slice %485 {offsets = [0, 0], sizes = [8, 64], strides = [1, 1]} : vector<8x96xf32> to vector<8x64xf32>
    %491 = arith.addf %489, %490 : vector<8x64xf32>
    %492 = arith.negf %491 : vector<8x64xf32>
    %493 = math.exp %492 : vector<8x64xf32>
    %cst_164 = arith.constant 1.000000e+00 : f32
    %494 = vector.broadcast %cst_164 : f32 to vector<8x64xf32>
    %495 = arith.addf %494, %493 : vector<8x64xf32>
    %496 = arith.divf %494, %495 : vector<8x64xf32>
    %497 = vector.extract_strided_slice %496 {offsets = [0, 0], sizes = [8, 32], strides = [1, 1]} : vector<8x64xf32> to vector<8x32xf32>
    %498 = vector.extract_strided_slice %496 {offsets = [0, 32], sizes = [8, 32], strides = [1, 1]} : vector<8x64xf32> to vector<8x32xf32>
    %499 = vector.extract_strided_slice %488 {offsets = [0, 64], sizes = [8, 32], strides = [1, 1]} : vector<8x96xf32> to vector<8x32xf32>
    %500 = vector.extract_strided_slice %485 {offsets = [0, 64], sizes = [8, 32], strides = [1, 1]} : vector<8x96xf32> to vector<8x32xf32>
    %501 = arith.addf %500, %483 : vector<8x32xf32>
    %502 = arith.mulf %497, %501 : vector<8x32xf32>
    %503 = arith.addf %499, %502 : vector<8x32xf32>
    %504 = math.tanh %503 : vector<8x32xf32>
    %505 = arith.subf %484, %504 : vector<8x32xf32>
    %506 = arith.mulf %498, %505 : vector<8x32xf32>
    %507 = arith.addf %504, %506 : vector<8x32xf32>
    %c1_i32_165 = arith.constant 1 : i32
    %cst_166 = arith.constant dense<0.000000e+00> : vector<8x96xf32>
    %508 = tpu.matmul %507, %479, %cst_166 {dimension_numbers = #tpu.dot_dimension_numbers<[1], [0], [0], [1], [0, 0, 1, 1], [], []>} : vector<8x32xf32>, vector<32x96xf32>, vector<8x96xf32> -> vector<8x96xf32>
    %509 = arith.index_cast %c1_i32_165 : i32 to index
    %c0_167 = arith.constant 0 : index
    %c0_168 = arith.constant 0 : index
    %510 = vector.load %arg10[%509, %c0_167, %c0_168] : memref<8x8x96xf32, #tpu.memory_space<vmem>>, vector<1x8x96xf32>
    %511 = vector.shape_cast %510 : vector<1x8x96xf32> to vector<8x96xf32>
    %512 = vector.extract_strided_slice %511 {offsets = [0, 0], sizes = [8, 64], strides = [1, 1]} : vector<8x96xf32> to vector<8x64xf32>
    %513 = vector.extract_strided_slice %508 {offsets = [0, 0], sizes = [8, 64], strides = [1, 1]} : vector<8x96xf32> to vector<8x64xf32>
    %514 = arith.addf %512, %513 : vector<8x64xf32>
    %515 = arith.negf %514 : vector<8x64xf32>
    %516 = math.exp %515 : vector<8x64xf32>
    %cst_169 = arith.constant 1.000000e+00 : f32
    %517 = vector.broadcast %cst_169 : f32 to vector<8x64xf32>
    %518 = arith.addf %517, %516 : vector<8x64xf32>
    %519 = arith.divf %517, %518 : vector<8x64xf32>
    %520 = vector.extract_strided_slice %519 {offsets = [0, 0], sizes = [8, 32], strides = [1, 1]} : vector<8x64xf32> to vector<8x32xf32>
    %521 = vector.extract_strided_slice %519 {offsets = [0, 32], sizes = [8, 32], strides = [1, 1]} : vector<8x64xf32> to vector<8x32xf32>
    %522 = vector.extract_strided_slice %511 {offsets = [0, 64], sizes = [8, 32], strides = [1, 1]} : vector<8x96xf32> to vector<8x32xf32>
    %523 = vector.extract_strided_slice %508 {offsets = [0, 64], sizes = [8, 32], strides = [1, 1]} : vector<8x96xf32> to vector<8x32xf32>
    %524 = arith.addf %523, %483 : vector<8x32xf32>
    %525 = arith.mulf %520, %524 : vector<8x32xf32>
    %526 = arith.addf %522, %525 : vector<8x32xf32>
    %527 = math.tanh %526 : vector<8x32xf32>
    %528 = arith.subf %507, %527 : vector<8x32xf32>
    %529 = arith.mulf %521, %528 : vector<8x32xf32>
    %530 = arith.addf %527, %529 : vector<8x32xf32>
    %c2_i32_170 = arith.constant 2 : i32
    %cst_171 = arith.constant dense<0.000000e+00> : vector<8x96xf32>
    %531 = tpu.matmul %530, %479, %cst_171 {dimension_numbers = #tpu.dot_dimension_numbers<[1], [0], [0], [1], [0, 0, 1, 1], [], []>} : vector<8x32xf32>, vector<32x96xf32>, vector<8x96xf32> -> vector<8x96xf32>
    %532 = arith.index_cast %c2_i32_170 : i32 to index
    %c0_172 = arith.constant 0 : index
    %c0_173 = arith.constant 0 : index
    %533 = vector.load %arg10[%532, %c0_172, %c0_173] : memref<8x8x96xf32, #tpu.memory_space<vmem>>, vector<1x8x96xf32>
    %534 = vector.shape_cast %533 : vector<1x8x96xf32> to vector<8x96xf32>
    %535 = vector.extract_strided_slice %534 {offsets = [0, 0], sizes = [8, 64], strides = [1, 1]} : vector<8x96xf32> to vector<8x64xf32>
    %536 = vector.extract_strided_slice %531 {offsets = [0, 0], sizes = [8, 64], strides = [1, 1]} : vector<8x96xf32> to vector<8x64xf32>
    %537 = arith.addf %535, %536 : vector<8x64xf32>
    %538 = arith.negf %537 : vector<8x64xf32>
    %539 = math.exp %538 : vector<8x64xf32>
    %cst_174 = arith.constant 1.000000e+00 : f32
    %540 = vector.broadcast %cst_174 : f32 to vector<8x64xf32>
    %541 = arith.addf %540, %539 : vector<8x64xf32>
    %542 = arith.divf %540, %541 : vector<8x64xf32>
    %543 = vector.extract_strided_slice %542 {offsets = [0, 0], sizes = [8, 32], strides = [1, 1]} : vector<8x64xf32> to vector<8x32xf32>
    %544 = vector.extract_strided_slice %542 {offsets = [0, 32], sizes = [8, 32], strides = [1, 1]} : vector<8x64xf32> to vector<8x32xf32>
    %545 = vector.extract_strided_slice %534 {offsets = [0, 64], sizes = [8, 32], strides = [1, 1]} : vector<8x96xf32> to vector<8x32xf32>
    %546 = vector.extract_strided_slice %531 {offsets = [0, 64], sizes = [8, 32], strides = [1, 1]} : vector<8x96xf32> to vector<8x32xf32>
    %547 = arith.addf %546, %483 : vector<8x32xf32>
    %548 = arith.mulf %543, %547 : vector<8x32xf32>
    %549 = arith.addf %545, %548 : vector<8x32xf32>
    %550 = math.tanh %549 : vector<8x32xf32>
    %551 = arith.subf %530, %550 : vector<8x32xf32>
    %552 = arith.mulf %544, %551 : vector<8x32xf32>
    %553 = arith.addf %550, %552 : vector<8x32xf32>
    %c3_i32_175 = arith.constant 3 : i32
    %cst_176 = arith.constant dense<0.000000e+00> : vector<8x96xf32>
    %554 = tpu.matmul %553, %479, %cst_176 {dimension_numbers = #tpu.dot_dimension_numbers<[1], [0], [0], [1], [0, 0, 1, 1], [], []>} : vector<8x32xf32>, vector<32x96xf32>, vector<8x96xf32> -> vector<8x96xf32>
    %555 = arith.index_cast %c3_i32_175 : i32 to index
    %c0_177 = arith.constant 0 : index
    %c0_178 = arith.constant 0 : index
    %556 = vector.load %arg10[%555, %c0_177, %c0_178] : memref<8x8x96xf32, #tpu.memory_space<vmem>>, vector<1x8x96xf32>
    %557 = vector.shape_cast %556 : vector<1x8x96xf32> to vector<8x96xf32>
    %558 = vector.extract_strided_slice %557 {offsets = [0, 0], sizes = [8, 64], strides = [1, 1]} : vector<8x96xf32> to vector<8x64xf32>
    %559 = vector.extract_strided_slice %554 {offsets = [0, 0], sizes = [8, 64], strides = [1, 1]} : vector<8x96xf32> to vector<8x64xf32>
    %560 = arith.addf %558, %559 : vector<8x64xf32>
    %561 = arith.negf %560 : vector<8x64xf32>
    %562 = math.exp %561 : vector<8x64xf32>
    %cst_179 = arith.constant 1.000000e+00 : f32
    %563 = vector.broadcast %cst_179 : f32 to vector<8x64xf32>
    %564 = arith.addf %563, %562 : vector<8x64xf32>
    %565 = arith.divf %563, %564 : vector<8x64xf32>
    %566 = vector.extract_strided_slice %565 {offsets = [0, 0], sizes = [8, 32], strides = [1, 1]} : vector<8x64xf32> to vector<8x32xf32>
    %567 = vector.extract_strided_slice %565 {offsets = [0, 32], sizes = [8, 32], strides = [1, 1]} : vector<8x64xf32> to vector<8x32xf32>
    %568 = vector.extract_strided_slice %557 {offsets = [0, 64], sizes = [8, 32], strides = [1, 1]} : vector<8x96xf32> to vector<8x32xf32>
    %569 = vector.extract_strided_slice %554 {offsets = [0, 64], sizes = [8, 32], strides = [1, 1]} : vector<8x96xf32> to vector<8x32xf32>
    %570 = arith.addf %569, %483 : vector<8x32xf32>
    %571 = arith.mulf %566, %570 : vector<8x32xf32>
    %572 = arith.addf %568, %571 : vector<8x32xf32>
    %573 = math.tanh %572 : vector<8x32xf32>
    %574 = arith.subf %553, %573 : vector<8x32xf32>
    %575 = arith.mulf %567, %574 : vector<8x32xf32>
    %576 = arith.addf %573, %575 : vector<8x32xf32>
    %c4_i32_180 = arith.constant 4 : i32
    %cst_181 = arith.constant dense<0.000000e+00> : vector<8x96xf32>
    %577 = tpu.matmul %576, %479, %cst_181 {dimension_numbers = #tpu.dot_dimension_numbers<[1], [0], [0], [1], [0, 0, 1, 1], [], []>} : vector<8x32xf32>, vector<32x96xf32>, vector<8x96xf32> -> vector<8x96xf32>
    %578 = arith.index_cast %c4_i32_180 : i32 to index
    %c0_182 = arith.constant 0 : index
    %c0_183 = arith.constant 0 : index
    %579 = vector.load %arg10[%578, %c0_182, %c0_183] : memref<8x8x96xf32, #tpu.memory_space<vmem>>, vector<1x8x96xf32>
    %580 = vector.shape_cast %579 : vector<1x8x96xf32> to vector<8x96xf32>
    %581 = vector.extract_strided_slice %580 {offsets = [0, 0], sizes = [8, 64], strides = [1, 1]} : vector<8x96xf32> to vector<8x64xf32>
    %582 = vector.extract_strided_slice %577 {offsets = [0, 0], sizes = [8, 64], strides = [1, 1]} : vector<8x96xf32> to vector<8x64xf32>
    %583 = arith.addf %581, %582 : vector<8x64xf32>
    %584 = arith.negf %583 : vector<8x64xf32>
    %585 = math.exp %584 : vector<8x64xf32>
    %cst_184 = arith.constant 1.000000e+00 : f32
    %586 = vector.broadcast %cst_184 : f32 to vector<8x64xf32>
    %587 = arith.addf %586, %585 : vector<8x64xf32>
    %588 = arith.divf %586, %587 : vector<8x64xf32>
    %589 = vector.extract_strided_slice %588 {offsets = [0, 0], sizes = [8, 32], strides = [1, 1]} : vector<8x64xf32> to vector<8x32xf32>
    %590 = vector.extract_strided_slice %588 {offsets = [0, 32], sizes = [8, 32], strides = [1, 1]} : vector<8x64xf32> to vector<8x32xf32>
    %591 = vector.extract_strided_slice %580 {offsets = [0, 64], sizes = [8, 32], strides = [1, 1]} : vector<8x96xf32> to vector<8x32xf32>
    %592 = vector.extract_strided_slice %577 {offsets = [0, 64], sizes = [8, 32], strides = [1, 1]} : vector<8x96xf32> to vector<8x32xf32>
    %593 = arith.addf %592, %483 : vector<8x32xf32>
    %594 = arith.mulf %589, %593 : vector<8x32xf32>
    %595 = arith.addf %591, %594 : vector<8x32xf32>
    %596 = math.tanh %595 : vector<8x32xf32>
    %597 = arith.subf %576, %596 : vector<8x32xf32>
    %598 = arith.mulf %590, %597 : vector<8x32xf32>
    %599 = arith.addf %596, %598 : vector<8x32xf32>
    %c5_i32_185 = arith.constant 5 : i32
    %cst_186 = arith.constant dense<0.000000e+00> : vector<8x96xf32>
    %600 = tpu.matmul %599, %479, %cst_186 {dimension_numbers = #tpu.dot_dimension_numbers<[1], [0], [0], [1], [0, 0, 1, 1], [], []>} : vector<8x32xf32>, vector<32x96xf32>, vector<8x96xf32> -> vector<8x96xf32>
    %601 = arith.index_cast %c5_i32_185 : i32 to index
    %c0_187 = arith.constant 0 : index
    %c0_188 = arith.constant 0 : index
    %602 = vector.load %arg10[%601, %c0_187, %c0_188] : memref<8x8x96xf32, #tpu.memory_space<vmem>>, vector<1x8x96xf32>
    %603 = vector.shape_cast %602 : vector<1x8x96xf32> to vector<8x96xf32>
    %604 = vector.extract_strided_slice %603 {offsets = [0, 0], sizes = [8, 64], strides = [1, 1]} : vector<8x96xf32> to vector<8x64xf32>
    %605 = vector.extract_strided_slice %600 {offsets = [0, 0], sizes = [8, 64], strides = [1, 1]} : vector<8x96xf32> to vector<8x64xf32>
    %606 = arith.addf %604, %605 : vector<8x64xf32>
    %607 = arith.negf %606 : vector<8x64xf32>
    %608 = math.exp %607 : vector<8x64xf32>
    %cst_189 = arith.constant 1.000000e+00 : f32
    %609 = vector.broadcast %cst_189 : f32 to vector<8x64xf32>
    %610 = arith.addf %609, %608 : vector<8x64xf32>
    %611 = arith.divf %609, %610 : vector<8x64xf32>
    %612 = vector.extract_strided_slice %611 {offsets = [0, 0], sizes = [8, 32], strides = [1, 1]} : vector<8x64xf32> to vector<8x32xf32>
    %613 = vector.extract_strided_slice %611 {offsets = [0, 32], sizes = [8, 32], strides = [1, 1]} : vector<8x64xf32> to vector<8x32xf32>
    %614 = vector.extract_strided_slice %603 {offsets = [0, 64], sizes = [8, 32], strides = [1, 1]} : vector<8x96xf32> to vector<8x32xf32>
    %615 = vector.extract_strided_slice %600 {offsets = [0, 64], sizes = [8, 32], strides = [1, 1]} : vector<8x96xf32> to vector<8x32xf32>
    %616 = arith.addf %615, %483 : vector<8x32xf32>
    %617 = arith.mulf %612, %616 : vector<8x32xf32>
    %618 = arith.addf %614, %617 : vector<8x32xf32>
    %619 = math.tanh %618 : vector<8x32xf32>
    %620 = arith.subf %599, %619 : vector<8x32xf32>
    %621 = arith.mulf %613, %620 : vector<8x32xf32>
    %622 = arith.addf %619, %621 : vector<8x32xf32>
    %c6_i32_190 = arith.constant 6 : i32
    %cst_191 = arith.constant dense<0.000000e+00> : vector<8x96xf32>
    %623 = tpu.matmul %622, %479, %cst_191 {dimension_numbers = #tpu.dot_dimension_numbers<[1], [0], [0], [1], [0, 0, 1, 1], [], []>} : vector<8x32xf32>, vector<32x96xf32>, vector<8x96xf32> -> vector<8x96xf32>
    %624 = arith.index_cast %c6_i32_190 : i32 to index
    %c0_192 = arith.constant 0 : index
    %c0_193 = arith.constant 0 : index
    %625 = vector.load %arg10[%624, %c0_192, %c0_193] : memref<8x8x96xf32, #tpu.memory_space<vmem>>, vector<1x8x96xf32>
    %626 = vector.shape_cast %625 : vector<1x8x96xf32> to vector<8x96xf32>
    %627 = vector.extract_strided_slice %626 {offsets = [0, 0], sizes = [8, 64], strides = [1, 1]} : vector<8x96xf32> to vector<8x64xf32>
    %628 = vector.extract_strided_slice %623 {offsets = [0, 0], sizes = [8, 64], strides = [1, 1]} : vector<8x96xf32> to vector<8x64xf32>
    %629 = arith.addf %627, %628 : vector<8x64xf32>
    %630 = arith.negf %629 : vector<8x64xf32>
    %631 = math.exp %630 : vector<8x64xf32>
    %cst_194 = arith.constant 1.000000e+00 : f32
    %632 = vector.broadcast %cst_194 : f32 to vector<8x64xf32>
    %633 = arith.addf %632, %631 : vector<8x64xf32>
    %634 = arith.divf %632, %633 : vector<8x64xf32>
    %635 = vector.extract_strided_slice %634 {offsets = [0, 0], sizes = [8, 32], strides = [1, 1]} : vector<8x64xf32> to vector<8x32xf32>
    %636 = vector.extract_strided_slice %634 {offsets = [0, 32], sizes = [8, 32], strides = [1, 1]} : vector<8x64xf32> to vector<8x32xf32>
    %637 = vector.extract_strided_slice %626 {offsets = [0, 64], sizes = [8, 32], strides = [1, 1]} : vector<8x96xf32> to vector<8x32xf32>
    %638 = vector.extract_strided_slice %623 {offsets = [0, 64], sizes = [8, 32], strides = [1, 1]} : vector<8x96xf32> to vector<8x32xf32>
    %639 = arith.addf %638, %483 : vector<8x32xf32>
    %640 = arith.mulf %635, %639 : vector<8x32xf32>
    %641 = arith.addf %637, %640 : vector<8x32xf32>
    %642 = math.tanh %641 : vector<8x32xf32>
    %643 = arith.subf %622, %642 : vector<8x32xf32>
    %644 = arith.mulf %636, %643 : vector<8x32xf32>
    %645 = arith.addf %642, %644 : vector<8x32xf32>
    %c7_i32_195 = arith.constant 7 : i32
    %cst_196 = arith.constant dense<0.000000e+00> : vector<8x96xf32>
    %646 = tpu.matmul %645, %479, %cst_196 {dimension_numbers = #tpu.dot_dimension_numbers<[1], [0], [0], [1], [0, 0, 1, 1], [], []>} : vector<8x32xf32>, vector<32x96xf32>, vector<8x96xf32> -> vector<8x96xf32>
    %647 = arith.index_cast %c7_i32_195 : i32 to index
    %c0_197 = arith.constant 0 : index
    %c0_198 = arith.constant 0 : index
    %648 = vector.load %arg10[%647, %c0_197, %c0_198] : memref<8x8x96xf32, #tpu.memory_space<vmem>>, vector<1x8x96xf32>
    %649 = vector.shape_cast %648 : vector<1x8x96xf32> to vector<8x96xf32>
    %650 = vector.extract_strided_slice %649 {offsets = [0, 0], sizes = [8, 64], strides = [1, 1]} : vector<8x96xf32> to vector<8x64xf32>
    %651 = vector.extract_strided_slice %646 {offsets = [0, 0], sizes = [8, 64], strides = [1, 1]} : vector<8x96xf32> to vector<8x64xf32>
    %652 = arith.addf %650, %651 : vector<8x64xf32>
    %653 = arith.negf %652 : vector<8x64xf32>
    %654 = math.exp %653 : vector<8x64xf32>
    %cst_199 = arith.constant 1.000000e+00 : f32
    %655 = vector.broadcast %cst_199 : f32 to vector<8x64xf32>
    %656 = arith.addf %655, %654 : vector<8x64xf32>
    %657 = arith.divf %655, %656 : vector<8x64xf32>
    %658 = vector.extract_strided_slice %657 {offsets = [0, 0], sizes = [8, 32], strides = [1, 1]} : vector<8x64xf32> to vector<8x32xf32>
    %659 = vector.extract_strided_slice %657 {offsets = [0, 32], sizes = [8, 32], strides = [1, 1]} : vector<8x64xf32> to vector<8x32xf32>
    %660 = vector.extract_strided_slice %649 {offsets = [0, 64], sizes = [8, 32], strides = [1, 1]} : vector<8x96xf32> to vector<8x32xf32>
    %661 = vector.extract_strided_slice %646 {offsets = [0, 64], sizes = [8, 32], strides = [1, 1]} : vector<8x96xf32> to vector<8x32xf32>
    %662 = arith.addf %661, %483 : vector<8x32xf32>
    %663 = arith.mulf %658, %662 : vector<8x32xf32>
    %664 = arith.addf %660, %663 : vector<8x32xf32>
    %665 = math.tanh %664 : vector<8x32xf32>
    %666 = arith.subf %645, %665 : vector<8x32xf32>
    %667 = arith.mulf %659, %666 : vector<8x32xf32>
    %668 = arith.addf %665, %667 : vector<8x32xf32>
    %c8_i32_200 = arith.constant 8 : i32
    %c0_201 = arith.constant 0 : index
    %c0_202 = arith.constant 0 : index
    %669 = vector.load %arg7[%c0_201, %c0_202] : memref<32x8xf32, #tpu.memory_space<vmem>>, vector<32x8xf32>
    %cst_203 = arith.constant dense<0.000000e+00> : vector<8x8xf32>
    %670 = tpu.matmul %668, %669, %cst_203 {dimension_numbers = #tpu.dot_dimension_numbers<[1], [0], [0], [1], [0, 0, 1, 1], [], []>} : vector<8x32xf32>, vector<32x8xf32>, vector<8x8xf32> -> vector<8x8xf32>
    %c0_204 = arith.constant 0 : index
    %c0_205 = arith.constant 0 : index
    %671 = vector.load %arg8[%c0_204, %c0_205] : memref<1x8xf32, #tpu.memory_space<vmem>>, vector<1x8xf32>
    %672 = vector.broadcast %671 : vector<1x8xf32> to vector<8x8xf32>
    %673 = arith.addf %670, %672 : vector<8x8xf32>
    %c0_206 = arith.constant 0 : index
    %c0_207 = arith.constant 0 : index
    %674 = vector.load %arg9[%c0_206, %c0_207] : memref<8x8xf32, #tpu.memory_space<vmem>>, vector<8x8xf32>
    tpu.vector_store %arg9[%c0_206, %c0_207], %673 {strides = array<i32>} : memref<8x8xf32, #tpu.memory_space<vmem>>, vector<8x8xf32>,
    return
  }
  func.func @transform_0(%arg0: i32) -> (i32, i32, i32) {
    %c0_i32 = arith.constant 0 : i32
    %c0_i32_0 = arith.constant 0 : i32
    %c0_i32_1 = arith.constant 0 : i32
    return %c0_i32, %arg0, %c0_i32_0 : i32, i32, i32
  }
  func.func @transform_1(%arg0: i32) -> (i32, i32) {
    %c0_i32 = arith.constant 0 : i32
    %c0_i32_0 = arith.constant 0 : i32
    %c0_i32_1 = arith.constant 0 : i32
    return %c0_i32, %c0_i32_0 : i32, i32
  }
  func.func @transform_2(%arg0: i32) -> (i32, i32, i32) {
    %c0_i32 = arith.constant 0 : i32
    %c0_i32_0 = arith.constant 0 : i32
    %c0_i32_1 = arith.constant 0 : i32
    %c0_i32_2 = arith.constant 0 : i32
    return %c0_i32, %c0_i32_0, %c0_i32_1 : i32, i32, i32
  }
  func.func @transform_3(%arg0: i32) -> (i32, i32, i32) {
    %c0_i32 = arith.constant 0 : i32
    %c0_i32_0 = arith.constant 0 : i32
    %c0_i32_1 = arith.constant 0 : i32
    %c0_i32_2 = arith.constant 0 : i32
    return %c0_i32, %c0_i32_0, %c0_i32_1 : i32, i32, i32
  }
  func.func @transform_4(%arg0: i32) -> (i32, i32, i32) {
    %c0_i32 = arith.constant 0 : i32
    %c0_i32_0 = arith.constant 0 : i32
    %c0_i32_1 = arith.constant 0 : i32
    %c0_i32_2 = arith.constant 0 : i32
    return %c0_i32, %c0_i32_0, %c0_i32_1 : i32, i32, i32
  }
  func.func @transform_5(%arg0: i32) -> (i32, i32, i32) {
    %c0_i32 = arith.constant 0 : i32
    %c0_i32_0 = arith.constant 0 : i32
    %c0_i32_1 = arith.constant 0 : i32
    %c0_i32_2 = arith.constant 0 : i32
    return %c0_i32, %c0_i32_0, %c0_i32_1 : i32, i32, i32
  }
  func.func @transform_6(%arg0: i32) -> (i32, i32) {
    %c0_i32 = arith.constant 0 : i32
    %c0_i32_0 = arith.constant 0 : i32
    %c0_i32_1 = arith.constant 0 : i32
    return %c0_i32, %c0_i32_0 : i32, i32
  }
  func.func @transform_7(%arg0: i32) -> (i32, i32) {
    %c0_i32 = arith.constant 0 : i32
    %c0_i32_0 = arith.constant 0 : i32
    %c0_i32_1 = arith.constant 0 : i32
    return %c0_i32, %c0_i32_0 : i32, i32
  }
  func.func @transform_8(%arg0: i32) -> (i32, i32) {
    %c0_i32 = arith.constant 0 : i32
    %c0_i32_0 = arith.constant 0 : i32
    return %arg0, %c0_i32 : i32, i32
  }
}

</mosaic_0001>

<llo_original>
// kernel: tpu_custom_call.1
$region0: #{tpu_custom_call.1}
  #allocation0 [shape = 'u32[]', space=smem, size = 0x4, offset = 0x4, fixed_abs, tag = 'smem constant byte address 0x4 - core index']
  #allocation1 [shape = 'u32[72,128]{1,0:T(1,128)}', space=vmem, size = 0x9000, scoped, tag = 'internal scratch']
  #allocation2 [shape = 'f32[8,8,96]{2,1,0:T(8,128)}', space=vmem, size = 0x8000, scoped, tag = 'scratch operand']
  #allocation3 [shape = 'f32[8,8,32]{2,1,0:T(8,128)}', space=vmem, size = 0x8000, scoped, tag = 'scratch operand']
  %s0 = inlined_call_operand.hbm [shape: f32[8,8,16], index: 0, kind: input, shape index: {}]
  %s1 = inlined_call_operand.vmem [shape: f32[16,96], index: 1, kind: input, shape index: {}]
  %s2 = inlined_call_operand.hbm [shape: f32[2,32,96], index: 2, kind: input, shape index: {}]
  %s3 = inlined_call_operand.hbm [shape: f32[3,32,96], index: 3, kind: input, shape index: {}]
  %s4 = inlined_call_operand.vmem [shape: f32[3,1,96], index: 4, kind: input, shape index: {}]
  %s5 = inlined_call_operand.vmem [shape: f32[3,1,32], index: 5, kind: input, shape index: {}]
  %s6 = inlined_call_operand.vmem [shape: f32[32,8], index: 6, kind: input, shape index: {}]
  %s7 = inlined_call_operand.vmem [shape: f32[1,8], index: 7, kind: input, shape index: {}]
  %s8 = inlined_call_operand.hbm [shape: f32[8,8], index: 8, kind: output, shape index: {}]
  %s9 = sld [smem:[#allocation0]]
  $region54: #{tpu_custom_call.1} parent=0
    _
  %s11 = ssub.s32 1, %s9
  %s12 = scalar_select 0, %s11, %s9
  $region1: #{tpu_custom_call.1} parent=0
    #allocation4 [shape = 'u8[32768]{0}', space=vmem, size = 0x8000, scoped, tag = 'input window, operand 0, single buffered']
    #allocation5 [shape = 's32[1]{0}', space=sflag, size = 0x4, scoped, tag = 'scoped memory for tpu_custom_call.1']
    #allocation6 [shape = 's32[1]{0}', space=sflag, size = 0x4, scoped, tag = 'scoped memory for tpu_custom_call.1']
    #allocation7 [shape = 'u8[32768]{0}', space=vmem, size = 0x8000, scoped, tag = 'input window, operand 2, single buffered']
    #allocation8 [shape = 's32[1]{0}', space=sflag, size = 0x4, scoped, tag = 'scoped memory for tpu_custom_call.1']
    #allocation9 [shape = 'u8[49152]{0}', space=vmem, size = 0xc000, scoped, tag = 'input window, operand 3, single buffered']
    #allocation10 [shape = 'u8[4096]{0}', space=vmem, size = 0x1000, scoped, tag = 'output window, operand 0, single buffered']
    %13 = vsyncpa [#allocation5], 0
    %14 = vsyncpa [#allocation8], 0
    %15 = vsyncpa [#allocation6], 0
    // Predicated region
    $region2: #{tpu_custom_call.1} parent=1 // pred_check
      _
    $region3: #{tpu_custom_call.1} parent=1 // pred_check_branch
      %17 = sbr.rel (0) target = $region5
    $region4: #{tpu_custom_call.1} parent=1 // pred_region
      %19 = vsyncadd [#allocation5], 0
      %s20 = sshll.u32 %s0, 4
      %s21 = int_to_ptr.hbm [resolvable:$true] %s20
      %s22 = sshll.u32 [#allocation4], 4
      %s23 = int_to_ptr.vmem [resolvable:$true] %s22
      %28 = dma.hbm_to_vmem [thread:$0]  %s21, 1024, %s23, [#allocation5], 128, 128, 8
    $region5: #{tpu_custom_call.1} parent=1 // pred_fallthru
      _
    // Predicated region
    $region6: #{tpu_custom_call.1} parent=1 // pred_check
      _
    $region7: #{tpu_custom_call.1} parent=1 // pred_check_branch
      %30 = sbr.rel (0) target = $region9
    $region8: #{tpu_custom_call.1} parent=1 // pred_region
      _
    $region9: #{tpu_custom_call.1} parent=1 // pred_fallthru
      _
    // Predicated region
    $region10: #{tpu_custom_call.1} parent=1 // pred_check
      _
    $region11: #{tpu_custom_call.1} parent=1 // pred_check_branch
      %32 = sbr.rel (0) target = $region13
    $region12: #{tpu_custom_call.1} parent=1 // pred_region
      %34 = vsyncadd [#allocation8], 0
      %s35 = sshll.u32 %s2, 4
      %s36 = int_to_ptr.hbm [resolvable:$true] %s35
      %s37 = sshll.u32 [#allocation7], 4
      %s38 = int_to_ptr.vmem [resolvable:$true] %s37
      %43 = dma.hbm_to_vmem [thread:$0]  %s36, 1024, %s38, [#allocation8], 128, 128, 8
    $region13: #{tpu_custom_call.1} parent=1 // pred_fallthru
      _
    // Predicated region
    $region14: #{tpu_custom_call.1} parent=1 // pred_check
      _
    $region15: #{tpu_custom_call.1} parent=1 // pred_check_branch
      %45 = sbr.rel (0) target = $region17
    $region16: #{tpu_custom_call.1} parent=1 // pred_region
      %47 = vsyncadd [#allocation8], 0
      %s48 = sshll.u32 %s3, 4
      %s49 = int_to_ptr.hbm [resolvable:$true] %s48
      %s50 = sshll.u32 [#allocation9], 4
      %s51 = int_to_ptr.vmem [resolvable:$true] %s50
      %56 = dma.hbm_to_vmem [thread:$0]  %s49, 1536, %s51, [#allocation8], 128, 128, 8
    $region17: #{tpu_custom_call.1} parent=1 // pred_fallthru
      _
    // Predicated region
    $region18: #{tpu_custom_call.1} parent=1 // pred_check
      _
    $region19: #{tpu_custom_call.1} parent=1 // pred_check_branch
      %58 = sbr.rel (0) target = $region21
    $region20: #{tpu_custom_call.1} parent=1 // pred_region
      _
    $region21: #{tpu_custom_call.1} parent=1 // pred_fallthru
      _
    // Predicated region
    $region22: #{tpu_custom_call.1} parent=1 // pred_check
      _
    $region23: #{tpu_custom_call.1} parent=1 // pred_check_branch
      %60 = sbr.rel (0) target = $region25
    $region24: #{tpu_custom_call.1} parent=1 // pred_region
      _
    $region25: #{tpu_custom_call.1} parent=1 // pred_fallthru
      _
    // Predicated region
    $region26: #{tpu_custom_call.1} parent=1 // pred_check
      _
    $region27: #{tpu_custom_call.1} parent=1 // pred_check_branch
      %62 = sbr.rel (0) target = $region29
    $region28: #{tpu_custom_call.1} parent=1 // pred_region
      _
    $region29: #{tpu_custom_call.1} parent=1 // pred_fallthru
      _
    // Predicated region
    $region30: #{tpu_custom_call.1} parent=1 // pred_check
      _
    $region31: #{tpu_custom_call.1} parent=1 // pred_check_branch
      %64 = sbr.rel (0) target = $region33
    $region32: #{tpu_custom_call.1} parent=1 // pred_region
      _
    $region33: #{tpu_custom_call.1} parent=1 // pred_fallthru
      _
    // Predicated region
    $region34: #{tpu_custom_call.1} parent=1 // pred_check
      _
    $region35: #{tpu_custom_call.1} parent=1 // pred_check_branch
      %66 = sbr.rel (0) target = $region37
    $region36: #{tpu_custom_call.1} parent=1 // pred_region
      %68 = dma.done [#allocation5], 1024
    $region37: #{tpu_custom_call.1} parent=1 // pred_fallthru
      _
    // Predicated region
    $region38: #{tpu_custom_call.1} parent=1 // pred_check
      _
    $region39: #{tpu_custom_call.1} parent=1 // pred_check_branch
      %70 = sbr.rel (0) target = $region41
    $region40: #{tpu_custom_call.1} parent=1 // pred_region
      %72 = dma.done [#allocation8], 1024
    $region41: #{tpu_custom_call.1} parent=1 // pred_fallthru
      _
    // Predicated region
    $region42: #{tpu_custom_call.1} parent=1 // pred_check
      _
    $region43: #{tpu_custom_call.1} parent=1 // pred_check_branch
      %74 = sbr.rel (0) target = $region45
    $region44: #{tpu_custom_call.1} parent=1 // pred_region
      %76 = dma.done [#allocation8], 1536
    $region45: #{tpu_custom_call.1} parent=1 // pred_fallthru
      _
    %v77 = vld [vmem:[#allocation4] sm:$0xff]
    %v78 = vld [vmem:[#allocation4 + $0x8] sm:$0xff]
    %v79 = vld [vmem:[#allocation4 + $0x10] sm:$0xff]
    %v80 = vld [vmem:[#allocation4 + $0x18] sm:$0xff]
    %v81 = vld [vmem:[#allocation4 + $0x20] sm:$0xff]
    %v82 = vld [vmem:[#allocation4 + $0x28] sm:$0xff]
    %v83 = vld [vmem:[#allocation4 + $0x30] sm:$0xff]
    %v84 = vld [vmem:[#allocation4 + $0x38] sm:$0xff]
    %v85 = vld [vmem:[%s1] sm:$0xff]
    %v86 = vld [vmem:[%s1 + $0x8] sm:$0xff]
    %v87 = vld [vmem:[%s4] sm:$0x1]
    %v89 = vperm.slane %v87, 0
    %vm91 = vcmask 130048
    %v93 = vsel %vm91, %v77, 0
    %v96 = vsel %vm91, %v78, 0
    %v99 = vsel %vm91, %v79, 0
    %v102 = vsel %vm91, %v80, 0
    %v105 = vsel %vm91, %v81, 0
    %v108 = vsel %vm91, %v82, 0
    %v111 = vsel %vm91, %v83, 0
    %v114 = vsel %vm91, %v84, 0
    %116 = vmatpush.msra.mxu0 0.0
    %117 = vmatpush.msra.mxu0 0.0
    %118 = vmatpush.msra.mxu0 0.0
    %119 = vmatpush.msra.mxu0 0.0
    %120 = vmatpush.msra.mxu0 0.0
    %121 = vmatpush.msra.mxu0 0.0
    %122 = vmatpush.msra.mxu0 0.0
    %123 = vmatpush.msra.mxu0 0.0
    %124 = vmatpush.msra.mxu0 0.0
    %125 = vmatpush.msra.mxu0 0.0
    %126 = vmatpush.msra.mxu0 0.0
    %127 = vmatpush.msra.mxu0 0.0
    %128 = vmatpush.msra.mxu0 0.0
    %129 = vmatpush.msra.mxu0 0.0
    %130 = vmatpush.msra.mxu0 %v86
    %131 = vmatpush.msra.mxu0 %v85
    %132 = vmatmul.f32.gmra.mxu0 %v93
    %v133 = vpop.f32.mrf.mxu0
    %v134 = vadd.f32 %v89, %v133
    %135 = vmatmul.f32.gmra.mxu0 %v96
    %v136 = vpop.f32.mrf.mxu0
    %v137 = vadd.f32 %v89, %v136
    %138 = vmatmul.f32.gmra.mxu0 %v99
    %v139 = vpop.f32.mrf.mxu0
    %v140 = vadd.f32 %v89, %v139
    %141 = vmatmul.f32.gmra.mxu0 %v102
    %v142 = vpop.f32.mrf.mxu0
    %v143 = vadd.f32 %v89, %v142
    %144 = vmatmul.f32.gmra.mxu0 %v105
    %v145 = vpop.f32.mrf.mxu0
    %v146 = vadd.f32 %v89, %v145
    %147 = vmatmul.f32.gmra.mxu0 %v108
    %v148 = vpop.f32.mrf.mxu0
    %v149 = vadd.f32 %v89, %v148
    %150 = vmatmul.f32.gmra.mxu0 %v111
    %v151 = vpop.f32.mrf.mxu0
    %v152 = vadd.f32 %v89, %v151
    %153 = vmatmul.f32.gmra.mxu0 %v114
    %v154 = vpop.f32.mrf.mxu0
    %v155 = vadd.f32 %v89, %v154
    %156 = vdwg.mxu0
    %vm157 = vcmask 785408
    %158 = vst.msk [vmem:[#allocation2] sm:$0xff] %vm157, %v134
    %159 = vst.msk [vmem:[#allocation2 + $0x8] sm:$0xff] %vm157, %v137
    %160 = vst.msk [vmem:[#allocation2 + $0x10] sm:$0xff] %vm157, %v140
    %161 = vst.msk [vmem:[#allocation2 + $0x18] sm:$0xff] %vm157, %v143
    %162 = vst.msk [vmem:[#allocation2 + $0x20] sm:$0xff] %vm157, %v146
    %163 = vst.msk [vmem:[#allocation2 + $0x28] sm:$0xff] %vm157, %v149
    %164 = vst.msk [vmem:[#allocation2 + $0x30] sm:$0xff] %vm157, %v152
    %165 = vst.msk [vmem:[#allocation2 + $0x38] sm:$0xff] %vm157, %v155
    %v166 = vld [vmem:[#allocation9] sm:$0xff]
    %v167 = vld [vmem:[#allocation9 + $0x8] sm:$0xff]
    %v168 = vld [vmem:[#allocation9 + $0x10] sm:$0xff]
    %v169 = vld [vmem:[#allocation9 + $0x18] sm:$0xff]
    %v170 = vld [vmem:[%s5] sm:$0x1]
    %v172 = vperm.slane %v170, 0
    %vm173 = vcmask 261120
    %v175 = vsel %vm173, 0.0, 0
    %177 = vmatpush.msra.mxu0 0.0
    %178 = vmatpush.msra.mxu0 0.0
    %179 = vmatpush.msra.mxu0 0.0
    %180 = vmatpush.msra.mxu0 0.0
    %181 = vmatpush.msra.mxu0 0.0
    %182 = vmatpush.msra.mxu0 0.0
    %183 = vmatpush.msra.mxu0 0.0
    %184 = vmatpush.msra.mxu0 0.0
    %185 = vmatpush.msra.mxu0 0.0
    %186 = vmatpush.msra.mxu0 0.0
    %187 = vmatpush.msra.mxu0 0.0
    %188 = vmatpush.msra.mxu0 0.0
    %189 = vmatpush.msra.mxu0 %v169
    %190 = vmatpush.msra.mxu0 %v168
    %191 = vmatpush.msra.mxu0 %v167
    %192 = vmatpush.msra.mxu0 %v166
    %193 = vmatmul.f32.gmra.mxu0 %v175
    %v194 = vpop.f32.mrf.mxu0
    %v195 = vadd.f32 0.0, %v194
    %196 = vdwg.mxu0
    %v197 = vld [vmem:[#allocation2] sm:$0xff]
    %v198 = vadd.f32 %v197, %v195
    %v199 = vxor.u32 %v198, 2147483648
    %v200 = vmul.f32 %v199, 1.442695
    %v201 = vpow.pop %v200
    %v202 = vadd.f32 %v201, 1.0
    %v203 = vrcp.pop %v202
    %v204 = vmul.f32 %v202, %v203
    %v205 = vsub.f32 1.0, %v204
    %v206 = vmul.f32 %v203, %v205
    %v207 = vadd.f32 %v203, %v206
    %vm208 = vweird.f32 %v202
    %vm209 = vweird.f32 %v203
    %vm210 = vmor %vm208, %vm209
    %v211 = vsel %vm210, %v203, %v207
    %v212 = vand.u32 2147483647, %v202
    %vm213 = vcmp.eq.f32.partialorder %v212, 8.507059e+37
    %v214 = vand.u32 %v202, 2147483648
    %v215 = vor.u32 1.1754944e-38, %v214
    %v216 = vsel %vm213, %v215, %v211
    %v217 = vmul.f32 1.0, %v216
    %218 = vrot.lane.b32.xlu0 %v172, 64
    %v219 = vpop.permute.xlu0 %218
    %v221 = vadd.f32 %v195, %v219
    %223 = vrot.lane.b32.xlu0 %v221, 64
    %v224 = vpop.permute.xlu0 %223
    %v226 = vmul.f32 %v217, %v224
    %228 = vrot.lane.b32.xlu0 %v226, 64
    %v229 = vpop.permute.xlu0 %228
    %v231 = vadd.f32 %v197, %v229
    %v232 = vtanh.pop %v231
    %v233 = vsub.f32 0.0, %v232
    %235 = vrot.lane.b32.xlu0 %v233, 96
    %v236 = vpop.permute.xlu0 %235
    %v238 = vmul.f32 %v217, %v236
    %240 = vrot.lane.b32.xlu0 %v238, 32
    %v241 = vpop.permute.xlu0 %240
    %v243 = vadd.f32 %v232, %v241
    %245 = vrot.lane.b32.xlu0 %v243, 64
    %v246 = vpop.permute.xlu0 %245
    %248 = vst.msk [vmem:[#allocation3] sm:$0xff] %vm173, %v246
    %v249 = vsel %vm173, %v246, 0
    %251 = vmatpush.msra.mxu0 0.0
    %252 = vmatpush.msra.mxu0 0.0
    %253 = vmatpush.msra.mxu0 0.0
    %254 = vmatpush.msra.mxu0 0.0
    %255 = vmatpush.msra.mxu0 0.0
    %256 = vmatpush.msra.mxu0 0.0
    %257 = vmatpush.msra.mxu0 0.0
    %258 = vmatpush.msra.mxu0 0.0
    %259 = vmatpush.msra.mxu0 0.0
    %260 = vmatpush.msra.mxu0 0.0
    %261 = vmatpush.msra.mxu0 0.0
    %262 = vmatpush.msra.mxu0 0.0
    %263 = vmatpush.msra.mxu0 %v169
    %264 = vmatpush.msra.mxu0 %v168
    %265 = vmatpush.msra.mxu0 %v167
    %266 = vmatpush.msra.mxu0 %v166
    %267 = vmatmul.f32.gmra.mxu0 %v249
    %v268 = vpop.f32.mrf.mxu0
    %v269 = vadd.f32 0.0, %v268
    %270 = vdwg.mxu0
    %s271 = scalar_lea.vmem [#allocation2], 8
    %v272 = vld [vmem:[%s271] sm:$0xff]
    %v273 = vadd.f32 %v272, %v269
    %v274 = vxor.u32 %v273, 2147483648
    %v275 = vmul.f32 %v274, 1.442695
    %v276 = vpow.pop %v275
    %v277 = vadd.f32 %v276, 1.0
    %v278 = vrcp.pop %v277
    %v279 = vmul.f32 %v277, %v278
    %v280 = vsub.f32 1.0, %v279
    %v281 = vmul.f32 %v278, %v280
    %v282 = vadd.f32 %v278, %v281
    %vm283 = vweird.f32 %v277
    %vm284 = vweird.f32 %v278
    %vm285 = vmor %vm283, %vm284
    %v286 = vsel %vm285, %v278, %v282
    %v287 = vand.u32 2147483647, %v277
    %vm288 = vcmp.eq.f32.partialorder %v287, 8.507059e+37
    %v289 = vand.u32 %v277, 2147483648
    %v290 = vor.u32 1.1754944e-38, %v289
    %v291 = vsel %vm288, %v290, %v286
    %v292 = vmul.f32 1.0, %v291
    %v293 = vadd.f32 %v269, %v219
    %295 = vrot.lane.b32.xlu0 %v293, 64
    %v296 = vpop.permute.xlu0 %295
    %v298 = vmul.f32 %v292, %v296
    %300 = vrot.lane.b32.xlu0 %v298, 64
    %v301 = vpop.permute.xlu0 %300
    %v303 = vadd.f32 %v272, %v301
    %v304 = vtanh.pop %v303
    %v305 = vsub.f32 %v243, %v304
    %307 = vrot.lane.b32.xlu0 %v305, 96
    %v308 = vpop.permute.xlu0 %307
    %v310 = vmul.f32 %v292, %v308
    %312 = vrot.lane.b32.xlu0 %v310, 32
    %v313 = vpop.permute.xlu0 %312
    %v315 = vadd.f32 %v304, %v313
    %317 = vrot.lane.b32.xlu0 %v315, 64
    %v318 = vpop.permute.xlu0 %317
    %s320 = scalar_lea.vmem [#allocation3], 8
    %321 = vst.msk [vmem:[%s320] sm:$0xff] %vm173, %v318
    %v322 = vsel %vm173, %v318, 0
    %324 = vmatpush.msra.mxu0 0.0
    %325 = vmatpush.msra.mxu0 0.0
    %326 = vmatpush.msra.mxu0 0.0
    %327 = vmatpush.msra.mxu0 0.0
    %328 = vmatpush.msra.mxu0 0.0
    %329 = vmatpush.msra.mxu0 0.0
    %330 = vmatpush.msra.mxu0 0.0
    %331 = vmatpush.msra.mxu0 0.0
    %332 = vmatpush.msra.mxu0 0.0
    %333 = vmatpush.msra.mxu0 0.0
    %334 = vmatpush.msra.mxu0 0.0
    %335 = vmatpush.msra.mxu0 0.0
    %336 = vmatpush.msra.mxu0 %v169
    %337 = vmatpush.msra.mxu0 %v168
    %338 = vmatpush.msra.mxu0 %v167
    %339 = vmatpush.msra.mxu0 %v166
    %340 = vmatmul.f32.gmra.mxu0 %v322
    %v341 = vpop.f32.mrf.mxu0
    %v342 = vadd.f32 0.0, %v341
    %343 = vdwg.mxu0
    %s344 = scalar_lea.vmem [#allocation2], 16
    %v345 = vld [vmem:[%s344] sm:$0xff]
    %v346 = vadd.f32 %v345, %v342
    %v347 = vxor.u32 %v346, 2147483648
    %v348 = vmul.f32 %v347, 1.442695
    %v349 = vpow.pop %v348
    %v350 = vadd.f32 %v349, 1.0
    %v351 = vrcp.pop %v350
    %v352 = vmul.f32 %v350, %v351
    %v353 = vsub.f32 1.0, %v352
    %v354 = vmul.f32 %v351, %v353
    %v355 = vadd.f32 %v351, %v354
    %vm356 = vweird.f32 %v350
    %vm357 = vweird.f32 %v351
    %vm358 = vmor %vm356, %vm357
    %v359 = vsel %vm358, %v351, %v355
    %v360 = vand.u32 2147483647, %v350
    %vm361 = vcmp.eq.f32.partialorder %v360, 8.507059e+37
    %v362 = vand.u32 %v350, 2147483648
    %v363 = vor.u32 1.1754944e-38, %v362
    %v364 = vsel %vm361, %v363, %v359
    %v365 = vmul.f32 1.0, %v364
    %v366 = vadd.f32 %v342, %v219
    %368 = vrot.lane.b32.xlu0 %v366, 64
    %v369 = vpop.permute.xlu0 %368
    %v371 = vmul.f32 %v365, %v369
    %373 = vrot.lane.b32.xlu0 %v371, 64
    %v374 = vpop.permute.xlu0 %373
    %v376 = vadd.f32 %v345, %v374
    %v377 = vtanh.pop %v376
    %v378 = vsub.f32 %v315, %v377
    %380 = vrot.lane.b32.xlu0 %v378, 96
    %v381 = vpop.permute.xlu0 %380
    %v383 = vmul.f32 %v365, %v381
    %385 = vrot.lane.b32.xlu0 %v383, 32
    %v386 = vpop.permute.xlu0 %385
    %v388 = vadd.f32 %v377, %v386
    %390 = vrot.lane.b32.xlu0 %v388, 64
    %v391 = vpop.permute.xlu0 %390
    %s393 = scalar_lea.vmem [#allocation3], 16
    %394 = vst.msk [vmem:[%s393] sm:$0xff] %vm173, %v391
    %v395 = vsel %vm173, %v391, 0
    %397 = vmatpush.msra.mxu0 0.0
    %398 = vmatpush.msra.mxu0 0.0
    %399 = vmatpush.msra.mxu0 0.0
    %400 = vmatpush.msra.mxu0 0.0
    %401 = vmatpush.msra.mxu0 0.0
    %402 = vmatpush.msra.mxu0 0.0
    %403 = vmatpush.msra.mxu0 0.0
    %404 = vmatpush.msra.mxu0 0.0
    %405 = vmatpush.msra.mxu0 0.0
    %406 = vmatpush.msra.mxu0 0.0
    %407 = vmatpush.msra.mxu0 0.0
    %408 = vmatpush.msra.mxu0 0.0
    %409 = vmatpush.msra.mxu0 %v169
    %410 = vmatpush.msra.mxu0 %v168
    %411 = vmatpush.msra.mxu0 %v167
    %412 = vmatpush.msra.mxu0 %v166
    %413 = vmatmul.f32.gmra.mxu0 %v395
    %v414 = vpop.f32.mrf.mxu0
    %v415 = vadd.f32 0.0, %v414
    %416 = vdwg.mxu0
    %s417 = scalar_lea.vmem [#allocation2], 24
    %v418 = vld [vmem:[%s417] sm:$0xff]
    %v419 = vadd.f32 %v418, %v415
    %v420 = vxor.u32 %v419, 2147483648
    %v421 = vmul.f32 %v420, 1.442695
    %v422 = vpow.pop %v421
    %v423 = vadd.f32 %v422, 1.0
    %v424 = vrcp.pop %v423
    %v425 = vmul.f32 %v423, %v424
    %v426 = vsub.f32 1.0, %v425
    %v427 = vmul.f32 %v424, %v426
    %v428 = vadd.f32 %v424, %v427
    %vm429 = vweird.f32 %v423
    %vm430 = vweird.f32 %v424
    %vm431 = vmor %vm429, %vm430
    %v432 = vsel %vm431, %v424, %v428
    %v433 = vand.u32 2147483647, %v423
    %vm434 = vcmp.eq.f32.partialorder %v433, 8.507059e+37
    %v435 = vand.u32 %v423, 2147483648
    %v436 = vor.u32 1.1754944e-38, %v435
    %v437 = vsel %vm434, %v436, %v432
    %v438 = vmul.f32 1.0, %v437
    %v439 = vadd.f32 %v415, %v219
    %441 = vrot.lane.b32.xlu0 %v439, 64
    %v442 = vpop.permute.xlu0 %441
    %v444 = vmul.f32 %v438, %v442
    %446 = vrot.lane.b32.xlu0 %v444, 64
    %v447 = vpop.permute.xlu0 %446
    %v449 = vadd.f32 %v418, %v447
    %v450 = vtanh.pop %v449
    %v451 = vsub.f32 %v388, %v450
    %453 = vrot.lane.b32.xlu0 %v451, 96
    %v454 = vpop.permute.xlu0 %453
    %v456 = vmul.f32 %v438, %v454
    %458 = vrot.lane.b32.xlu0 %v456, 32
    %v459 = vpop.permute.xlu0 %458
    %v461 = vadd.f32 %v450, %v459
    %463 = vrot.lane.b32.xlu0 %v461, 64
    %v464 = vpop.permute.xlu0 %463
    %s466 = scalar_lea.vmem [#allocation3], 24
    %467 = vst.msk [vmem:[%s466] sm:$0xff] %vm173, %v464
    %v468 = vsel %vm173, %v464, 0
    %470 = vmatpush.msra.mxu0 0.0
    %471 = vmatpush.msra.mxu0 0.0
    %472 = vmatpush.msra.mxu0 0.0
    %473 = vmatpush.msra.mxu0 0.0
    %474 = vmatpush.msra.mxu0 0.0
    %475 = vmatpush.msra.mxu0 0.0
    %476 = vmatpush.msra.mxu0 0.0
    %477 = vmatpush.msra.mxu0 0.0
    %478 = vmatpush.msra.mxu0 0.0
    %479 = vmatpush.msra.mxu0 0.0
    %480 = vmatpush.msra.mxu0 0.0
    %481 = vmatpush.msra.mxu0 0.0
    %482 = vmatpush.msra.mxu0 %v169
    %483 = vmatpush.msra.mxu0 %v168
    %484 = vmatpush.msra.mxu0 %v167
    %485 = vmatpush.msra.mxu0 %v166
    %486 = vmatmul.f32.gmra.mxu0 %v468
    %v487 = vpop.f32.mrf.mxu0
    %v488 = vadd.f32 0.0, %v487
    %489 = vdwg.mxu0
    %s490 = scalar_lea.vmem [#allocation2], 32
    %v491 = vld [vmem:[%s490] sm:$0xff]
    %v492 = vadd.f32 %v491, %v488
    %v493 = vxor.u32 %v492, 2147483648
    %v494 = vmul.f32 %v493, 1.442695
    %v495 = vpow.pop %v494
    %v496 = vadd.f32 %v495, 1.0
    %v497 = vrcp.pop %v496
    %v498 = vmul.f32 %v496, %v497
    %v499 = vsub.f32 1.0, %v498
    %v500 = vmul.f32 %v497, %v499
    %v501 = vadd.f32 %v497, %v500
    %vm502 = vweird.f32 %v496
    %vm503 = vweird.f32 %v497
    %vm504 = vmor %vm502, %vm503
    %v505 = vsel %vm504, %v497, %v501
    %v506 = vand.u32 2147483647, %v496
    %vm507 = vcmp.eq.f32.partialorder %v506, 8.507059e+37
    %v508 = vand.u32 %v496, 2147483648
    %v509 = vor.u32 1.1754944e-38, %v508
    %v510 = vsel %vm507, %v509, %v505
    %v511 = vmul.f32 1.0, %v510
    %v512 = vadd.f32 %v488, %v219
    %514 = vrot.lane.b32.xlu0 %v512, 64
    %v515 = vpop.permute.xlu0 %514
    %v517 = vmul.f32 %v511, %v515
    %519 = vrot.lane.b32.xlu0 %v517, 64
    %v520 = vpop.permute.xlu0 %519
    %v522 = vadd.f32 %v491, %v520
    %v523 = vtanh.pop %v522
    %v524 = vsub.f32 %v461, %v523
    %526 = vrot.lane.b32.xlu0 %v524, 96
    %v527 = vpop.permute.xlu0 %526
    %v529 = vmul.f32 %v511, %v527
    %531 = vrot.lane.b32.xlu0 %v529, 32
    %v532 = vpop.permute.xlu0 %531
    %v534 = vadd.f32 %v523, %v532
    %536 = vrot.lane.b32.xlu0 %v534, 64
    %v537 = vpop.permute.xlu0 %536
    %s539 = scalar_lea.vmem [#allocation3], 32
    %540 = vst.msk [vmem:[%s539] sm:$0xff] %vm173, %v537
    %v541 = vsel %vm173, %v537, 0
    %543 = vmatpush.msra.mxu0 0.0
    %544 = vmatpush.msra.mxu0 0.0
    %545 = vmatpush.msra.mxu0 0.0
    %546 = vmatpush.msra.mxu0 0.0
    %547 = vmatpush.msra.mxu0 0.0
    %548 = vmatpush.msra.mxu0 0.0
    %549 = vmatpush.msra.mxu0 0.0
    %550 = vmatpush.msra.mxu0 0.0
    %551 = vmatpush.msra.mxu0 0.0
    %552 = vmatpush.msra.mxu0 0.0
    %553 = vmatpush.msra.mxu0 0.0
    %554 = vmatpush.msra.mxu0 0.0
    %555 = vmatpush.msra.mxu0 %v169
    %556 = vmatpush.msra.mxu0 %v168
    %557 = vmatpush.msra.mxu0 %v167
    %558 = vmatpush.msra.mxu0 %v166
    %559 = vmatmul.f32.gmra.mxu0 %v541
    %v560 = vpop.f32.mrf.mxu0
    %v561 = vadd.f32 0.0, %v560
    %562 = vdwg.mxu0
    %s563 = scalar_lea.vmem [#allocation2], 40
    %v564 = vld [vmem:[%s563] sm:$0xff]
    %v565 = vadd.f32 %v564, %v561
    %v566 = vxor.u32 %v565, 2147483648
    %v567 = vmul.f32 %v566, 1.442695
    %v568 = vpow.pop %v567
    %v569 = vadd.f32 %v568, 1.0
    %v570 = vrcp.pop %v569
    %v571 = vmul.f32 %v569, %v570
    %v572 = vsub.f32 1.0, %v571
    %v573 = vmul.f32 %v570, %v572
    %v574 = vadd.f32 %v570, %v573
    %vm575 = vweird.f32 %v569
    %vm576 = vweird.f32 %v570
    %vm577 = vmor %vm575, %vm576
    %v578 = vsel %vm577, %v570, %v574
    %v579 = vand.u32 2147483647, %v569
    %vm580 = vcmp.eq.f32.partialorder %v579, 8.507059e+37
    %v581 = vand.u32 %v569, 2147483648
    %v582 = vor.u32 1.1754944e-38, %v581
    %v583 = vsel %vm580, %v582, %v578
    %v584 = vmul.f32 1.0, %v583
    %v585 = vadd.f32 %v561, %v219
    %587 = vrot.lane.b32.xlu0 %v585, 64
    %v588 = vpop.permute.xlu0 %587
    %v590 = vmul.f32 %v584, %v588
    %592 = vrot.lane.b32.xlu0 %v590, 64
    %v593 = vpop.permute.xlu0 %592
    %v595 = vadd.f32 %v564, %v593
    %v596 = vtanh.pop %v595
    %v597 = vsub.f32 %v534, %v596
    %599 = vrot.lane.b32.xlu0 %v597, 96
    %v600 = vpop.permute.xlu0 %599
    %v602 = vmul.f32 %v584, %v600
    %604 = vrot.lane.b32.xlu0 %v602, 32
    %v605 = vpop.permute.xlu0 %604
    %v607 = vadd.f32 %v596, %v605
    %609 = vrot.lane.b32.xlu0 %v607, 64
    %v610 = vpop.permute.xlu0 %609
    %s612 = scalar_lea.vmem [#allocation3], 40
    %613 = vst.msk [vmem:[%s612] sm:$0xff] %vm173, %v610
    %v614 = vsel %vm173, %v610, 0
    %616 = vmatpush.msra.mxu0 0.0
    %617 = vmatpush.msra.mxu0 0.0
    %618 = vmatpush.msra.mxu0 0.0
    %619 = vmatpush.msra.mxu0 0.0
    %620 = vmatpush.msra.mxu0 0.0
    %621 = vmatpush.msra.mxu0 0.0
    %622 = vmatpush.msra.mxu0 0.0
    %623 = vmatpush.msra.mxu0 0.0
    %624 = vmatpush.msra.mxu0 0.0
    %625 = vmatpush.msra.mxu0 0.0
    %626 = vmatpush.msra.mxu0 0.0
    %627 = vmatpush.msra.mxu0 0.0
    %628 = vmatpush.msra.mxu0 %v169
    %629 = vmatpush.msra.mxu0 %v168
    %630 = vmatpush.msra.mxu0 %v167
    %631 = vmatpush.msra.mxu0 %v166
    %632 = vmatmul.f32.gmra.mxu0 %v614
    %v633 = vpop.f32.mrf.mxu0
    %v634 = vadd.f32 0.0, %v633
    %635 = vdwg.mxu0
    %s636 = scalar_lea.vmem [#allocation2], 48
    %v637 = vld [vmem:[%s636] sm:$0xff]
    %v638 = vadd.f32 %v637, %v634
    %v639 = vxor.u32 %v638, 2147483648
    %v640 = vmul.f32 %v639, 1.442695
    %v641 = vpow.pop %v640
    %v642 = vadd.f32 %v641, 1.0
    %v643 = vrcp.pop %v642
    %v644 = vmul.f32 %v642, %v643
    %v645 = vsub.f32 1.0, %v644
    %v646 = vmul.f32 %v643, %v645
    %v647 = vadd.f32 %v643, %v646
    %vm648 = vweird.f32 %v642
    %vm649 = vweird.f32 %v643
    %vm650 = vmor %vm648, %vm649
    %v651 = vsel %vm650, %v643, %v647
    %v652 = vand.u32 2147483647, %v642
    %vm653 = vcmp.eq.f32.partialorder %v652, 8.507059e+37
    %v654 = vand.u32 %v642, 2147483648
    %v655 = vor.u32 1.1754944e-38, %v654
    %v656 = vsel %vm653, %v655, %v651
    %v657 = vmul.f32 1.0, %v656
    %v658 = vadd.f32 %v634, %v219
    %660 = vrot.lane.b32.xlu0 %v658, 64
    %v661 = vpop.permute.xlu0 %660
    %v663 = vmul.f32 %v657, %v661
    %665 = vrot.lane.b32.xlu0 %v663, 64
    %v666 = vpop.permute.xlu0 %665
    %v668 = vadd.f32 %v637, %v666
    %v669 = vtanh.pop %v668
    %v670 = vsub.f32 %v607, %v669
    %672 = vrot.lane.b32.xlu0 %v670, 96
    %v673 = vpop.permute.xlu0 %672
    %v675 = vmul.f32 %v657, %v673
    %677 = vrot.lane.b32.xlu0 %v675, 32
    %v678 = vpop.permute.xlu0 %677
    %v680 = vadd.f32 %v669, %v678
    %682 = vrot.lane.b32.xlu0 %v680, 64
    %v683 = vpop.permute.xlu0 %682
    %s685 = scalar_lea.vmem [#allocation3], 48
    %686 = vst.msk [vmem:[%s685] sm:$0xff] %vm173, %v683
    %v687 = vsel %vm173, %v683, 0
    %689 = vmatpush.msra.mxu0 0.0
    %690 = vmatpush.msra.mxu0 0.0
    %691 = vmatpush.msra.mxu0 0.0
    %692 = vmatpush.msra.mxu0 0.0
    %693 = vmatpush.msra.mxu0 0.0
    %694 = vmatpush.msra.mxu0 0.0
    %695 = vmatpush.msra.mxu0 0.0
    %696 = vmatpush.msra.mxu0 0.0
    %697 = vmatpush.msra.mxu0 0.0
    %698 = vmatpush.msra.mxu0 0.0
    %699 = vmatpush.msra.mxu0 0.0
    %700 = vmatpush.msra.mxu0 0.0
    %701 = vmatpush.msra.mxu0 %v169
    %702 = vmatpush.msra.mxu0 %v168
    %703 = vmatpush.msra.mxu0 %v167
    %704 = vmatpush.msra.mxu0 %v166
    %705 = vmatmul.f32.gmra.mxu0 %v687
    %v706 = vpop.f32.mrf.mxu0
    %v707 = vadd.f32 0.0, %v706
    %708 = vdwg.mxu0
    %s709 = scalar_lea.vmem [#allocation2], 56
    %v710 = vld [vmem:[%s709] sm:$0xff]
    %v711 = vadd.f32 %v710, %v707
    %v712 = vxor.u32 %v711, 2147483648
    %v713 = vmul.f32 %v712, 1.442695
    %v714 = vpow.pop %v713
    %v715 = vadd.f32 %v714, 1.0
    %v716 = vrcp.pop %v715
    %v717 = vmul.f32 %v715, %v716
    %v718 = vsub.f32 1.0, %v717
    %v719 = vmul.f32 %v716, %v718
    %v720 = vadd.f32 %v716, %v719
    %vm721 = vweird.f32 %v715
    %vm722 = vweird.f32 %v716
    %vm723 = vmor %vm721, %vm722
    %v724 = vsel %vm723, %v716, %v720
    %v725 = vand.u32 2147483647, %v715
    %vm726 = vcmp.eq.f32.partialorder %v725, 8.507059e+37
    %v727 = vand.u32 %v715, 2147483648
    %v728 = vor.u32 1.1754944e-38, %v727
    %v729 = vsel %vm726, %v728, %v724
    %v730 = vmul.f32 1.0, %v729
    %v731 = vadd.f32 %v707, %v219
    %733 = vrot.lane.b32.xlu0 %v731, 64
    %v734 = vpop.permute.xlu0 %733
    %v736 = vmul.f32 %v730, %v734
    %738 = vrot.lane.b32.xlu0 %v736, 64
    %v739 = vpop.permute.xlu0 %738
    %v741 = vadd.f32 %v710, %v739
    %v742 = vtanh.pop %v741
    %v743 = vsub.f32 %v680, %v742
    %745 = vrot.lane.b32.xlu0 %v743, 96
    %v746 = vpop.permute.xlu0 %745
    %v748 = vmul.f32 %v730, %v746
    %750 = vrot.lane.b32.xlu0 %v748, 32
    %v751 = vpop.permute.xlu0 %750
    %v753 = vadd.f32 %v742, %v751
    %755 = vrot.lane.b32.xlu0 %v753, 64
    %v756 = vpop.permute.xlu0 %755
    %s758 = scalar_lea.vmem [#allocation3], 56
    %759 = vst.msk [vmem:[%s758] sm:$0xff] %vm173, %v756
    %v760 = vld [vmem:[#allocation3] sm:$0xff]
    %v761 = vld [vmem:[#allocation3 + $0x8] sm:$0xff]
    %v762 = vld [vmem:[#allocation3 + $0x10] sm:$0xff]
    %v763 = vld [vmem:[#allocation3 + $0x18] sm:$0xff]
    %v764 = vld [vmem:[#allocation3 + $0x20] sm:$0xff]
    %v765 = vld [vmem:[#allocation3 + $0x28] sm:$0xff]
    %v766 = vld [vmem:[#allocation3 + $0x30] sm:$0xff]
    %v767 = vld [vmem:[#allocation3 + $0x38] sm:$0xff]
    %v768 = vld [vmem:[#allocation7] sm:$0xff]
    %v769 = vld [vmem:[#allocation7 + $0x8] sm:$0xff]
    %v770 = vld [vmem:[#allocation7 + $0x10] sm:$0xff]
    %v771 = vld [vmem:[#allocation7 + $0x18] sm:$0xff]
    %s772 = scalar_lea.vmem %s4, 1
    %v773 = vld [vmem:[%s772] sm:$0x1]
    %v775 = vperm.slane %v773, 0
    %v778 = vsel %vm173, %v760, 0
    %v781 = vsel %vm173, %v761, 0
    %v784 = vsel %vm173, %v762, 0
    %v787 = vsel %vm173, %v763, 0
    %v790 = vsel %vm173, %v764, 0
    %v793 = vsel %vm173, %v765, 0
    %v796 = vsel %vm173, %v766, 0
    %v799 = vsel %vm173, %v767, 0
    %801 = vmatpush.msra.mxu0 0.0
    %802 = vmatpush.msra.mxu0 0.0
    %803 = vmatpush.msra.mxu0 0.0
    %804 = vmatpush.msra.mxu0 0.0
    %805 = vmatpush.msra.mxu0 0.0
    %806 = vmatpush.msra.mxu0 0.0
    %807 = vmatpush.msra.mxu0 0.0
    %808 = vmatpush.msra.mxu0 0.0
    %809 = vmatpush.msra.mxu0 0.0
    %810 = vmatpush.msra.mxu0 0.0
    %811 = vmatpush.msra.mxu0 0.0
    %812 = vmatpush.msra.mxu0 0.0
    %813 = vmatpush.msra.mxu0 %v771
    %814 = vmatpush.msra.mxu0 %v770
    %815 = vmatpush.msra.mxu0 %v769
    %816 = vmatpush.msra.mxu0 %v768
    %817 = vmatmul.f32.gmra.mxu0 %v778
    %v818 = vpop.f32.mrf.mxu0
    %v819 = vadd.f32 %v775, %v818
    %820 = vmatmul.f32.gmra.mxu0 %v781
    %v821 = vpop.f32.mrf.mxu0
    %v822 = vadd.f32 %v775, %v821
    %823 = vmatmul.f32.gmra.mxu0 %v784
    %v824 = vpop.f32.mrf.mxu0
    %v825 = vadd.f32 %v775, %v824
    %826 = vmatmul.f32.gmra.mxu0 %v787
    %v827 = vpop.f32.mrf.mxu0
    %v828 = vadd.f32 %v775, %v827
    %829 = vmatmul.f32.gmra.mxu0 %v790
    %v830 = vpop.f32.mrf.mxu0
    %v831 = vadd.f32 %v775, %v830
    %832 = vmatmul.f32.gmra.mxu0 %v793
    %v833 = vpop.f32.mrf.mxu0
    %v834 = vadd.f32 %v775, %v833
    %835 = vmatmul.f32.gmra.mxu0 %v796
    %v836 = vpop.f32.mrf.mxu0
    %v837 = vadd.f32 %v775, %v836
    %838 = vmatmul.f32.gmra.mxu0 %v799
    %v839 = vpop.f32.mrf.mxu0
    %v840 = vadd.f32 %v775, %v839
    %841 = vdwg.mxu0
    %842 = vst.msk [vmem:[#allocation2] sm:$0xff] %vm157, %v819
    %843 = vst.msk [vmem:[#allocation2 + $0x8] sm:$0xff] %vm157, %v822
    %844 = vst.msk [vmem:[#allocation2 + $0x10] sm:$0xff] %vm157, %v825
    %845 = vst.msk [vmem:[#allocation2 + $0x18] sm:$0xff] %vm157, %v828
    %846 = vst.msk [vmem:[#allocation2 + $0x20] sm:$0xff] %vm157, %v831
    %847 = vst.msk [vmem:[#allocation2 + $0x28] sm:$0xff] %vm157, %v834
    %848 = vst.msk [vmem:[#allocation2 + $0x30] sm:$0xff] %vm157, %v837
    %849 = vst.msk [vmem:[#allocation2 + $0x38] sm:$0xff] %vm157, %v840
    %s850 = scalar_lea.vmem [#allocation9], 32
    %v851 = vld [vmem:[%s850] sm:$0xff]
    %v852 = vld [vmem:[%s850 + $0x8] sm:$0xff]
    %v853 = vld [vmem:[%s850 + $0x10] sm:$0xff]
    %v854 = vld [vmem:[%s850 + $0x18] sm:$0xff]
    %s855 = scalar_lea.vmem %s5, 1
    %v856 = vld [vmem:[%s855] sm:$0x1]
    %v858 = vperm.slane %v856, 0
    %859 = vmatpush.msra.mxu0 0.0
    %860 = vmatpush.msra.mxu0 0.0
    %861 = vmatpush.msra.mxu0 0.0
    %862 = vmatpush.msra.mxu0 0.0
    %863 = vmatpush.msra.mxu0 0.0
    %864 = vmatpush.msra.mxu0 0.0
    %865 = vmatpush.msra.mxu0 0.0
    %866 = vmatpush.msra.mxu0 0.0
    %867 = vmatpush.msra.mxu0 0.0
    %868 = vmatpush.msra.mxu0 0.0
    %869 = vmatpush.msra.mxu0 0.0
    %870 = vmatpush.msra.mxu0 0.0
    %871 = vmatpush.msra.mxu0 %v854
    %872 = vmatpush.msra.mxu0 %v853
    %873 = vmatpush.msra.mxu0 %v852
    %874 = vmatpush.msra.mxu0 %v851
    %875 = vmatmul.f32.gmra.mxu0 %v175
    %v876 = vpop.f32.mrf.mxu0
    %v877 = vadd.f32 0.0, %v876
    %878 = vdwg.mxu0
    %v879 = vld [vmem:[#allocation2] sm:$0xff]
    %v880 = vadd.f32 %v879, %v877
    %v881 = vxor.u32 %v880, 2147483648
    %v882 = vmul.f32 %v881, 1.442695
    %v883 = vpow.pop %v882
    %v884 = vadd.f32 %v883, 1.0
    %v885 = vrcp.pop %v884
    %v886 = vmul.f32 %v884, %v885
    %v887 = vsub.f32 1.0, %v886
    %v888 = vmul.f32 %v885, %v887
    %v889 = vadd.f32 %v885, %v888
    %vm890 = vweird.f32 %v884
    %vm891 = vweird.f32 %v885
    %vm892 = vmor %vm890, %vm891
    %v893 = vsel %vm892, %v885, %v889
    %v894 = vand.u32 2147483647, %v884
    %vm895 = vcmp.eq.f32.partialorder %v894, 8.507059e+37
    %v896 = vand.u32 %v884, 2147483648
    %v897 = vor.u32 1.1754944e-38, %v896
    %v898 = vsel %vm895, %v897, %v893
    %v899 = vmul.f32 1.0, %v898
    %900 = vrot.lane.b32.xlu0 %v858, 64
    %v901 = vpop.permute.xlu0 %900
    %v903 = vadd.f32 %v877, %v901
    %905 = vrot.lane.b32.xlu0 %v903, 64
    %v906 = vpop.permute.xlu0 %905
    %v908 = vmul.f32 %v899, %v906
    %910 = vrot.lane.b32.xlu0 %v908, 64
    %v911 = vpop.permute.xlu0 %910
    %v913 = vadd.f32 %v879, %v911
    %v914 = vtanh.pop %v913
    %v915 = vsub.f32 0.0, %v914
    %917 = vrot.lane.b32.xlu0 %v915, 96
    %v918 = vpop.permute.xlu0 %917
    %v920 = vmul.f32 %v899, %v918
    %922 = vrot.lane.b32.xlu0 %v920, 32
    %v923 = vpop.permute.xlu0 %922
    %v925 = vadd.f32 %v914, %v923
    %927 = vrot.lane.b32.xlu0 %v925, 64
    %v928 = vpop.permute.xlu0 %927
    %930 = vst.msk [vmem:[#allocation3] sm:$0xff] %vm173, %v928
    %v931 = vsel %vm173, %v928, 0
    %933 = vmatpush.msra.mxu0 0.0
    %934 = vmatpush.msra.mxu0 0.0
    %935 = vmatpush.msra.mxu0 0.0
    %936 = vmatpush.msra.mxu0 0.0
    %937 = vmatpush.msra.mxu0 0.0
    %938 = vmatpush.msra.mxu0 0.0
    %939 = vmatpush.msra.mxu0 0.0
    %940 = vmatpush.msra.mxu0 0.0
    %941 = vmatpush.msra.mxu0 0.0
    %942 = vmatpush.msra.mxu0 0.0
    %943 = vmatpush.msra.mxu0 0.0
    %944 = vmatpush.msra.mxu0 0.0
    %945 = vmatpush.msra.mxu0 %v854
    %946 = vmatpush.msra.mxu0 %v853
    %947 = vmatpush.msra.mxu0 %v852
    %948 = vmatpush.msra.mxu0 %v851
    %949 = vmatmul.f32.gmra.mxu0 %v931
    %v950 = vpop.f32.mrf.mxu0
    %v951 = vadd.f32 0.0, %v950
    %952 = vdwg.mxu0
    %v953 = vld [vmem:[%s271] sm:$0xff]
    %v954 = vadd.f32 %v953, %v951
    %v955 = vxor.u32 %v954, 2147483648
    %v956 = vmul.f32 %v955, 1.442695
    %v957 = vpow.pop %v956
    %v958 = vadd.f32 %v957, 1.0
    %v959 = vrcp.pop %v958
    %v960 = vmul.f32 %v958, %v959
    %v961 = vsub.f32 1.0, %v960
    %v962 = vmul.f32 %v959, %v961
    %v963 = vadd.f32 %v959, %v962
    %vm964 = vweird.f32 %v958
    %vm965 = vweird.f32 %v959
    %vm966 = vmor %vm964, %vm965
    %v967 = vsel %vm966, %v959, %v963
    %v968 = vand.u32 2147483647, %v958
    %vm969 = vcmp.eq.f32.partialorder %v968, 8.507059e+37
    %v970 = vand.u32 %v958, 2147483648
    %v971 = vor.u32 1.1754944e-38, %v970
    %v972 = vsel %vm969, %v971, %v967
    %v973 = vmul.f32 1.0, %v972
    %v974 = vadd.f32 %v951, %v901
    %976 = vrot.lane.b32.xlu0 %v974, 64
    %v977 = vpop.permute.xlu0 %976
    %v979 = vmul.f32 %v973, %v977
    %981 = vrot.lane.b32.xlu0 %v979, 64
    %v982 = vpop.permute.xlu0 %981
    %v984 = vadd.f32 %v953, %v982
    %v985 = vtanh.pop %v984
    %v986 = vsub.f32 %v925, %v985
    %988 = vrot.lane.b32.xlu0 %v986, 96
    %v989 = vpop.permute.xlu0 %988
    %v991 = vmul.f32 %v973, %v989
    %993 = vrot.lane.b32.xlu0 %v991, 32
    %v994 = vpop.permute.xlu0 %993
    %v996 = vadd.f32 %v985, %v994
    %998 = vrot.lane.b32.xlu0 %v996, 64
    %v999 = vpop.permute.xlu0 %998
    %1001 = vst.msk [vmem:[%s320] sm:$0xff] %vm173, %v999
    %v1002 = vsel %vm173, %v999, 0
    %1004 = vmatpush.msra.mxu0 0.0
    %1005 = vmatpush.msra.mxu0 0.0
    %1006 = vmatpush.msra.mxu0 0.0
    %1007 = vmatpush.msra.mxu0 0.0
    %1008 = vmatpush.msra.mxu0 0.0
    %1009 = vmatpush.msra.mxu0 0.0
    %1010 = vmatpush.msra.mxu0 0.0
    %1011 = vmatpush.msra.mxu0 0.0
    %1012 = vmatpush.msra.mxu0 0.0
    %1013 = vmatpush.msra.mxu0 0.0
    %1014 = vmatpush.msra.mxu0 0.0
    %1015 = vmatpush.msra.mxu0 0.0
    %1016 = vmatpush.msra.mxu0 %v854
    %1017 = vmatpush.msra.mxu0 %v853
    %1018 = vmatpush.msra.mxu0 %v852
    %1019 = vmatpush.msra.mxu0 %v851
    %1020 = vmatmul.f32.gmra.mxu0 %v1002
    %v1021 = vpop.f32.mrf.mxu0
    %v1022 = vadd.f32 0.0, %v1021
    %1023 = vdwg.mxu0
    %v1024 = vld [vmem:[%s344] sm:$0xff]
    %v1025 = vadd.f32 %v1024, %v1022
    %v1026 = vxor.u32 %v1025, 2147483648
    %v1027 = vmul.f32 %v1026, 1.442695
    %v1028 = vpow.pop %v1027
    %v1029 = vadd.f32 %v1028, 1.0
    %v1030 = vrcp.pop %v1029
    %v1031 = vmul.f32 %v1029, %v1030
    %v1032 = vsub.f32 1.0, %v1031
    %v1033 = vmul.f32 %v1030, %v1032
    %v1034 = vadd.f32 %v1030, %v1033
    %vm1035 = vweird.f32 %v1029
    %vm1036 = vweird.f32 %v1030
    %vm1037 = vmor %vm1035, %vm1036
    %v1038 = vsel %vm1037, %v1030, %v1034
    %v1039 = vand.u32 2147483647, %v1029
    %vm1040 = vcmp.eq.f32.partialorder %v1039, 8.507059e+37
    %v1041 = vand.u32 %v1029, 2147483648
    %v1042 = vor.u32 1.1754944e-38, %v1041
    %v1043 = vsel %vm1040, %v1042, %v1038
    %v1044 = vmul.f32 1.0, %v1043
    %v1045 = vadd.f32 %v1022, %v901
    %1047 = vrot.lane.b32.xlu0 %v1045, 64
    %v1048 = vpop.permute.xlu0 %1047
    %v1050 = vmul.f32 %v1044, %v1048
    %1052 = vrot.lane.b32.xlu0 %v1050, 64
    %v1053 = vpop.permute.xlu0 %1052
    %v1055 = vadd.f32 %v1024, %v1053
    %v1056 = vtanh.pop %v1055
    %v1057 = vsub.f32 %v996, %v1056
    %1059 = vrot.lane.b32.xlu0 %v1057, 96
    %v1060 = vpop.permute.xlu0 %1059
    %v1062 = vmul.f32 %v1044, %v1060
    %1064 = vrot.lane.b32.xlu0 %v1062, 32
    %v1065 = vpop.permute.xlu0 %1064
    %v1067 = vadd.f32 %v1056, %v1065
    %1069 = vrot.lane.b32.xlu0 %v1067, 64
    %v1070 = vpop.permute.xlu0 %1069
    %1072 = vst.msk [vmem:[%s393] sm:$0xff] %vm173, %v1070
    %v1073 = vsel %vm173, %v1070, 0
    %1075 = vmatpush.msra.mxu0 0.0
    %1076 = vmatpush.msra.mxu0 0.0
    %1077 = vmatpush.msra.mxu0 0.0
    %1078 = vmatpush.msra.mxu0 0.0
    %1079 = vmatpush.msra.mxu0 0.0
    %1080 = vmatpush.msra.mxu0 0.0
    %1081 = vmatpush.msra.mxu0 0.0
    %1082 = vmatpush.msra.mxu0 0.0
    %1083 = vmatpush.msra.mxu0 0.0
    %1084 = vmatpush.msra.mxu0 0.0
    %1085 = vmatpush.msra.mxu0 0.0
    %1086 = vmatpush.msra.mxu0 0.0
    %1087 = vmatpush.msra.mxu0 %v854
    %1088 = vmatpush.msra.mxu0 %v853
    %1089 = vmatpush.msra.mxu0 %v852
    %1090 = vmatpush.msra.mxu0 %v851
    %1091 = vmatmul.f32.gmra.mxu0 %v1073
    %v1092 = vpop.f32.mrf.mxu0
    %v1093 = vadd.f32 0.0, %v1092
    %1094 = vdwg.mxu0
    %v1095 = vld [vmem:[%s417] sm:$0xff]
    %v1096 = vadd.f32 %v1095, %v1093
    %v1097 = vxor.u32 %v1096, 2147483648
    %v1098 = vmul.f32 %v1097, 1.442695
    %v1099 = vpow.pop %v1098
    %v1100 = vadd.f32 %v1099, 1.0
    %v1101 = vrcp.pop %v1100
    %v1102 = vmul.f32 %v1100, %v1101
    %v1103 = vsub.f32 1.0, %v1102
    %v1104 = vmul.f32 %v1101, %v1103
    %v1105 = vadd.f32 %v1101, %v1104
    %vm1106 = vweird.f32 %v1100
    %vm1107 = vweird.f32 %v1101
    %vm1108 = vmor %vm1106, %vm1107
    %v1109 = vsel %vm1108, %v1101, %v1105
    %v1110 = vand.u32 2147483647, %v1100
    %vm1111 = vcmp.eq.f32.partialorder %v1110, 8.507059e+37
    %v1112 = vand.u32 %v1100, 2147483648
    %v1113 = vor.u32 1.1754944e-38, %v1112
    %v1114 = vsel %vm1111, %v1113, %v1109
    %v1115 = vmul.f32 1.0, %v1114
    %v1116 = vadd.f32 %v1093, %v901
    %1118 = vrot.lane.b32.xlu0 %v1116, 64
    %v1119 = vpop.permute.xlu0 %1118
    %v1121 = vmul.f32 %v1115, %v1119
    %1123 = vrot.lane.b32.xlu0 %v1121, 64
    %v1124 = vpop.permute.xlu0 %1123
    %v1126 = vadd.f32 %v1095, %v1124
    %v1127 = vtanh.pop %v1126
    %v1128 = vsub.f32 %v1067, %v1127
    %1130 = vrot.lane.b32.xlu0 %v1128, 96
    %v1131 = vpop.permute.xlu0 %1130
    %v1133 = vmul.f32 %v1115, %v1131
    %1135 = vrot.lane.b32.xlu0 %v1133, 32
    %v1136 = vpop.permute.xlu0 %1135
    %v1138 = vadd.f32 %v1127, %v1136
    %1140 = vrot.lane.b32.xlu0 %v1138, 64
    %v1141 = vpop.permute.xlu0 %1140
    %1143 = vst.msk [vmem:[%s466] sm:$0xff] %vm173, %v1141
    %v1144 = vsel %vm173, %v1141, 0
    %1146 = vmatpush.msra.mxu0 0.0
    %1147 = vmatpush.msra.mxu0 0.0
    %1148 = vmatpush.msra.mxu0 0.0
    %1149 = vmatpush.msra.mxu0 0.0
    %1150 = vmatpush.msra.mxu0 0.0
    %1151 = vmatpush.msra.mxu0 0.0
    %1152 = vmatpush.msra.mxu0 0.0
    %1153 = vmatpush.msra.mxu0 0.0
    %1154 = vmatpush.msra.mxu0 0.0
    %1155 = vmatpush.msra.mxu0 0.0
    %1156 = vmatpush.msra.mxu0 0.0
    %1157 = vmatpush.msra.mxu0 0.0
    %1158 = vmatpush.msra.mxu0 %v854
    %1159 = vmatpush.msra.mxu0 %v853
    %1160 = vmatpush.msra.mxu0 %v852
    %1161 = vmatpush.msra.mxu0 %v851
    %1162 = vmatmul.f32.gmra.mxu0 %v1144
    %v1163 = vpop.f32.mrf.mxu0
    %v1164 = vadd.f32 0.0, %v1163
    %1165 = vdwg.mxu0
    %v1166 = vld [vmem:[%s490] sm:$0xff]
    %v1167 = vadd.f32 %v1166, %v1164
    %v1168 = vxor.u32 %v1167, 2147483648
    %v1169 = vmul.f32 %v1168, 1.442695
    %v1170 = vpow.pop %v1169
    %v1171 = vadd.f32 %v1170, 1.0
    %v1172 = vrcp.pop %v1171
    %v1173 = vmul.f32 %v1171, %v1172
    %v1174 = vsub.f32 1.0, %v1173
    %v1175 = vmul.f32 %v1172, %v1174
    %v1176 = vadd.f32 %v1172, %v1175
    %vm1177 = vweird.f32 %v1171
    %vm1178 = vweird.f32 %v1172
    %vm1179 = vmor %vm1177, %vm1178
    %v1180 = vsel %vm1179, %v1172, %v1176
    %v1181 = vand.u32 2147483647, %v1171
    %vm1182 = vcmp.eq.f32.partialorder %v1181, 8.507059e+37
    %v1183 = vand.u32 %v1171, 2147483648
    %v1184 = vor.u32 1.1754944e-38, %v1183
    %v1185 = vsel %vm1182, %v1184, %v1180
    %v1186 = vmul.f32 1.0, %v1185
    %v1187 = vadd.f32 %v1164, %v901
    %1189 = vrot.lane.b32.xlu0 %v1187, 64
    %v1190 = vpop.permute.xlu0 %1189
    %v1192 = vmul.f32 %v1186, %v1190
    %1194 = vrot.lane.b32.xlu0 %v1192, 64
    %v1195 = vpop.permute.xlu0 %1194
    %v1197 = vadd.f32 %v1166, %v1195
    %v1198 = vtanh.pop %v1197
    %v1199 = vsub.f32 %v1138, %v1198
    %1201 = vrot.lane.b32.xlu0 %v1199, 96
    %v1202 = vpop.permute.xlu0 %1201
    %v1204 = vmul.f32 %v1186, %v1202
    %1206 = vrot.lane.b32.xlu0 %v1204, 32
    %v1207 = vpop.permute.xlu0 %1206
    %v1209 = vadd.f32 %v1198, %v1207
    %1211 = vrot.lane.b32.xlu0 %v1209, 64
    %v1212 = vpop.permute.xlu0 %1211
    %1214 = vst.msk [vmem:[%s539] sm:$0xff] %vm173, %v1212
    %v1215 = vsel %vm173, %v1212, 0
    %1217 = vmatpush.msra.mxu0 0.0
    %1218 = vmatpush.msra.mxu0 0.0
    %1219 = vmatpush.msra.mxu0 0.0
    %1220 = vmatpush.msra.mxu0 0.0
    %1221 = vmatpush.msra.mxu0 0.0
    %1222 = vmatpush.msra.mxu0 0.0
    %1223 = vmatpush.msra.mxu0 0.0
    %1224 = vmatpush.msra.mxu0 0.0
    %1225 = vmatpush.msra.mxu0 0.0
    %1226 = vmatpush.msra.mxu0 0.0
    %1227 = vmatpush.msra.mxu0 0.0
    %1228 = vmatpush.msra.mxu0 0.0
    %1229 = vmatpush.msra.mxu0 %v854
    %1230 = vmatpush.msra.mxu0 %v853
    %1231 = vmatpush.msra.mxu0 %v852
    %1232 = vmatpush.msra.mxu0 %v851
    %1233 = vmatmul.f32.gmra.mxu0 %v1215
    %v1234 = vpop.f32.mrf.mxu0
    %v1235 = vadd.f32 0.0, %v1234
    %1236 = vdwg.mxu0
    %v1237 = vld [vmem:[%s563] sm:$0xff]
    %v1238 = vadd.f32 %v1237, %v1235
    %v1239 = vxor.u32 %v1238, 2147483648
    %v1240 = vmul.f32 %v1239, 1.442695
    %v1241 = vpow.pop %v1240
    %v1242 = vadd.f32 %v1241, 1.0
    %v1243 = vrcp.pop %v1242
    %v1244 = vmul.f32 %v1242, %v1243
    %v1245 = vsub.f32 1.0, %v1244
    %v1246 = vmul.f32 %v1243, %v1245
    %v1247 = vadd.f32 %v1243, %v1246
    %vm1248 = vweird.f32 %v1242
    %vm1249 = vweird.f32 %v1243
    %vm1250 = vmor %vm1248, %vm1249
    %v1251 = vsel %vm1250, %v1243, %v1247
    %v1252 = vand.u32 2147483647, %v1242
    %vm1253 = vcmp.eq.f32.partialorder %v1252, 8.507059e+37
    %v1254 = vand.u32 %v1242, 2147483648
    %v1255 = vor.u32 1.1754944e-38, %v1254
    %v1256 = vsel %vm1253, %v1255, %v1251
    %v1257 = vmul.f32 1.0, %v1256
    %v1258 = vadd.f32 %v1235, %v901
    %1260 = vrot.lane.b32.xlu0 %v1258, 64
    %v1261 = vpop.permute.xlu0 %1260
    %v1263 = vmul.f32 %v1257, %v1261
    %1265 = vrot.lane.b32.xlu0 %v1263, 64
    %v1266 = vpop.permute.xlu0 %1265
    %v1268 = vadd.f32 %v1237, %v1266
    %v1269 = vtanh.pop %v1268
    %v1270 = vsub.f32 %v1209, %v1269
    %1272 = vrot.lane.b32.xlu0 %v1270, 96
    %v1273 = vpop.permute.xlu0 %1272
    %v1275 = vmul.f32 %v1257, %v1273
    %1277 = vrot.lane.b32.xlu0 %v1275, 32
    %v1278 = vpop.permute.xlu0 %1277
    %v1280 = vadd.f32 %v1269, %v1278
    %1282 = vrot.lane.b32.xlu0 %v1280, 64
    %v1283 = vpop.permute.xlu0 %1282
    %1285 = vst.msk [vmem:[%s612] sm:$0xff] %vm173, %v1283
    %v1286 = vsel %vm173, %v1283, 0
    %1288 = vmatpush.msra.mxu0 0.0
    %1289 = vmatpush.msra.mxu0 0.0
    %1290 = vmatpush.msra.mxu0 0.0
    %1291 = vmatpush.msra.mxu0 0.0
    %1292 = vmatpush.msra.mxu0 0.0
    %1293 = vmatpush.msra.mxu0 0.0
    %1294 = vmatpush.msra.mxu0 0.0
    %1295 = vmatpush.msra.mxu0 0.0
    %1296 = vmatpush.msra.mxu0 0.0
    %1297 = vmatpush.msra.mxu0 0.0
    %1298 = vmatpush.msra.mxu0 0.0
    %1299 = vmatpush.msra.mxu0 0.0
    %1300 = vmatpush.msra.mxu0 %v854
    %1301 = vmatpush.msra.mxu0 %v853
    %1302 = vmatpush.msra.mxu0 %v852
    %1303 = vmatpush.msra.mxu0 %v851
    %1304 = vmatmul.f32.gmra.mxu0 %v1286
    %v1305 = vpop.f32.mrf.mxu0
    %v1306 = vadd.f32 0.0, %v1305
    %1307 = vdwg.mxu0
    %v1308 = vld [vmem:[%s636] sm:$0xff]
    %v1309 = vadd.f32 %v1308, %v1306
    %v1310 = vxor.u32 %v1309, 2147483648
    %v1311 = vmul.f32 %v1310, 1.442695
    %v1312 = vpow.pop %v1311
    %v1313 = vadd.f32 %v1312, 1.0
    %v1314 = vrcp.pop %v1313
    %v1315 = vmul.f32 %v1313, %v1314
    %v1316 = vsub.f32 1.0, %v1315
    %v1317 = vmul.f32 %v1314, %v1316
    %v1318 = vadd.f32 %v1314, %v1317
    %vm1319 = vweird.f32 %v1313
    %vm1320 = vweird.f32 %v1314
    %vm1321 = vmor %vm1319, %vm1320
    %v1322 = vsel %vm1321, %v1314, %v1318
    %v1323 = vand.u32 2147483647, %v1313
    %vm1324 = vcmp.eq.f32.partialorder %v1323, 8.507059e+37
    %v1325 = vand.u32 %v1313, 2147483648
    %v1326 = vor.u32 1.1754944e-38, %v1325
    %v1327 = vsel %vm1324, %v1326, %v1322
    %v1328 = vmul.f32 1.0, %v1327
    %v1329 = vadd.f32 %v1306, %v901
    %1331 = vrot.lane.b32.xlu0 %v1329, 64
    %v1332 = vpop.permute.xlu0 %1331
    %v1334 = vmul.f32 %v1328, %v1332
    %1336 = vrot.lane.b32.xlu0 %v1334, 64
    %v1337 = vpop.permute.xlu0 %1336
    %v1339 = vadd.f32 %v1308, %v1337
    %v1340 = vtanh.pop %v1339
    %v1341 = vsub.f32 %v1280, %v1340
    %1343 = vrot.lane.b32.xlu0 %v1341, 96
    %v1344 = vpop.permute.xlu0 %1343
    %v1346 = vmul.f32 %v1328, %v1344
    %1348 = vrot.lane.b32.xlu0 %v1346, 32
    %v1349 = vpop.permute.xlu0 %1348
    %v1351 = vadd.f32 %v1340, %v1349
    %1353 = vrot.lane.b32.xlu0 %v1351, 64
    %v1354 = vpop.permute.xlu0 %1353
    %1356 = vst.msk [vmem:[%s685] sm:$0xff] %vm173, %v1354
    %v1357 = vsel %vm173, %v1354, 0
    %1359 = vmatpush.msra.mxu0 0.0
    %1360 = vmatpush.msra.mxu0 0.0
    %1361 = vmatpush.msra.mxu0 0.0
    %1362 = vmatpush.msra.mxu0 0.0
    %1363 = vmatpush.msra.mxu0 0.0
    %1364 = vmatpush.msra.mxu0 0.0
    %1365 = vmatpush.msra.mxu0 0.0
    %1366 = vmatpush.msra.mxu0 0.0
    %1367 = vmatpush.msra.mxu0 0.0
    %1368 = vmatpush.msra.mxu0 0.0
    %1369 = vmatpush.msra.mxu0 0.0
    %1370 = vmatpush.msra.mxu0 0.0
    %1371 = vmatpush.msra.mxu0 %v854
    %1372 = vmatpush.msra.mxu0 %v853
    %1373 = vmatpush.msra.mxu0 %v852
    %1374 = vmatpush.msra.mxu0 %v851
    %1375 = vmatmul.f32.gmra.mxu0 %v1357
    %v1376 = vpop.f32.mrf.mxu0
    %v1377 = vadd.f32 0.0, %v1376
    %1378 = vdwg.mxu0
    %v1379 = vld [vmem:[%s709] sm:$0xff]
    %v1380 = vadd.f32 %v1379, %v1377
    %v1381 = vxor.u32 %v1380, 2147483648
    %v1382 = vmul.f32 %v1381, 1.442695
    %v1383 = vpow.pop %v1382
    %v1384 = vadd.f32 %v1383, 1.0
    %v1385 = vrcp.pop %v1384
    %v1386 = vmul.f32 %v1384, %v1385
    %v1387 = vsub.f32 1.0, %v1386
    %v1388 = vmul.f32 %v1385, %v1387
    %v1389 = vadd.f32 %v1385, %v1388
    %vm1390 = vweird.f32 %v1384
    %vm1391 = vweird.f32 %v1385
    %vm1392 = vmor %vm1390, %vm1391
    %v1393 = vsel %vm1392, %v1385, %v1389
    %v1394 = vand.u32 2147483647, %v1384
    %vm1395 = vcmp.eq.f32.partialorder %v1394, 8.507059e+37
    %v1396 = vand.u32 %v1384, 2147483648
    %v1397 = vor.u32 1.1754944e-38, %v1396
    %v1398 = vsel %vm1395, %v1397, %v1393
    %v1399 = vmul.f32 1.0, %v1398
    %v1400 = vadd.f32 %v1377, %v901
    %1402 = vrot.lane.b32.xlu0 %v1400, 64
    %v1403 = vpop.permute.xlu0 %1402
    %v1405 = vmul.f32 %v1399, %v1403
    %1407 = vrot.lane.b32.xlu0 %v1405, 64
    %v1408 = vpop.permute.xlu0 %1407
    %v1410 = vadd.f32 %v1379, %v1408
    %v1411 = vtanh.pop %v1410
    %v1412 = vsub.f32 %v1351, %v1411
    %1414 = vrot.lane.b32.xlu0 %v1412, 96
    %v1415 = vpop.permute.xlu0 %1414
    %v1417 = vmul.f32 %v1399, %v1415
    %1419 = vrot.lane.b32.xlu0 %v1417, 32
    %v1420 = vpop.permute.xlu0 %1419
    %v1422 = vadd.f32 %v1411, %v1420
    %1424 = vrot.lane.b32.xlu0 %v1422, 64
    %v1425 = vpop.permute.xlu0 %1424
    %1427 = vst.msk [vmem:[%s758] sm:$0xff] %vm173, %v1425
    %v1428 = vld [vmem:[#allocation3] sm:$0xff]
    %v1429 = vld [vmem:[#allocation3 + $0x8] sm:$0xff]
    %v1430 = vld [vmem:[#allocation3 + $0x10] sm:$0xff]
    %v1431 = vld [vmem:[#allocation3 + $0x18] sm:$0xff]
    %v1432 = vld [vmem:[#allocation3 + $0x20] sm:$0xff]
    %v1433 = vld [vmem:[#allocation3 + $0x28] sm:$0xff]
    %v1434 = vld [vmem:[#allocation3 + $0x30] sm:$0xff]
    %v1435 = vld [vmem:[#allocation3 + $0x38] sm:$0xff]
    %s1436 = scalar_lea.vmem [#allocation7], 32
    %v1437 = vld [vmem:[%s1436] sm:$0xff]
    %v1438 = vld [vmem:[%s1436 + $0x8] sm:$0xff]
    %v1439 = vld [vmem:[%s1436 + $0x10] sm:$0xff]
    %v1440 = vld [vmem:[%s1436 + $0x18] sm:$0xff]
    %s1441 = scalar_lea.vmem %s4, 2
    %v1442 = vld [vmem:[%s1441] sm:$0x1]
    %v1444 = vperm.slane %v1442, 0
    %v1447 = vsel %vm173, %v1428, 0
    %v1450 = vsel %vm173, %v1429, 0
    %v1453 = vsel %vm173, %v1430, 0
    %v1456 = vsel %vm173, %v1431, 0
    %v1459 = vsel %vm173, %v1432, 0
    %v1462 = vsel %vm173, %v1433, 0
    %v1465 = vsel %vm173, %v1434, 0
    %v1468 = vsel %vm173, %v1435, 0
    %1470 = vmatpush.msra.mxu0 0.0
    %1471 = vmatpush.msra.mxu0 0.0
    %1472 = vmatpush.msra.mxu0 0.0
    %1473 = vmatpush.msra.mxu0 0.0
    %1474 = vmatpush.msra.mxu0 0.0
    %1475 = vmatpush.msra.mxu0 0.0
    %1476 = vmatpush.msra.mxu0 0.0
    %1477 = vmatpush.msra.mxu0 0.0
    %1478 = vmatpush.msra.mxu0 0.0
    %1479 = vmatpush.msra.mxu0 0.0
    %1480 = vmatpush.msra.mxu0 0.0
    %1481 = vmatpush.msra.mxu0 0.0
    %1482 = vmatpush.msra.mxu0 %v1440
    %1483 = vmatpush.msra.mxu0 %v1439
    %1484 = vmatpush.msra.mxu0 %v1438
    %1485 = vmatpush.msra.mxu0 %v1437
    %1486 = vmatmul.f32.gmra.mxu0 %v1447
    %v1487 = vpop.f32.mrf.mxu0
    %v1488 = vadd.f32 %v1444, %v1487
    %1489 = vmatmul.f32.gmra.mxu0 %v1450
    %v1490 = vpop.f32.mrf.mxu0
    %v1491 = vadd.f32 %v1444, %v1490
    %1492 = vmatmul.f32.gmra.mxu0 %v1453
    %v1493 = vpop.f32.mrf.mxu0
    %v1494 = vadd.f32 %v1444, %v1493
    %1495 = vmatmul.f32.gmra.mxu0 %v1456
    %v1496 = vpop.f32.mrf.mxu0
    %v1497 = vadd.f32 %v1444, %v1496
    %1498 = vmatmul.f32.gmra.mxu0 %v1459
    %v1499 = vpop.f32.mrf.mxu0
    %v1500 = vadd.f32 %v1444, %v1499
    %1501 = vmatmul.f32.gmra.mxu0 %v1462
    %v1502 = vpop.f32.mrf.mxu0
    %v1503 = vadd.f32 %v1444, %v1502
    %1504 = vmatmul.f32.gmra.mxu0 %v1465
    %v1505 = vpop.f32.mrf.mxu0
    %v1506 = vadd.f32 %v1444, %v1505
    %1507 = vmatmul.f32.gmra.mxu0 %v1468
    %v1508 = vpop.f32.mrf.mxu0
    %v1509 = vadd.f32 %v1444, %v1508
    %1510 = vdwg.mxu0
    %1511 = vst.msk [vmem:[#allocation2] sm:$0xff] %vm157, %v1488
    %1512 = vst.msk [vmem:[#allocation2 + $0x8] sm:$0xff] %vm157, %v1491
    %1513 = vst.msk [vmem:[#allocation2 + $0x10] sm:$0xff] %vm157, %v1494
    %1514 = vst.msk [vmem:[#allocation2 + $0x18] sm:$0xff] %vm157, %v1497
    %1515 = vst.msk [vmem:[#allocation2 + $0x20] sm:$0xff] %vm157, %v1500
    %1516 = vst.msk [vmem:[#allocation2 + $0x28] sm:$0xff] %vm157, %v1503
    %1517 = vst.msk [vmem:[#allocation2 + $0x30] sm:$0xff] %vm157, %v1506
    %1518 = vst.msk [vmem:[#allocation2 + $0x38] sm:$0xff] %vm157, %v1509
    %s1519 = scalar_lea.vmem [#allocation9], 64
    %v1520 = vld [vmem:[%s1519] sm:$0xff]
    %v1521 = vld [vmem:[%s1519 + $0x8] sm:$0xff]
    %v1522 = vld [vmem:[%s1519 + $0x10] sm:$0xff]
    %v1523 = vld [vmem:[%s1519 + $0x18] sm:$0xff]
    %s1524 = scalar_lea.vmem %s5, 2
    %v1525 = vld [vmem:[%s1524] sm:$0x1]
    %v1527 = vperm.slane %v1525, 0
    %1528 = vmatpush.msra.mxu0 0.0
    %1529 = vmatpush.msra.mxu0 0.0
    %1530 = vmatpush.msra.mxu0 0.0
    %1531 = vmatpush.msra.mxu0 0.0
    %1532 = vmatpush.msra.mxu0 0.0
    %1533 = vmatpush.msra.mxu0 0.0
    %1534 = vmatpush.msra.mxu0 0.0
    %1535 = vmatpush.msra.mxu0 0.0
    %1536 = vmatpush.msra.mxu0 0.0
    %1537 = vmatpush.msra.mxu0 0.0
    %1538 = vmatpush.msra.mxu0 0.0
    %1539 = vmatpush.msra.mxu0 0.0
    %1540 = vmatpush.msra.mxu0 %v1523
    %1541 = vmatpush.msra.mxu0 %v1522
    %1542 = vmatpush.msra.mxu0 %v1521
    %1543 = vmatpush.msra.mxu0 %v1520
    %1544 = vmatmul.f32.gmra.mxu0 %v175
    %v1545 = vpop.f32.mrf.mxu0
    %v1546 = vadd.f32 0.0, %v1545
    %1547 = vdwg.mxu0
    %v1548 = vld [vmem:[#allocation2] sm:$0xff]
    %v1549 = vadd.f32 %v1548, %v1546
    %v1550 = vxor.u32 %v1549, 2147483648
    %v1551 = vmul.f32 %v1550, 1.442695
    %v1552 = vpow.pop %v1551
    %v1553 = vadd.f32 %v1552, 1.0
    %v1554 = vrcp.pop %v1553
    %v1555 = vmul.f32 %v1553, %v1554
    %v1556 = vsub.f32 1.0, %v1555
    %v1557 = vmul.f32 %v1554, %v1556
    %v1558 = vadd.f32 %v1554, %v1557
    %vm1559 = vweird.f32 %v1553
    %vm1560 = vweird.f32 %v1554
    %vm1561 = vmor %vm1559, %vm1560
    %v1562 = vsel %vm1561, %v1554, %v1558
    %v1563 = vand.u32 2147483647, %v1553
    %vm1564 = vcmp.eq.f32.partialorder %v1563, 8.507059e+37
    %v1565 = vand.u32 %v1553, 2147483648
    %v1566 = vor.u32 1.1754944e-38, %v1565
    %v1567 = vsel %vm1564, %v1566, %v1562
    %v1568 = vmul.f32 1.0, %v1567
    %1569 = vrot.lane.b32.xlu0 %v1527, 64
    %v1570 = vpop.permute.xlu0 %1569
    %v1572 = vadd.f32 %v1546, %v1570
    %1574 = vrot.lane.b32.xlu0 %v1572, 64
    %v1575 = vpop.permute.xlu0 %1574
    %v1577 = vmul.f32 %v1568, %v1575
    %1579 = vrot.lane.b32.xlu0 %v1577, 64
    %v1580 = vpop.permute.xlu0 %1579
    %v1582 = vadd.f32 %v1548, %v1580
    %v1583 = vtanh.pop %v1582
    %v1584 = vsub.f32 0.0, %v1583
    %1586 = vrot.lane.b32.xlu0 %v1584, 96
    %v1587 = vpop.permute.xlu0 %1586
    %v1589 = vmul.f32 %v1568, %v1587
    %1591 = vrot.lane.b32.xlu0 %v1589, 32
    %v1592 = vpop.permute.xlu0 %1591
    %v1594 = vadd.f32 %v1583, %v1592
    %1596 = vrot.lane.b32.xlu0 %v1594, 64
    %v1597 = vpop.permute.xlu0 %1596
    %v1598 = vsel %vm173, %v1597, 0
    %1600 = vmatpush.msra.mxu0 0.0
    %1601 = vmatpush.msra.mxu0 0.0
    %1602 = vmatpush.msra.mxu0 0.0
    %1603 = vmatpush.msra.mxu0 0.0
    %1604 = vmatpush.msra.mxu0 0.0
    %1605 = vmatpush.msra.mxu0 0.0
    %1606 = vmatpush.msra.mxu0 0.0
    %1607 = vmatpush.msra.mxu0 0.0
    %1608 = vmatpush.msra.mxu0 0.0
    %1609 = vmatpush.msra.mxu0 0.0
    %1610 = vmatpush.msra.mxu0 0.0
    %1611 = vmatpush.msra.mxu0 0.0
    %1612 = vmatpush.msra.mxu0 %v1523
    %1613 = vmatpush.msra.mxu0 %v1522
    %1614 = vmatpush.msra.mxu0 %v1521
    %1615 = vmatpush.msra.mxu0 %v1520
    %1616 = vmatmul.f32.gmra.mxu0 %v1598
    %v1617 = vpop.f32.mrf.mxu0
    %v1618 = vadd.f32 0.0, %v1617
    %1619 = vdwg.mxu0
    %v1620 = vld [vmem:[%s271] sm:$0xff]
    %v1621 = vadd.f32 %v1620, %v1618
    %v1622 = vxor.u32 %v1621, 2147483648
    %v1623 = vmul.f32 %v1622, 1.442695
    %v1624 = vpow.pop %v1623
    %v1625 = vadd.f32 %v1624, 1.0
    %v1626 = vrcp.pop %v1625
    %v1627 = vmul.f32 %v1625, %v1626
    %v1628 = vsub.f32 1.0, %v1627
    %v1629 = vmul.f32 %v1626, %v1628
    %v1630 = vadd.f32 %v1626, %v1629
    %vm1631 = vweird.f32 %v1625
    %vm1632 = vweird.f32 %v1626
    %vm1633 = vmor %vm1631, %vm1632
    %v1634 = vsel %vm1633, %v1626, %v1630
    %v1635 = vand.u32 2147483647, %v1625
    %vm1636 = vcmp.eq.f32.partialorder %v1635, 8.507059e+37
    %v1637 = vand.u32 %v1625, 2147483648
    %v1638 = vor.u32 1.1754944e-38, %v1637
    %v1639 = vsel %vm1636, %v1638, %v1634
    %v1640 = vmul.f32 1.0, %v1639
    %v1641 = vadd.f32 %v1618, %v1570
    %1643 = vrot.lane.b32.xlu0 %v1641, 64
    %v1644 = vpop.permute.xlu0 %1643
    %v1646 = vmul.f32 %v1640, %v1644
    %1648 = vrot.lane.b32.xlu0 %v1646, 64
    %v1649 = vpop.permute.xlu0 %1648
    %v1651 = vadd.f32 %v1620, %v1649
    %v1652 = vtanh.pop %v1651
    %v1653 = vsub.f32 %v1594, %v1652
    %1655 = vrot.lane.b32.xlu0 %v1653, 96
    %v1656 = vpop.permute.xlu0 %1655
    %v1658 = vmul.f32 %v1640, %v1656
    %1660 = vrot.lane.b32.xlu0 %v1658, 32
    %v1661 = vpop.permute.xlu0 %1660
    %v1663 = vadd.f32 %v1652, %v1661
    %1665 = vrot.lane.b32.xlu0 %v1663, 64
    %v1666 = vpop.permute.xlu0 %1665
    %v1667 = vsel %vm173, %v1666, 0
    %1669 = vmatpush.msra.mxu0 0.0
    %1670 = vmatpush.msra.mxu0 0.0
    %1671 = vmatpush.msra.mxu0 0.0
    %1672 = vmatpush.msra.mxu0 0.0
    %1673 = vmatpush.msra.mxu0 0.0
    %1674 = vmatpush.msra.mxu0 0.0
    %1675 = vmatpush.msra.mxu0 0.0
    %1676 = vmatpush.msra.mxu0 0.0
    %1677 = vmatpush.msra.mxu0 0.0
    %1678 = vmatpush.msra.mxu0 0.0
    %1679 = vmatpush.msra.mxu0 0.0
    %1680 = vmatpush.msra.mxu0 0.0
    %1681 = vmatpush.msra.mxu0 %v1523
    %1682 = vmatpush.msra.mxu0 %v1522
    %1683 = vmatpush.msra.mxu0 %v1521
    %1684 = vmatpush.msra.mxu0 %v1520
    %1685 = vmatmul.f32.gmra.mxu0 %v1667
    %v1686 = vpop.f32.mrf.mxu0
    %v1687 = vadd.f32 0.0, %v1686
    %1688 = vdwg.mxu0
    %v1689 = vld [vmem:[%s344] sm:$0xff]
    %v1690 = vadd.f32 %v1689, %v1687
    %v1691 = vxor.u32 %v1690, 2147483648
    %v1692 = vmul.f32 %v1691, 1.442695
    %v1693 = vpow.pop %v1692
    %v1694 = vadd.f32 %v1693, 1.0
    %v1695 = vrcp.pop %v1694
    %v1696 = vmul.f32 %v1694, %v1695
    %v1697 = vsub.f32 1.0, %v1696
    %v1698 = vmul.f32 %v1695, %v1697
    %v1699 = vadd.f32 %v1695, %v1698
    %vm1700 = vweird.f32 %v1694
    %vm1701 = vweird.f32 %v1695
    %vm1702 = vmor %vm1700, %vm1701
    %v1703 = vsel %vm1702, %v1695, %v1699
    %v1704 = vand.u32 2147483647, %v1694
    %vm1705 = vcmp.eq.f32.partialorder %v1704, 8.507059e+37
    %v1706 = vand.u32 %v1694, 2147483648
    %v1707 = vor.u32 1.1754944e-38, %v1706
    %v1708 = vsel %vm1705, %v1707, %v1703
    %v1709 = vmul.f32 1.0, %v1708
    %v1710 = vadd.f32 %v1687, %v1570
    %1712 = vrot.lane.b32.xlu0 %v1710, 64
    %v1713 = vpop.permute.xlu0 %1712
    %v1715 = vmul.f32 %v1709, %v1713
    %1717 = vrot.lane.b32.xlu0 %v1715, 64
    %v1718 = vpop.permute.xlu0 %1717
    %v1720 = vadd.f32 %v1689, %v1718
    %v1721 = vtanh.pop %v1720
    %v1722 = vsub.f32 %v1663, %v1721
    %1724 = vrot.lane.b32.xlu0 %v1722, 96
    %v1725 = vpop.permute.xlu0 %1724
    %v1727 = vmul.f32 %v1709, %v1725
    %1729 = vrot.lane.b32.xlu0 %v1727, 32
    %v1730 = vpop.permute.xlu0 %1729
    %v1732 = vadd.f32 %v1721, %v1730
    %1734 = vrot.lane.b32.xlu0 %v1732, 64
    %v1735 = vpop.permute.xlu0 %1734
    %v1736 = vsel %vm173, %v1735, 0
    %1738 = vmatpush.msra.mxu0 0.0
    %1739 = vmatpush.msra.mxu0 0.0
    %1740 = vmatpush.msra.mxu0 0.0
    %1741 = vmatpush.msra.mxu0 0.0
    %1742 = vmatpush.msra.mxu0 0.0
    %1743 = vmatpush.msra.mxu0 0.0
    %1744 = vmatpush.msra.mxu0 0.0
    %1745 = vmatpush.msra.mxu0 0.0
    %1746 = vmatpush.msra.mxu0 0.0
    %1747 = vmatpush.msra.mxu0 0.0
    %1748 = vmatpush.msra.mxu0 0.0
    %1749 = vmatpush.msra.mxu0 0.0
    %1750 = vmatpush.msra.mxu0 %v1523
    %1751 = vmatpush.msra.mxu0 %v1522
    %1752 = vmatpush.msra.mxu0 %v1521
    %1753 = vmatpush.msra.mxu0 %v1520
    %1754 = vmatmul.f32.gmra.mxu0 %v1736
    %v1755 = vpop.f32.mrf.mxu0
    %v1756 = vadd.f32 0.0, %v1755
    %1757 = vdwg.mxu0
    %v1758 = vld [vmem:[%s417] sm:$0xff]
    %v1759 = vadd.f32 %v1758, %v1756
    %v1760 = vxor.u32 %v1759, 2147483648
    %v1761 = vmul.f32 %v1760, 1.442695
    %v1762 = vpow.pop %v1761
    %v1763 = vadd.f32 %v1762, 1.0
    %v1764 = vrcp.pop %v1763
    %v1765 = vmul.f32 %v1763, %v1764
    %v1766 = vsub.f32 1.0, %v1765
    %v1767 = vmul.f32 %v1764, %v1766
    %v1768 = vadd.f32 %v1764, %v1767
    %vm1769 = vweird.f32 %v1763
    %vm1770 = vweird.f32 %v1764
    %vm1771 = vmor %vm1769, %vm1770
    %v1772 = vsel %vm1771, %v1764, %v1768
    %v1773 = vand.u32 2147483647, %v1763
    %vm1774 = vcmp.eq.f32.partialorder %v1773, 8.507059e+37
    %v1775 = vand.u32 %v1763, 2147483648
    %v1776 = vor.u32 1.1754944e-38, %v1775
    %v1777 = vsel %vm1774, %v1776, %v1772
    %v1778 = vmul.f32 1.0, %v1777
    %v1779 = vadd.f32 %v1756, %v1570
    %1781 = vrot.lane.b32.xlu0 %v1779, 64
    %v1782 = vpop.permute.xlu0 %1781
    %v1784 = vmul.f32 %v1778, %v1782
    %1786 = vrot.lane.b32.xlu0 %v1784, 64
    %v1787 = vpop.permute.xlu0 %1786
    %v1789 = vadd.f32 %v1758, %v1787
    %v1790 = vtanh.pop %v1789
    %v1791 = vsub.f32 %v1732, %v1790
    %1793 = vrot.lane.b32.xlu0 %v1791, 96
    %v1794 = vpop.permute.xlu0 %1793
    %v1796 = vmul.f32 %v1778, %v1794
    %1798 = vrot.lane.b32.xlu0 %v1796, 32
    %v1799 = vpop.permute.xlu0 %1798
    %v1801 = vadd.f32 %v1790, %v1799
    %1803 = vrot.lane.b32.xlu0 %v1801, 64
    %v1804 = vpop.permute.xlu0 %1803
    %v1805 = vsel %vm173, %v1804, 0
    %1807 = vmatpush.msra.mxu0 0.0
    %1808 = vmatpush.msra.mxu0 0.0
    %1809 = vmatpush.msra.mxu0 0.0
    %1810 = vmatpush.msra.mxu0 0.0
    %1811 = vmatpush.msra.mxu0 0.0
    %1812 = vmatpush.msra.mxu0 0.0
    %1813 = vmatpush.msra.mxu0 0.0
    %1814 = vmatpush.msra.mxu0 0.0
    %1815 = vmatpush.msra.mxu0 0.0
    %1816 = vmatpush.msra.mxu0 0.0
    %1817 = vmatpush.msra.mxu0 0.0
    %1818 = vmatpush.msra.mxu0 0.0
    %1819 = vmatpush.msra.mxu0 %v1523
    %1820 = vmatpush.msra.mxu0 %v1522
    %1821 = vmatpush.msra.mxu0 %v1521
    %1822 = vmatpush.msra.mxu0 %v1520
    %1823 = vmatmul.f32.gmra.mxu0 %v1805
    %v1824 = vpop.f32.mrf.mxu0
    %v1825 = vadd.f32 0.0, %v1824
    %1826 = vdwg.mxu0
    %v1827 = vld [vmem:[%s490] sm:$0xff]
    %v1828 = vadd.f32 %v1827, %v1825
    %v1829 = vxor.u32 %v1828, 2147483648
    %v1830 = vmul.f32 %v1829, 1.442695
    %v1831 = vpow.pop %v1830
    %v1832 = vadd.f32 %v1831, 1.0
    %v1833 = vrcp.pop %v1832
    %v1834 = vmul.f32 %v1832, %v1833
    %v1835 = vsub.f32 1.0, %v1834
    %v1836 = vmul.f32 %v1833, %v1835
    %v1837 = vadd.f32 %v1833, %v1836
    %vm1838 = vweird.f32 %v1832
    %vm1839 = vweird.f32 %v1833
    %vm1840 = vmor %vm1838, %vm1839
    %v1841 = vsel %vm1840, %v1833, %v1837
    %v1842 = vand.u32 2147483647, %v1832
    %vm1843 = vcmp.eq.f32.partialorder %v1842, 8.507059e+37
    %v1844 = vand.u32 %v1832, 2147483648
    %v1845 = vor.u32 1.1754944e-38, %v1844
    %v1846 = vsel %vm1843, %v1845, %v1841
    %v1847 = vmul.f32 1.0, %v1846
    %v1848 = vadd.f32 %v1825, %v1570
    %1850 = vrot.lane.b32.xlu0 %v1848, 64
    %v1851 = vpop.permute.xlu0 %1850
    %v1853 = vmul.f32 %v1847, %v1851
    %1855 = vrot.lane.b32.xlu0 %v1853, 64
    %v1856 = vpop.permute.xlu0 %1855
    %v1858 = vadd.f32 %v1827, %v1856
    %v1859 = vtanh.pop %v1858
    %v1860 = vsub.f32 %v1801, %v1859
    %1862 = vrot.lane.b32.xlu0 %v1860, 96
    %v1863 = vpop.permute.xlu0 %1862
    %v1865 = vmul.f32 %v1847, %v1863
    %1867 = vrot.lane.b32.xlu0 %v1865, 32
    %v1868 = vpop.permute.xlu0 %1867
    %v1870 = vadd.f32 %v1859, %v1868
    %1872 = vrot.lane.b32.xlu0 %v1870, 64
    %v1873 = vpop.permute.xlu0 %1872
    %v1874 = vsel %vm173, %v1873, 0
    %1876 = vmatpush.msra.mxu0 0.0
    %1877 = vmatpush.msra.mxu0 0.0
    %1878 = vmatpush.msra.mxu0 0.0
    %1879 = vmatpush.msra.mxu0 0.0
    %1880 = vmatpush.msra.mxu0 0.0
    %1881 = vmatpush.msra.mxu0 0.0
    %1882 = vmatpush.msra.mxu0 0.0
    %1883 = vmatpush.msra.mxu0 0.0
    %1884 = vmatpush.msra.mxu0 0.0
    %1885 = vmatpush.msra.mxu0 0.0
    %1886 = vmatpush.msra.mxu0 0.0
    %1887 = vmatpush.msra.mxu0 0.0
    %1888 = vmatpush.msra.mxu0 %v1523
    %1889 = vmatpush.msra.mxu0 %v1522
    %1890 = vmatpush.msra.mxu0 %v1521
    %1891 = vmatpush.msra.mxu0 %v1520
    %1892 = vmatmul.f32.gmra.mxu0 %v1874
    %v1893 = vpop.f32.mrf.mxu0
    %v1894 = vadd.f32 0.0, %v1893
    %1895 = vdwg.mxu0
    %v1896 = vld [vmem:[%s563] sm:$0xff]
    %v1897 = vadd.f32 %v1896, %v1894
    %v1898 = vxor.u32 %v1897, 2147483648
    %v1899 = vmul.f32 %v1898, 1.442695
    %v1900 = vpow.pop %v1899
    %v1901 = vadd.f32 %v1900, 1.0
    %v1902 = vrcp.pop %v1901
    %v1903 = vmul.f32 %v1901, %v1902
    %v1904 = vsub.f32 1.0, %v1903
    %v1905 = vmul.f32 %v1902, %v1904
    %v1906 = vadd.f32 %v1902, %v1905
    %vm1907 = vweird.f32 %v1901
    %vm1908 = vweird.f32 %v1902
    %vm1909 = vmor %vm1907, %vm1908
    %v1910 = vsel %vm1909, %v1902, %v1906
    %v1911 = vand.u32 2147483647, %v1901
    %vm1912 = vcmp.eq.f32.partialorder %v1911, 8.507059e+37
    %v1913 = vand.u32 %v1901, 2147483648
    %v1914 = vor.u32 1.1754944e-38, %v1913
    %v1915 = vsel %vm1912, %v1914, %v1910
    %v1916 = vmul.f32 1.0, %v1915
    %v1917 = vadd.f32 %v1894, %v1570
    %1919 = vrot.lane.b32.xlu0 %v1917, 64
    %v1920 = vpop.permute.xlu0 %1919
    %v1922 = vmul.f32 %v1916, %v1920
    %1924 = vrot.lane.b32.xlu0 %v1922, 64
    %v1925 = vpop.permute.xlu0 %1924
    %v1927 = vadd.f32 %v1896, %v1925
    %v1928 = vtanh.pop %v1927
    %v1929 = vsub.f32 %v1870, %v1928
    %1931 = vrot.lane.b32.xlu0 %v1929, 96
    %v1932 = vpop.permute.xlu0 %1931
    %v1934 = vmul.f32 %v1916, %v1932
    %1936 = vrot.lane.b32.xlu0 %v1934, 32
    %v1937 = vpop.permute.xlu0 %1936
    %v1939 = vadd.f32 %v1928, %v1937
    %1941 = vrot.lane.b32.xlu0 %v1939, 64
    %v1942 = vpop.permute.xlu0 %1941
    %v1943 = vsel %vm173, %v1942, 0
    %1945 = vmatpush.msra.mxu0 0.0
    %1946 = vmatpush.msra.mxu0 0.0
    %1947 = vmatpush.msra.mxu0 0.0
    %1948 = vmatpush.msra.mxu0 0.0
    %1949 = vmatpush.msra.mxu0 0.0
    %1950 = vmatpush.msra.mxu0 0.0
    %1951 = vmatpush.msra.mxu0 0.0
    %1952 = vmatpush.msra.mxu0 0.0
    %1953 = vmatpush.msra.mxu0 0.0
    %1954 = vmatpush.msra.mxu0 0.0
    %1955 = vmatpush.msra.mxu0 0.0
    %1956 = vmatpush.msra.mxu0 0.0
    %1957 = vmatpush.msra.mxu0 %v1523
    %1958 = vmatpush.msra.mxu0 %v1522
    %1959 = vmatpush.msra.mxu0 %v1521
    %1960 = vmatpush.msra.mxu0 %v1520
    %1961 = vmatmul.f32.gmra.mxu0 %v1943
    %v1962 = vpop.f32.mrf.mxu0
    %v1963 = vadd.f32 0.0, %v1962
    %1964 = vdwg.mxu0
    %v1965 = vld [vmem:[%s636] sm:$0xff]
    %v1966 = vadd.f32 %v1965, %v1963
    %v1967 = vxor.u32 %v1966, 2147483648
    %v1968 = vmul.f32 %v1967, 1.442695
    %v1969 = vpow.pop %v1968
    %v1970 = vadd.f32 %v1969, 1.0
    %v1971 = vrcp.pop %v1970
    %v1972 = vmul.f32 %v1970, %v1971
    %v1973 = vsub.f32 1.0, %v1972
    %v1974 = vmul.f32 %v1971, %v1973
    %v1975 = vadd.f32 %v1971, %v1974
    %vm1976 = vweird.f32 %v1970
    %vm1977 = vweird.f32 %v1971
    %vm1978 = vmor %vm1976, %vm1977
    %v1979 = vsel %vm1978, %v1971, %v1975
    %v1980 = vand.u32 2147483647, %v1970
    %vm1981 = vcmp.eq.f32.partialorder %v1980, 8.507059e+37
    %v1982 = vand.u32 %v1970, 2147483648
    %v1983 = vor.u32 1.1754944e-38, %v1982
    %v1984 = vsel %vm1981, %v1983, %v1979
    %v1985 = vmul.f32 1.0, %v1984
    %v1986 = vadd.f32 %v1963, %v1570
    %1988 = vrot.lane.b32.xlu0 %v1986, 64
    %v1989 = vpop.permute.xlu0 %1988
    %v1991 = vmul.f32 %v1985, %v1989
    %1993 = vrot.lane.b32.xlu0 %v1991, 64
    %v1994 = vpop.permute.xlu0 %1993
    %v1996 = vadd.f32 %v1965, %v1994
    %v1997 = vtanh.pop %v1996
    %v1998 = vsub.f32 %v1939, %v1997
    %2000 = vrot.lane.b32.xlu0 %v1998, 96
    %v2001 = vpop.permute.xlu0 %2000
    %v2003 = vmul.f32 %v1985, %v2001
    %2005 = vrot.lane.b32.xlu0 %v2003, 32
    %v2006 = vpop.permute.xlu0 %2005
    %v2008 = vadd.f32 %v1997, %v2006
    %2010 = vrot.lane.b32.xlu0 %v2008, 64
    %v2011 = vpop.permute.xlu0 %2010
    %v2012 = vsel %vm173, %v2011, 0
    %2014 = vmatpush.msra.mxu0 0.0
    %2015 = vmatpush.msra.mxu0 0.0
    %2016 = vmatpush.msra.mxu0 0.0
    %2017 = vmatpush.msra.mxu0 0.0
    %2018 = vmatpush.msra.mxu0 0.0
    %2019 = vmatpush.msra.mxu0 0.0
    %2020 = vmatpush.msra.mxu0 0.0
    %2021 = vmatpush.msra.mxu0 0.0
    %2022 = vmatpush.msra.mxu0 0.0
    %2023 = vmatpush.msra.mxu0 0.0
    %2024 = vmatpush.msra.mxu0 0.0
    %2025 = vmatpush.msra.mxu0 0.0
    %2026 = vmatpush.msra.mxu0 %v1523
    %2027 = vmatpush.msra.mxu0 %v1522
    %2028 = vmatpush.msra.mxu0 %v1521
    %2029 = vmatpush.msra.mxu0 %v1520
    %2030 = vmatmul.f32.gmra.mxu0 %v2012
    %v2031 = vpop.f32.mrf.mxu0
    %v2032 = vadd.f32 0.0, %v2031
    %2033 = vdwg.mxu0
    %v2034 = vld [vmem:[%s709] sm:$0xff]
    %v2035 = vadd.f32 %v2034, %v2032
    %v2036 = vxor.u32 %v2035, 2147483648
    %v2037 = vmul.f32 %v2036, 1.442695
    %v2038 = vpow.pop %v2037
    %v2039 = vadd.f32 %v2038, 1.0
    %v2040 = vrcp.pop %v2039
    %v2041 = vmul.f32 %v2039, %v2040
    %v2042 = vsub.f32 1.0, %v2041
    %v2043 = vmul.f32 %v2040, %v2042
    %v2044 = vadd.f32 %v2040, %v2043
    %vm2045 = vweird.f32 %v2039
    %vm2046 = vweird.f32 %v2040
    %vm2047 = vmor %vm2045, %vm2046
    %v2048 = vsel %vm2047, %v2040, %v2044
    %v2049 = vand.u32 2147483647, %v2039
    %vm2050 = vcmp.eq.f32.partialorder %v2049, 8.507059e+37
    %v2051 = vand.u32 %v2039, 2147483648
    %v2052 = vor.u32 1.1754944e-38, %v2051
    %v2053 = vsel %vm2050, %v2052, %v2048
    %v2054 = vmul.f32 1.0, %v2053
    %v2055 = vadd.f32 %v2032, %v1570
    %2057 = vrot.lane.b32.xlu0 %v2055, 64
    %v2058 = vpop.permute.xlu0 %2057
    %v2060 = vmul.f32 %v2054, %v2058
    %2062 = vrot.lane.b32.xlu0 %v2060, 64
    %v2063 = vpop.permute.xlu0 %2062
    %v2065 = vadd.f32 %v2034, %v2063
    %v2066 = vtanh.pop %v2065
    %v2067 = vsub.f32 %v2008, %v2066
    %2069 = vrot.lane.b32.xlu0 %v2067, 96
    %v2070 = vpop.permute.xlu0 %2069
    %v2072 = vmul.f32 %v2054, %v2070
    %2074 = vrot.lane.b32.xlu0 %v2072, 32
    %v2075 = vpop.permute.xlu0 %2074
    %v2077 = vadd.f32 %v2066, %v2075
    %v2078 = vld [vmem:[%s6] sm:$0xff]
    %v2079 = vld [vmem:[%s6 + $0x8] sm:$0xff]
    %v2080 = vld [vmem:[%s6 + $0x10] sm:$0xff]
    %v2081 = vld [vmem:[%s6 + $0x18] sm:$0xff]
    %v2082 = vld [vmem:[%s7] sm:$0x1]
    %v2084 = vperm.slane %v2082, 0
    %2087 = vrot.lane.b32.xlu0 %v2077, 64
    %v2088 = vpop.permute.xlu0 %2087
    %v2089 = vsel %vm173, %v2088, 0
    %2091 = vmatpush.msra.mxu0 0.0
    %2092 = vmatpush.msra.mxu0 0.0
    %2093 = vmatpush.msra.mxu0 0.0
    %2094 = vmatpush.msra.mxu0 0.0
    %2095 = vmatpush.msra.mxu0 0.0
    %2096 = vmatpush.msra.mxu0 0.0
    %2097 = vmatpush.msra.mxu0 0.0
    %2098 = vmatpush.msra.mxu0 0.0
    %2099 = vmatpush.msra.mxu0 0.0
    %2100 = vmatpush.msra.mxu0 0.0
    %2101 = vmatpush.msra.mxu0 0.0
    %2102 = vmatpush.msra.mxu0 0.0
    %2103 = vmatpush.msra.mxu0 %v2081
    %2104 = vmatpush.msra.mxu0 %v2080
    %2105 = vmatpush.msra.mxu0 %v2079
    %2106 = vmatpush.msra.mxu0 %v2078
    %2107 = vmatmul.f32.gmra.mxu0 %v2089
    %v2108 = vpop.f32.mrf.mxu0
    %v2109 = vadd.f32 %v2084, %v2108
    %2110 = vdwg.mxu0
    %vm2111 = vcmask 64512
    %2112 = vst.msk [vmem:[#allocation10] sm:$0xff] %vm2111, %v2109
    // Predicated region
    $region46: #{tpu_custom_call.1} parent=1 // pred_check
      _
    $region47: #{tpu_custom_call.1} parent=1 // pred_check_branch
      %2114 = sbr.rel (0) target = $region49
    $region48: #{tpu_custom_call.1} parent=1 // pred_region
      %2116 = vsyncadd [#allocation6], 0
      %s2118 = sshll.u32 [#allocation10], 4
      %s2119 = int_to_ptr.vmem [resolvable:$true] %s2118
      %s2120 = sshll.u32 %s8, 4
      %s2121 = int_to_ptr.hbm [resolvable:$true] %s2120
      %2123 = dma.vmem_to_hbm [thread:$0]  %s2119, 128, %s2121, [#allocation6]
    $region49: #{tpu_custom_call.1} parent=1 // pred_fallthru
      _
    // Predicated region
    $region50: #{tpu_custom_call.1} parent=1 // pred_check
      _
    $region51: #{tpu_custom_call.1} parent=1 // pred_check_branch
      %2125 = sbr.rel (0) target = $region53
    $region52: #{tpu_custom_call.1} parent=1 // pred_region
      %2127 = dma.done [#allocation6], 128
    $region53: #{tpu_custom_call.1} parent=1 // pred_fallthru
      _
    %2128 = vsyncpa [#allocation5], 1
    %2129 = vsyncpa [#allocation8], 1
    %2130 = vsyncpa [#allocation6], 1

</llo_original>
